<compile_context>
chip_gen: v7x
topology: tpu7x:2x2x1
jax: 0.10.0
libtpu: 0.0.40
codegen_flags: <defaults>
</compile_context>

<pallas_src>
import numpy as np

import jax
import jax.numpy as jnp
from jax import lax
from jax.experimental import pallas as pl
from jax.experimental.pallas import tpu as pltpu

BT = 32           # images per grid step (sweepable: 32 / 64 / 128)
C1, C2 = 10, 20   # conv output channels
K1 = 5 * 28       # conv1 tap-stacked contraction depth (140)
NL1H = 128        # conv1 pooled lane block: 12*10 = 120, zero-padded to 128
NL1 = 2 * NL1H    # conv1 matmul lanes: (pool_w offset) x 128
NL2H = 128        # conv2 pooled lane block: 4*20 = 80, zero-padded to 128
NL2 = 2 * NL2H    # conv2 matmul lanes
F1P = 64          # fc1 width padded 50 -> 64
F2P = 128         # fc2 width padded 10 -> 128 (lane-dense output store)


# ----------------------------------------------------------------------------
# Fused Pallas kernel: one batch tile of BT images end-to-end.
# ----------------------------------------------------------------------------
def _cnn_kernel(xp_ref, t1_ref, b1_ref, t2_ref, b2_ref,
                wf1_ref, bf1_ref, wf2_ref, bf2_ref, out_ref):
    M1 = 6 * BT                                    # conv1 matmul rows: (io', b)
    xall = xp_ref[...].reshape(4 * M1, K1)         # rows (oh0, io', b), bf16
    t1 = t1_ref[...]

    # ---- conv1: one tap-stacked (K=140) matmul per pre-pool row offset oh0 --
    # z[oh0][io'*BT+b, pw*128 + jo*10 + co] = conv1(x)[b, co, 4*io'+oh0, 2*jo+pw]
    z = [jnp.dot(xall[oh0 * M1:(oh0 + 1) * M1, :], t1,
                 preferred_element_type=jnp.float32) for oh0 in range(4)]

    # ---- 2x2 max-pool + bias + relu -> p1[sh]: rows (io', b), lanes jo*10+co
    b1 = b1_ref[...]
    p1 = []
    for sh in range(2):
        y = jnp.maximum(z[2 * sh], z[2 * sh + 1])        # pool over H offset u
        y = jnp.maximum(y[:, :NL1H], y[:, NL1H:])        # pool over W offset (128-aligned)
        p1.append(jnp.maximum(y + b1, 0.0).astype(jnp.bfloat16))   # (6*BT, 128)

    # ---- conv2: per-tap K=128 matmuls, only the 4 valid pooled output rows ---
    # acc2[u2][h*BT+b, pw*128 + w*20 + d] = conv2(p1)[b, d, 2*h+u2, 2*w+pw]
    acc2 = []
    for u2 in range(2):
        acc = None
        for di in range(5):
            o2 = u2 + di
            s, a2 = o2 % 2, o2 // 2
            lhs = p1[s][a2 * BT:(a2 + 4) * BT, :]                       # (4*BT, 128)
            term = jnp.dot(lhs, t2_ref[di], preferred_element_type=jnp.float32)
            acc = term if acc is None else acc + term
        acc2.append(acc)
    y2 = jnp.maximum(acc2[0], acc2[1])                   # pool over H offset u2
    y2 = jnp.maximum(y2[:, :NL2H], y2[:, NL2H:])         # pool over W offset (128-aligned)
    p2 = jnp.maximum(y2 + b2_ref[...], 0.0).astype(jnp.bfloat16)        # (4*BT, 128)

    # ---- fc1: NCHW flatten folded into 4 per-h weight blocks, summed ---------
    h1 = None
    for h in range(4):
        term = jnp.dot(p2[h * BT:(h + 1) * BT, :], wf1_ref[h],
                       preferred_element_type=jnp.float32)              # (BT, 64)
        h1 = term if h1 is None else h1 + term
    h1 = jnp.maximum(h1 + bf1_ref[...], 0.0)             # cols >= 50 stay zero

    # ---- fc2 + log_softmax over the 10 valid logits --------------------------
    logits = jnp.dot(h1.astype(jnp.bfloat16), wf2_ref[...],
                     preferred_element_type=jnp.float32) + bf2_ref[...]  # (BT, 128)
    valid = logits[:, :10]
    m = jnp.max(valid, axis=-1, keepdims=True)
    lse = jnp.log(jnp.sum(jnp.exp(valid - m), axis=-1, keepdims=True)) + m
    out_ref[...] = logits - lse            # only the first 10 lanes are meaningful


# ----------------------------------------------------------------------------
# Host-side parameter packing (done ONCE, outside the per-batch forward).
# ----------------------------------------------------------------------------
def pack_params(params):
    w1 = params["conv1_w"]; b1 = params["conv1_b"]
    w2 = params["conv2_w"]; b2 = params["conv2_b"]
    fw1 = params["fc1_w"]; fb1 = params["fc1_b"]
    fw2 = params["fc2_w"]; fb2 = params["fc2_b"]

    # conv1 Toeplitz with the 5 H-taps stacked along K:
    #   T1[di*28 + w_in, pw*128 + jo*10 + co] = w1[co, 0, di, w_in - (2*jo + pw)]
    k = np.arange(K1)
    di_k = k // 28
    w_in = k % 28
    l1 = np.arange(NL1)
    pw = l1 // NL1H
    rem = l1 % NL1H
    jo = rem // C1
    co = rem % C1
    dj = w_in[:, None] - (2 * jo + pw)[None, :]
    mask = (dj >= 0) & (dj <= 4) & (rem < 12 * C1)[None, :]
    t1 = jnp.where(mask, w1[co[None, :], 0, di_k[:, None], np.clip(dj, 0, 4)], 0.0)

    # conv2 Toeplitz, one (128, 256) block per H-tap:
    #   T2[di][iw*10 + ci, pw*128 + w*20 + d] = w2[d, ci, di, iw - (2*w + pw)]
    di_g = np.arange(5)[:, None, None]
    lin = np.arange(NL1H)[None, :, None]
    lout = np.arange(NL2)[None, None, :]
    iw = lin // C1
    ci = lin % C1
    pw2 = lout // NL2H
    rem2 = lout % NL2H
    wv = rem2 // C2
    d = rem2 % C2
    dj2 = iw - (2 * wv + pw2)
    mask2 = (dj2 >= 0) & (dj2 <= 4) & (lin < 12 * C1) & (rem2 < 4 * C2)
    t2 = jnp.where(mask2, w2[d, ci, di_g, np.clip(dj2, 0, 4)], 0.0)      # (5,128,256)

    # fc1: fold the NCHW flatten f = d*16 + h*4 + w into four per-h row blocks
    # whose rows match the p2 lane layout (w*20 + d, zero-padded to 128).
    lane = np.arange(NL2H)
    wv1 = lane // C2
    d1 = lane % C2
    blocks = []
    for h in range(4):
        f_orig = np.clip(d1 * 16 + h * 4 + wv1, 0, 319)
        blk = jnp.where((lane < 4 * C2)[:, None], fw1[:, f_orig].T, 0.0)  # (128, 50)
        blocks.append(jnp.pad(blk, ((0, 0), (0, F1P - 50))))
    wf1 = jnp.stack(blocks)                                               # (4, 128, 64)
    bf1 = jnp.pad(fb1, (0, F1P - 50)).reshape(1, F1P)

    # fc2: pad K 50 -> 64 and N 10 -> 128 (lane-dense output store).
    wf2 = jnp.pad(fw2.T, ((0, F1P - 50), (0, F2P - 10)))                  # (64, 128)
    bf2 = jnp.pad(fb2, (0, F2P - 10)).reshape(1, F2P)

    return {
        "t1": t1.astype(jnp.bfloat16),
        "b1": jnp.pad(jnp.tile(b1, 12), (0, NL1H - 12 * C1)).reshape(1, NL1H).astype(jnp.float32),
        "t2": t2.astype(jnp.bfloat16),
        "b2": jnp.pad(jnp.tile(b2, 4), (0, NL2H - 4 * C2)).reshape(1, NL2H).astype(jnp.float32),
        "wf1": wf1.astype(jnp.bfloat16),
        "bf1": bf1.astype(jnp.float32),
        "wf2": wf2.astype(jnp.bfloat16),
        "bf2": bf2.astype(jnp.float32),
    }


# ----------------------------------------------------------------------------
# pallas_call wrapper: single fused kernel, grid over batch tiles.
# ----------------------------------------------------------------------------
def _run_pallas(xp, packed, bp):
    grid = (bp // BT,)
    in_specs = [
        pl.BlockSpec((24, BT, K1), lambda i: (0, i, 0)),          # packed input rows
        pl.BlockSpec((K1, NL1), lambda i: (0, 0)),                # t1 (tap-stacked)
        pl.BlockSpec((1, NL1H), lambda i: (0, 0)),                # conv1 bias
        pl.BlockSpec((5, NL1H, NL2), lambda i: (0, 0, 0)),        # t2 (per-tap)
        pl.BlockSpec((1, NL2H), lambda i: (0, 0)),                # conv2 bias
        pl.BlockSpec((4, NL2H, F1P), lambda i: (0, 0, 0)),        # fc1 per-h blocks
        pl.BlockSpec((1, F1P), lambda i: (0, 0)),                 # fc1 bias
        pl.BlockSpec((F1P, F2P), lambda i: (0, 0)),               # fc2 weight
        pl.BlockSpec((1, F2P), lambda i: (0, 0)),                 # fc2 bias
    ]
    return pl.pallas_call(
        _cnn_kernel,
        out_shape=jax.ShapeDtypeStruct((bp, F2P), jnp.float32),
        grid=grid,
        in_specs=in_specs,
        out_specs=pl.BlockSpec((BT, F2P), lambda i: (i, 0)),
        compiler_params=pltpu.CompilerParams(
            dimension_semantics=("parallel",)),
    )(xp, packed["t1"], packed["b1"], packed["t2"], packed["b2"],
      packed["wf1"], packed["bf1"], packed["wf2"], packed["bf2"])


@jax.jit
def cnn_mnist_forward(x, packed):
    """x: (N, 1, 28, 28) float32 NCHW  ->  (N, 10) log-probabilities."""
    n = x.shape[0]
    bp = ((n + BT - 1) // BT) * BT
    x2 = jnp.pad(x[:, 0, :, :], ((0, bp - n), (0, 0), (0, 0)))    # (bp, 28, 28)
    # Pack conv1's receptive rows once (tap-stacked K layout, bf16):
    #   XP[oh0*6 + io', b, di*28 + w] = image[b, 4*io' + oh0 + di, w]
    oh0 = np.arange(4)[:, None, None]
    io = np.arange(6)[None, :, None]
    di = np.arange(5)[None, None, :]
    rows = 4 * io + oh0 + di                                       # (4, 6, 5), max 27
    xp = x2[:, rows, :]                                            # (bp, 4, 6, 5, 28)
    xp = jnp.transpose(xp, (1, 2, 0, 3, 4)).reshape(24, bp, K1)
    xp = xp.astype(jnp.bfloat16)
    out = _run_pallas(xp, packed, bp)                              # (bp, 128)
    return out[:n, :10]


# ----------------------------------------------------------------------------
# Pure-JAX reference (for runtime self-check) and synthetic params.
# ----------------------------------------------------------------------------
def reference_forward(x, params):
    dn = ("NCHW", "OIHW", "NCHW")
    y = lax.conv_general_dilated(x, params["conv1_w"], (1, 1), "VALID",
                                 dimension_numbers=dn)
    y = y + params["conv1_b"][None, :, None, None]
    y = lax.reduce_window(y, -jnp.inf, lax.max, (1, 1, 2, 2), (1, 1, 2, 2), "VALID")
    y = jax.nn.relu(y)
    y = lax.conv_general_dilated(y, params["conv2_w"], (1, 1), "VALID",
                                 dimension_numbers=dn)
    y = y + params["conv2_b"][None, :, None, None]
    y = lax.reduce_window(y, -jnp.inf, lax.max, (1, 1, 2, 2), (1, 1, 2, 2), "VALID")
    y = jax.nn.relu(y)
    y = y.reshape(y.shape[0], -1)
    y = jax.nn.relu(y @ params["fc1_w"].T + params["fc1_b"])
    y = y @ params["fc2_w"].T + params["fc2_b"]
    return jax.nn.log_softmax(y, axis=-1)


def init_params(key):
    ks = jax.random.split(key, 8)
    s = 0.1
    return {
        "conv1_w": s * jax.random.normal(ks[0], (10, 1, 5, 5), jnp.float32),
        "conv1_b": s * jax.random.normal(ks[1], (10,), jnp.float32),
        "conv2_w": s * jax.random.normal(ks[2], (20, 10, 5, 5), jnp.float32),
        "conv2_b": s * jax.random.normal(ks[3], (20,), jnp.float32),
        "fc1_w": s * jax.random.normal(ks[4], (50, 320), jnp.float32),
        "fc1_b": s * jax.random.normal(ks[5], (50,), jnp.float32),
        "fc2_w": s * jax.random.normal(ks[6], (10, 50), jnp.float32),
        "fc2_b": s * jax.random.normal(ks[7], (10,), jnp.float32),
    }


if __name__ == "__main__":
    key = jax.random.PRNGKey(0)
    k_param, k_x = jax.random.split(key)
    params = init_params(k_param)
    x = jax.random.normal(k_x, (2, 1, 28, 28), jnp.float32)

    packed = pack_params(params)          # weight packing hoisted out of the hot path
    out = cnn_mnist_forward(x, packed)
    jax.block_until_ready(out)

    assert out.shape == (2, 10)
    ref = reference_forward(x, params)
    err = float(jnp.max(jnp.abs(out - ref)))
    assert err < 7.5e-2, f"max abs err vs reference: {err}"
    row_sums = jnp.sum(jnp.exp(out), axis=1)
    assert bool(jnp.all(jnp.abs(row_sums - 1.0) < 1e-3))
    print("KERNEL_OK")
</pallas_src>

<mosaic_0001>
module attributes {stable_mosaic.version = 11 : i64} {
  func.func @_cnn_kernel(%arg0: i32, %arg1: memref<24x32x140xbf16, #tpu.memory_space<vmem>>, %arg2: memref<140x256xbf16, #tpu.memory_space<vmem>>, %arg3: memref<1x128xf32, #tpu.memory_space<vmem>>, %arg4: memref<5x128x256xbf16, #tpu.memory_space<vmem>>, %arg5: memref<1x128xf32, #tpu.memory_space<vmem>>, %arg6: memref<4x128x64xbf16, #tpu.memory_space<vmem>>, %arg7: memref<1x64xf32, #tpu.memory_space<vmem>>, %arg8: memref<64x128xbf16, #tpu.memory_space<vmem>>, %arg9: memref<1x128xf32, #tpu.memory_space<vmem>>, %arg10: memref<32x128xf32, #tpu.memory_space<vmem>>) attributes {dimension_semantics = [#tpu.dimension_semantics<parallel>], iteration_bounds = array<i64: 1>, scalar_prefetch = 0 : i64, scratch_operands = 0 : i64, tpu.core_type = #tpu.core_type<tc>, window_params = [{transform_indices = @transform_0, window_bounds = array<i64: 24, 32, 140>}, {pipeline_mode = #tpu.pipeline_mode<synchronous>, transform_indices = @transform_1, window_bounds = array<i64: 140, 256>}, {pipeline_mode = #tpu.pipeline_mode<synchronous>, transform_indices = @transform_2, window_bounds = array<i64: 1, 128>}, {pipeline_mode = #tpu.pipeline_mode<synchronous>, transform_indices = @transform_3, window_bounds = array<i64: 5, 128, 256>}, {pipeline_mode = #tpu.pipeline_mode<synchronous>, transform_indices = @transform_4, window_bounds = array<i64: 1, 128>}, {pipeline_mode = #tpu.pipeline_mode<synchronous>, transform_indices = @transform_5, window_bounds = array<i64: 4, 128, 64>}, {pipeline_mode = #tpu.pipeline_mode<synchronous>, transform_indices = @transform_6, window_bounds = array<i64: 1, 64>}, {pipeline_mode = #tpu.pipeline_mode<synchronous>, transform_indices = @transform_7, window_bounds = array<i64: 64, 128>}, {pipeline_mode = #tpu.pipeline_mode<synchronous>, transform_indices = @transform_8, window_bounds = array<i64: 1, 128>}, {transform_indices = @transform_9, window_bounds = array<i64: 32, 128>}]} {
    %c0 = arith.constant 0 : index
    %c0_0 = arith.constant 0 : index
    %c0_1 = arith.constant 0 : index
    %0 = vector.load %arg1[%c0, %c0_0, %c0_1] : memref<24x32x140xbf16, #tpu.memory_space<vmem>>, vector<24x32x140xbf16>
    %1 = vector.shape_cast %0 : vector<24x32x140xbf16> to vector<768x140xbf16>
    %c0_2 = arith.constant 0 : index
    %c0_3 = arith.constant 0 : index
    %2 = vector.load %arg2[%c0_2, %c0_3] : memref<140x256xbf16, #tpu.memory_space<vmem>>, vector<140x256xbf16>
    %3 = vector.extract_strided_slice %1 {offsets = [0, 0], sizes = [192, 140], strides = [1, 1]} : vector<768x140xbf16> to vector<192x140xbf16>
    %cst = arith.constant dense<0.000000e+00> : vector<192x256xf32>
    %4 = tpu.matmul %3, %2, %cst {dimension_numbers = #tpu.dot_dimension_numbers<[1], [0], [0], [1], [0, 0, 1, 1], [], []>} : vector<192x140xbf16>, vector<140x256xbf16>, vector<192x256xf32> -> vector<192x256xf32>
    %5 = vector.extract_strided_slice %1 {offsets = [192, 0], sizes = [192, 140], strides = [1, 1]} : vector<768x140xbf16> to vector<192x140xbf16>
    %cst_4 = arith.constant dense<0.000000e+00> : vector<192x256xf32>
    %6 = tpu.matmul %5, %2, %cst_4 {dimension_numbers = #tpu.dot_dimension_numbers<[1], [0], [0], [1], [0, 0, 1, 1], [], []>} : vector<192x140xbf16>, vector<140x256xbf16>, vector<192x256xf32> -> vector<192x256xf32>
    %7 = vector.extract_strided_slice %1 {offsets = [384, 0], sizes = [192, 140], strides = [1, 1]} : vector<768x140xbf16> to vector<192x140xbf16>
    %cst_5 = arith.constant dense<0.000000e+00> : vector<192x256xf32>
    %8 = tpu.matmul %7, %2, %cst_5 {dimension_numbers = #tpu.dot_dimension_numbers<[1], [0], [0], [1], [0, 0, 1, 1], [], []>} : vector<192x140xbf16>, vector<140x256xbf16>, vector<192x256xf32> -> vector<192x256xf32>
    %9 = vector.extract_strided_slice %1 {offsets = [576, 0], sizes = [192, 140], strides = [1, 1]} : vector<768x140xbf16> to vector<192x140xbf16>
    %cst_6 = arith.constant dense<0.000000e+00> : vector<192x256xf32>
    %10 = tpu.matmul %9, %2, %cst_6 {dimension_numbers = #tpu.dot_dimension_numbers<[1], [0], [0], [1], [0, 0, 1, 1], [], []>} : vector<192x140xbf16>, vector<140x256xbf16>, vector<192x256xf32> -> vector<192x256xf32>
    %c0_7 = arith.constant 0 : index
    %c0_8 = arith.constant 0 : index
    %11 = vector.load %arg3[%c0_7, %c0_8] : memref<1x128xf32, #tpu.memory_space<vmem>>, vector<1x128xf32>
    %12 = arith.maximumf %4, %6 : vector<192x256xf32>
    %13 = vector.extract_strided_slice %12 {offsets = [0, 0], sizes = [192, 128], strides = [1, 1]} : vector<192x256xf32> to vector<192x128xf32>
    %14 = vector.extract_strided_slice %12 {offsets = [0, 128], sizes = [192, 128], strides = [1, 1]} : vector<192x256xf32> to vector<192x128xf32>
    %15 = arith.maximumf %13, %14 : vector<192x128xf32>
    %16 = vector.broadcast %11 : vector<1x128xf32> to vector<192x128xf32>
    %17 = arith.addf %15, %16 : vector<192x128xf32>
    %cst_9 = arith.constant 0.000000e+00 : f32
    %18 = vector.broadcast %cst_9 : f32 to vector<192x128xf32>
    %19 = arith.maximumf %17, %18 : vector<192x128xf32>
    %20 = arith.truncf %19 : vector<192x128xf32> to vector<192x128xbf16>
    %21 = arith.maximumf %8, %10 : vector<192x256xf32>
    %22 = vector.extract_strided_slice %21 {offsets = [0, 0], sizes = [192, 128], strides = [1, 1]} : vector<192x256xf32> to vector<192x128xf32>
    %23 = vector.extract_strided_slice %21 {offsets = [0, 128], sizes = [192, 128], strides = [1, 1]} : vector<192x256xf32> to vector<192x128xf32>
    %24 = arith.maximumf %22, %23 : vector<192x128xf32>
    %25 = vector.broadcast %11 : vector<1x128xf32> to vector<192x128xf32>
    %26 = arith.addf %24, %25 : vector<192x128xf32>
    %cst_10 = arith.constant 0.000000e+00 : f32
    %27 = vector.broadcast %cst_10 : f32 to vector<192x128xf32>
    %28 = arith.maximumf %26, %27 : vector<192x128xf32>
    %29 = arith.truncf %28 : vector<192x128xf32> to vector<192x128xbf16>
    %30 = vector.extract_strided_slice %20 {offsets = [0, 0], sizes = [128, 128], strides = [1, 1]} : vector<192x128xbf16> to vector<128x128xbf16>
    %c0_11 = arith.constant 0 : index
    %c0_12 = arith.constant 0 : index
    %c0_13 = arith.constant 0 : index
    %31 = vector.load %arg4[%c0_11, %c0_12, %c0_13] : memref<5x128x256xbf16, #tpu.memory_space<vmem>>, vector<1x128x256xbf16>
    %32 = vector.shape_cast %31 : vector<1x128x256xbf16> to vector<128x256xbf16>
    %cst_14 = arith.constant dense<0.000000e+00> : vector<128x256xf32>
    %33 = tpu.matmul %30, %32, %cst_14 {dimension_numbers = #tpu.dot_dimension_numbers<[1], [0], [0], [1], [0, 0, 1, 1], [], []>} : vector<128x128xbf16>, vector<128x256xbf16>, vector<128x256xf32> -> vector<128x256xf32>
    %34 = vector.extract_strided_slice %29 {offsets = [0, 0], sizes = [128, 128], strides = [1, 1]} : vector<192x128xbf16> to vector<128x128xbf16>
    %c1 = arith.constant 1 : index
    %c0_15 = arith.constant 0 : index
    %c0_16 = arith.constant 0 : index
    %35 = vector.load %arg4[%c1, %c0_15, %c0_16] : memref<5x128x256xbf16, #tpu.memory_space<vmem>>, vector<1x128x256xbf16>
    %36 = vector.shape_cast %35 : vector<1x128x256xbf16> to vector<128x256xbf16>
    %cst_17 = arith.constant dense<0.000000e+00> : vector<128x256xf32>
    %37 = tpu.matmul %34, %36, %cst_17 {dimension_numbers = #tpu.dot_dimension_numbers<[1], [0], [0], [1], [0, 0, 1, 1], [], []>} : vector<128x128xbf16>, vector<128x256xbf16>, vector<128x256xf32> -> vector<128x256xf32>
    %38 = arith.addf %33, %37 : vector<128x256xf32>
    %39 = vector.extract_strided_slice %20 {offsets = [32, 0], sizes = [128, 128], strides = [1, 1]} : vector<192x128xbf16> to vector<128x128xbf16>
    %c2 = arith.constant 2 : index
    %c0_18 = arith.constant 0 : index
    %c0_19 = arith.constant 0 : index
    %40 = vector.load %arg4[%c2, %c0_18, %c0_19] : memref<5x128x256xbf16, #tpu.memory_space<vmem>>, vector<1x128x256xbf16>
    %41 = vector.shape_cast %40 : vector<1x128x256xbf16> to vector<128x256xbf16>
    %cst_20 = arith.constant dense<0.000000e+00> : vector<128x256xf32>
    %42 = tpu.matmul %39, %41, %cst_20 {dimension_numbers = #tpu.dot_dimension_numbers<[1], [0], [0], [1], [0, 0, 1, 1], [], []>} : vector<128x128xbf16>, vector<128x256xbf16>, vector<128x256xf32> -> vector<128x256xf32>
    %43 = arith.addf %38, %42 : vector<128x256xf32>
    %44 = vector.extract_strided_slice %29 {offsets = [32, 0], sizes = [128, 128], strides = [1, 1]} : vector<192x128xbf16> to vector<128x128xbf16>
    %c3 = arith.constant 3 : index
    %c0_21 = arith.constant 0 : index
    %c0_22 = arith.constant 0 : index
    %45 = vector.load %arg4[%c3, %c0_21, %c0_22] : memref<5x128x256xbf16, #tpu.memory_space<vmem>>, vector<1x128x256xbf16>
    %46 = vector.shape_cast %45 : vector<1x128x256xbf16> to vector<128x256xbf16>
    %cst_23 = arith.constant dense<0.000000e+00> : vector<128x256xf32>
    %47 = tpu.matmul %44, %46, %cst_23 {dimension_numbers = #tpu.dot_dimension_numbers<[1], [0], [0], [1], [0, 0, 1, 1], [], []>} : vector<128x128xbf16>, vector<128x256xbf16>, vector<128x256xf32> -> vector<128x256xf32>
    %48 = arith.addf %43, %47 : vector<128x256xf32>
    %49 = vector.extract_strided_slice %20 {offsets = [64, 0], sizes = [128, 128], strides = [1, 1]} : vector<192x128xbf16> to vector<128x128xbf16>
    %c4 = arith.constant 4 : index
    %c0_24 = arith.constant 0 : index
    %c0_25 = arith.constant 0 : index
    %50 = vector.load %arg4[%c4, %c0_24, %c0_25] : memref<5x128x256xbf16, #tpu.memory_space<vmem>>, vector<1x128x256xbf16>
    %51 = vector.shape_cast %50 : vector<1x128x256xbf16> to vector<128x256xbf16>
    %cst_26 = arith.constant dense<0.000000e+00> : vector<128x256xf32>
    %52 = tpu.matmul %49, %51, %cst_26 {dimension_numbers = #tpu.dot_dimension_numbers<[1], [0], [0], [1], [0, 0, 1, 1], [], []>} : vector<128x128xbf16>, vector<128x256xbf16>, vector<128x256xf32> -> vector<128x256xf32>
    %53 = arith.addf %48, %52 : vector<128x256xf32>
    %54 = vector.extract_strided_slice %29 {offsets = [0, 0], sizes = [128, 128], strides = [1, 1]} : vector<192x128xbf16> to vector<128x128xbf16>
    %c0_27 = arith.constant 0 : index
    %c0_28 = arith.constant 0 : index
    %c0_29 = arith.constant 0 : index
    %55 = vector.load %arg4[%c0_27, %c0_28, %c0_29] : memref<5x128x256xbf16, #tpu.memory_space<vmem>>, vector<1x128x256xbf16>
    %56 = vector.shape_cast %55 : vector<1x128x256xbf16> to vector<128x256xbf16>
    %cst_30 = arith.constant dense<0.000000e+00> : vector<128x256xf32>
    %57 = tpu.matmul %54, %56, %cst_30 {dimension_numbers = #tpu.dot_dimension_numbers<[1], [0], [0], [1], [0, 0, 1, 1], [], []>} : vector<128x128xbf16>, vector<128x256xbf16>, vector<128x256xf32> -> vector<128x256xf32>
    %58 = vector.extract_strided_slice %20 {offsets = [32, 0], sizes = [128, 128], strides = [1, 1]} : vector<192x128xbf16> to vector<128x128xbf16>
    %c1_31 = arith.constant 1 : index
    %c0_32 = arith.constant 0 : index
    %c0_33 = arith.constant 0 : index
    %59 = vector.load %arg4[%c1_31, %c0_32, %c0_33] : memref<5x128x256xbf16, #tpu.memory_space<vmem>>, vector<1x128x256xbf16>
    %60 = vector.shape_cast %59 : vector<1x128x256xbf16> to vector<128x256xbf16>
    %cst_34 = arith.constant dense<0.000000e+00> : vector<128x256xf32>
    %61 = tpu.matmul %58, %60, %cst_34 {dimension_numbers = #tpu.dot_dimension_numbers<[1], [0], [0], [1], [0, 0, 1, 1], [], []>} : vector<128x128xbf16>, vector<128x256xbf16>, vector<128x256xf32> -> vector<128x256xf32>
    %62 = arith.addf %57, %61 : vector<128x256xf32>
    %63 = vector.extract_strided_slice %29 {offsets = [32, 0], sizes = [128, 128], strides = [1, 1]} : vector<192x128xbf16> to vector<128x128xbf16>
    %c2_35 = arith.constant 2 : index
    %c0_36 = arith.constant 0 : index
    %c0_37 = arith.constant 0 : index
    %64 = vector.load %arg4[%c2_35, %c0_36, %c0_37] : memref<5x128x256xbf16, #tpu.memory_space<vmem>>, vector<1x128x256xbf16>
    %65 = vector.shape_cast %64 : vector<1x128x256xbf16> to vector<128x256xbf16>
    %cst_38 = arith.constant dense<0.000000e+00> : vector<128x256xf32>
    %66 = tpu.matmul %63, %65, %cst_38 {dimension_numbers = #tpu.dot_dimension_numbers<[1], [0], [0], [1], [0, 0, 1, 1], [], []>} : vector<128x128xbf16>, vector<128x256xbf16>, vector<128x256xf32> -> vector<128x256xf32>
    %67 = arith.addf %62, %66 : vector<128x256xf32>
    %68 = vector.extract_strided_slice %20 {offsets = [64, 0], sizes = [128, 128], strides = [1, 1]} : vector<192x128xbf16> to vector<128x128xbf16>
    %c3_39 = arith.constant 3 : index
    %c0_40 = arith.constant 0 : index
    %c0_41 = arith.constant 0 : index
    %69 = vector.load %arg4[%c3_39, %c0_40, %c0_41] : memref<5x128x256xbf16, #tpu.memory_space<vmem>>, vector<1x128x256xbf16>
    %70 = vector.shape_cast %69 : vector<1x128x256xbf16> to vector<128x256xbf16>
    %cst_42 = arith.constant dense<0.000000e+00> : vector<128x256xf32>
    %71 = tpu.matmul %68, %70, %cst_42 {dimension_numbers = #tpu.dot_dimension_numbers<[1], [0], [0], [1], [0, 0, 1, 1], [], []>} : vector<128x128xbf16>, vector<128x256xbf16>, vector<128x256xf32> -> vector<128x256xf32>
    %72 = arith.addf %67, %71 : vector<128x256xf32>
    %73 = vector.extract_strided_slice %29 {offsets = [64, 0], sizes = [128, 128], strides = [1, 1]} : vector<192x128xbf16> to vector<128x128xbf16>
    %c4_43 = arith.constant 4 : index
    %c0_44 = arith.constant 0 : index
    %c0_45 = arith.constant 0 : index
    %74 = vector.load %arg4[%c4_43, %c0_44, %c0_45] : memref<5x128x256xbf16, #tpu.memory_space<vmem>>, vector<1x128x256xbf16>
    %75 = vector.shape_cast %74 : vector<1x128x256xbf16> to vector<128x256xbf16>
    %cst_46 = arith.constant dense<0.000000e+00> : vector<128x256xf32>
    %76 = tpu.matmul %73, %75, %cst_46 {dimension_numbers = #tpu.dot_dimension_numbers<[1], [0], [0], [1], [0, 0, 1, 1], [], []>} : vector<128x128xbf16>, vector<128x256xbf16>, vector<128x256xf32> -> vector<128x256xf32>
    %77 = arith.addf %72, %76 : vector<128x256xf32>
    %78 = arith.maximumf %53, %77 : vector<128x256xf32>
    %79 = vector.extract_strided_slice %78 {offsets = [0, 0], sizes = [128, 128], strides = [1, 1]} : vector<128x256xf32> to vector<128x128xf32>
    %80 = vector.extract_strided_slice %78 {offsets = [0, 128], sizes = [128, 128], strides = [1, 1]} : vector<128x256xf32> to vector<128x128xf32>
    %81 = arith.maximumf %79, %80 : vector<128x128xf32>
    %c0_47 = arith.constant 0 : index
    %c0_48 = arith.constant 0 : index
    %82 = vector.load %arg5[%c0_47, %c0_48] : memref<1x128xf32, #tpu.memory_space<vmem>>, vector<1x128xf32>
    %83 = vector.broadcast %82 : vector<1x128xf32> to vector<128x128xf32>
    %84 = arith.addf %81, %83 : vector<128x128xf32>
    %cst_49 = arith.constant 0.000000e+00 : f32
    %85 = vector.broadcast %cst_49 : f32 to vector<128x128xf32>
    %86 = arith.maximumf %84, %85 : vector<128x128xf32>
    %87 = arith.truncf %86 : vector<128x128xf32> to vector<128x128xbf16>
    %88 = vector.extract_strided_slice %87 {offsets = [0, 0], sizes = [32, 128], strides = [1, 1]} : vector<128x128xbf16> to vector<32x128xbf16>
    %c0_50 = arith.constant 0 : index
    %c0_51 = arith.constant 0 : index
    %c0_52 = arith.constant 0 : index
    %89 = vector.load %arg6[%c0_50, %c0_51, %c0_52] : memref<4x128x64xbf16, #tpu.memory_space<vmem>>, vector<1x128x64xbf16>
    %90 = vector.shape_cast %89 : vector<1x128x64xbf16> to vector<128x64xbf16>
    %cst_53 = arith.constant dense<0.000000e+00> : vector<32x64xf32>
    %91 = tpu.matmul %88, %90, %cst_53 {dimension_numbers = #tpu.dot_dimension_numbers<[1], [0], [0], [1], [0, 0, 1, 1], [], []>} : vector<32x128xbf16>, vector<128x64xbf16>, vector<32x64xf32> -> vector<32x64xf32>
    %92 = vector.extract_strided_slice %87 {offsets = [32, 0], sizes = [32, 128], strides = [1, 1]} : vector<128x128xbf16> to vector<32x128xbf16>
    %c1_54 = arith.constant 1 : index
    %c0_55 = arith.constant 0 : index
    %c0_56 = arith.constant 0 : index
    %93 = vector.load %arg6[%c1_54, %c0_55, %c0_56] : memref<4x128x64xbf16, #tpu.memory_space<vmem>>, vector<1x128x64xbf16>
    %94 = vector.shape_cast %93 : vector<1x128x64xbf16> to vector<128x64xbf16>
    %cst_57 = arith.constant dense<0.000000e+00> : vector<32x64xf32>
    %95 = tpu.matmul %92, %94, %cst_57 {dimension_numbers = #tpu.dot_dimension_numbers<[1], [0], [0], [1], [0, 0, 1, 1], [], []>} : vector<32x128xbf16>, vector<128x64xbf16>, vector<32x64xf32> -> vector<32x64xf32>
    %96 = arith.addf %91, %95 : vector<32x64xf32>
    %97 = vector.extract_strided_slice %87 {offsets = [64, 0], sizes = [32, 128], strides = [1, 1]} : vector<128x128xbf16> to vector<32x128xbf16>
    %c2_58 = arith.constant 2 : index
    %c0_59 = arith.constant 0 : index
    %c0_60 = arith.constant 0 : index
    %98 = vector.load %arg6[%c2_58, %c0_59, %c0_60] : memref<4x128x64xbf16, #tpu.memory_space<vmem>>, vector<1x128x64xbf16>
    %99 = vector.shape_cast %98 : vector<1x128x64xbf16> to vector<128x64xbf16>
    %cst_61 = arith.constant dense<0.000000e+00> : vector<32x64xf32>
    %100 = tpu.matmul %97, %99, %cst_61 {dimension_numbers = #tpu.dot_dimension_numbers<[1], [0], [0], [1], [0, 0, 1, 1], [], []>} : vector<32x128xbf16>, vector<128x64xbf16>, vector<32x64xf32> -> vector<32x64xf32>
    %101 = arith.addf %96, %100 : vector<32x64xf32>
    %102 = vector.extract_strided_slice %87 {offsets = [96, 0], sizes = [32, 128], strides = [1, 1]} : vector<128x128xbf16> to vector<32x128xbf16>
    %c3_62 = arith.constant 3 : index
    %c0_63 = arith.constant 0 : index
    %c0_64 = arith.constant 0 : index
    %103 = vector.load %arg6[%c3_62, %c0_63, %c0_64] : memref<4x128x64xbf16, #tpu.memory_space<vmem>>, vector<1x128x64xbf16>
    %104 = vector.shape_cast %103 : vector<1x128x64xbf16> to vector<128x64xbf16>
    %cst_65 = arith.constant dense<0.000000e+00> : vector<32x64xf32>
    %105 = tpu.matmul %102, %104, %cst_65 {dimension_numbers = #tpu.dot_dimension_numbers<[1], [0], [0], [1], [0, 0, 1, 1], [], []>} : vector<32x128xbf16>, vector<128x64xbf16>, vector<32x64xf32> -> vector<32x64xf32>
    %106 = arith.addf %101, %105 : vector<32x64xf32>
    %c0_66 = arith.constant 0 : index
    %c0_67 = arith.constant 0 : index
    %107 = vector.load %arg7[%c0_66, %c0_67] : memref<1x64xf32, #tpu.memory_space<vmem>>, vector<1x64xf32>
    %108 = vector.broadcast %107 : vector<1x64xf32> to vector<32x64xf32>
    %109 = arith.addf %106, %108 : vector<32x64xf32>
    %cst_68 = arith.constant 0.000000e+00 : f32
    %110 = vector.broadcast %cst_68 : f32 to vector<32x64xf32>
    %111 = arith.maximumf %109, %110 : vector<32x64xf32>
    %112 = arith.truncf %111 : vector<32x64xf32> to vector<32x64xbf16>
    %c0_69 = arith.constant 0 : index
    %c0_70 = arith.constant 0 : index
    %113 = vector.load %arg8[%c0_69, %c0_70] : memref<64x128xbf16, #tpu.memory_space<vmem>>, vector<64x128xbf16>
    %cst_71 = arith.constant dense<0.000000e+00> : vector<32x128xf32>
    %114 = tpu.matmul %112, %113, %cst_71 {dimension_numbers = #tpu.dot_dimension_numbers<[1], [0], [0], [1], [0, 0, 1, 1], [], []>} : vector<32x64xbf16>, vector<64x128xbf16>, vector<32x128xf32> -> vector<32x128xf32>
    %c0_72 = arith.constant 0 : index
    %c0_73 = arith.constant 0 : index
    %115 = vector.load %arg9[%c0_72, %c0_73] : memref<1x128xf32, #tpu.memory_space<vmem>>, vector<1x128xf32>
    %116 = vector.broadcast %115 : vector<1x128xf32> to vector<32x128xf32>
    %117 = arith.addf %114, %116 : vector<32x128xf32>
    %118 = vector.extract_strided_slice %117 {offsets = [0, 0], sizes = [32, 10], strides = [1, 1]} : vector<32x128xf32> to vector<32x10xf32>
    %cst_74 = arith.constant dense<0xFF800000> : vector<32xf32>
    %119 = vector.multi_reduction <maximumf>, %118, %cst_74 [1] : vector<32x10xf32> to vector<32xf32>
    %120 = vector.shape_cast %119 : vector<32xf32> to vector<32x1xf32>
    %121 = vector.broadcast %120 : vector<32x1xf32> to vector<32x10xf32>
    %122 = arith.subf %118, %121 : vector<32x10xf32>
    %123 = math.exp %122 : vector<32x10xf32>
    %cst_75 = arith.constant dense<0.000000e+00> : vector<32xf32>
    %124 = vector.multi_reduction <add>, %123, %cst_75 [1] : vector<32x10xf32> to vector<32xf32>
    %125 = vector.shape_cast %124 : vector<32xf32> to vector<32x1xf32>
    %126 = math.log %125 : vector<32x1xf32>
    %127 = arith.addf %126, %120 : vector<32x1xf32>
    %128 = vector.broadcast %127 : vector<32x1xf32> to vector<32x128xf32>
    %129 = arith.subf %117, %128 : vector<32x128xf32>
    %c0_76 = arith.constant 0 : index
    %c0_77 = arith.constant 0 : index
    %130 = vector.load %arg10[%c0_76, %c0_77] : memref<32x128xf32, #tpu.memory_space<vmem>>, vector<32x128xf32>
    tpu.vector_store %arg10[%c0_76, %c0_77], %129 {strides = array<i32>} : memref<32x128xf32, #tpu.memory_space<vmem>>, vector<32x128xf32>,
    return
  }
  func.func @transform_0(%arg0: i32) -> (i32, i32, i32) {
    %c0_i32 = arith.constant 0 : i32
    %c0_i32_0 = arith.constant 0 : i32
    %c0_i32_1 = arith.constant 0 : i32
    return %c0_i32, %arg0, %c0_i32_0 : i32, i32, i32
  }
  func.func @transform_1(%arg0: i32) -> (i32, i32) {
    %c0_i32 = arith.constant 0 : i32
    %c0_i32_0 = arith.constant 0 : i32
    %c0_i32_1 = arith.constant 0 : i32
    return %c0_i32, %c0_i32_0 : i32, i32
  }
  func.func @transform_2(%arg0: i32) -> (i32, i32) {
    %c0_i32 = arith.constant 0 : i32
    %c0_i32_0 = arith.constant 0 : i32
    %c0_i32_1 = arith.constant 0 : i32
    return %c0_i32, %c0_i32_0 : i32, i32
  }
  func.func @transform_3(%arg0: i32) -> (i32, i32, i32) {
    %c0_i32 = arith.constant 0 : i32
    %c0_i32_0 = arith.constant 0 : i32
    %c0_i32_1 = arith.constant 0 : i32
    %c0_i32_2 = arith.constant 0 : i32
    return %c0_i32, %c0_i32_0, %c0_i32_1 : i32, i32, i32
  }
  func.func @transform_4(%arg0: i32) -> (i32, i32) {
    %c0_i32 = arith.constant 0 : i32
    %c0_i32_0 = arith.constant 0 : i32
    %c0_i32_1 = arith.constant 0 : i32
    return %c0_i32, %c0_i32_0 : i32, i32
  }
  func.func @transform_5(%arg0: i32) -> (i32, i32, i32) {
    %c0_i32 = arith.constant 0 : i32
    %c0_i32_0 = arith.constant 0 : i32
    %c0_i32_1 = arith.constant 0 : i32
    %c0_i32_2 = arith.constant 0 : i32
    return %c0_i32, %c0_i32_0, %c0_i32_1 : i32, i32, i32
  }
  func.func @transform_6(%arg0: i32) -> (i32, i32) {
    %c0_i32 = arith.constant 0 : i32
    %c0_i32_0 = arith.constant 0 : i32
    %c0_i32_1 = arith.constant 0 : i32
    return %c0_i32, %c0_i32_0 : i32, i32
  }
  func.func @transform_7(%arg0: i32) -> (i32, i32) {
    %c0_i32 = arith.constant 0 : i32
    %c0_i32_0 = arith.constant 0 : i32
    %c0_i32_1 = arith.constant 0 : i32
    return %c0_i32, %c0_i32_0 : i32, i32
  }
  func.func @transform_8(%arg0: i32) -> (i32, i32) {
    %c0_i32 = arith.constant 0 : i32
    %c0_i32_0 = arith.constant 0 : i32
    %c0_i32_1 = arith.constant 0 : i32
    return %c0_i32, %c0_i32_0 : i32, i32
  }
  func.func @transform_9(%arg0: i32) -> (i32, i32) {
    %c0_i32 = arith.constant 0 : i32
    %c0_i32_0 = arith.constant 0 : i32
    return %arg0, %c0_i32 : i32, i32
  }
}

</mosaic_0001>

<llo_original>
// kernel: cnn_mnist_forward.1
$region0: #{cnn_mnist_forward.1}
  #allocation0 [shape = 'u32[]', space=smem, size = 0x4, offset = 0x4, fixed_abs, tag = 'smem constant byte address 0x4 - core index']
  #allocation1 [shape = 'u32[144,128]{1,0:T(1,128)}', space=vmem, size = 0x12000, scoped, tag = 'internal scratch']
  %s0 = inlined_call_operand.vmem [shape: bf16[24,32,140], index: 0, kind: input, shape index: {}]
  %s1 = inlined_call_operand.vmem [shape: bf16[140,256], index: 1, kind: input, shape index: {}]
  %s2 = inlined_call_operand.vmem [shape: f32[1,128], index: 2, kind: input, shape index: {}]
  %s3 = inlined_call_operand.vmem [shape: bf16[5,128,256], index: 3, kind: input, shape index: {}]
  %s4 = inlined_call_operand.vmem [shape: f32[1,128], index: 4, kind: input, shape index: {}]
  %s5 = inlined_call_operand.vmem [shape: bf16[4,128,64], index: 5, kind: input, shape index: {}]
  %s6 = inlined_call_operand.vmem [shape: f32[1,64], index: 6, kind: input, shape index: {}]
  %s7 = inlined_call_operand.vmem [shape: bf16[64,128], index: 7, kind: input, shape index: {}]
  %s8 = inlined_call_operand.vmem [shape: f32[1,128], index: 8, kind: input, shape index: {}]
  %s9 = inlined_call_operand.vmem [shape: f32[32,128], index: 9, kind: output, shape index: {}]
  %s10 = sld [smem:[#allocation0]]
  $region46: #{cnn_mnist_forward.1} parent=0
    _
  %s12 = ssub.s32 1, %s10
  %s13 = scalar_select 0, %s12, %s10
  // Predicated region
  $region2: #{cnn_mnist_forward.1} parent=0 // pred_check
    _
  $region3: #{cnn_mnist_forward.1} parent=0 // pred_check_branch
    %15 = sbr.rel (0) target = $region5
  $region4: #{cnn_mnist_forward.1} parent=0 // pred_region
    _
  $region5: #{cnn_mnist_forward.1} parent=0 // pred_fallthru
    _
  // Predicated region
  $region6: #{cnn_mnist_forward.1} parent=0 // pred_check
    _
  $region7: #{cnn_mnist_forward.1} parent=0 // pred_check_branch
    %17 = sbr.rel (0) target = $region9
  $region8: #{cnn_mnist_forward.1} parent=0 // pred_region
    _
  $region9: #{cnn_mnist_forward.1} parent=0 // pred_fallthru
    _
  // Predicated region
  $region10: #{cnn_mnist_forward.1} parent=0 // pred_check
    _
  $region11: #{cnn_mnist_forward.1} parent=0 // pred_check_branch
    %19 = sbr.rel (0) target = $region13
  $region12: #{cnn_mnist_forward.1} parent=0 // pred_region
    _
  $region13: #{cnn_mnist_forward.1} parent=0 // pred_fallthru
    _
  // Predicated region
  $region14: #{cnn_mnist_forward.1} parent=0 // pred_check
    _
  $region15: #{cnn_mnist_forward.1} parent=0 // pred_check_branch
    %21 = sbr.rel (0) target = $region17
  $region16: #{cnn_mnist_forward.1} parent=0 // pred_region
    _
  $region17: #{cnn_mnist_forward.1} parent=0 // pred_fallthru
    _
  // Predicated region
  $region18: #{cnn_mnist_forward.1} parent=0 // pred_check
    _
  $region19: #{cnn_mnist_forward.1} parent=0 // pred_check_branch
    %23 = sbr.rel (0) target = $region21
  $region20: #{cnn_mnist_forward.1} parent=0 // pred_region
    _
  $region21: #{cnn_mnist_forward.1} parent=0 // pred_fallthru
    _
  // Predicated region
  $region22: #{cnn_mnist_forward.1} parent=0 // pred_check
    _
  $region23: #{cnn_mnist_forward.1} parent=0 // pred_check_branch
    %25 = sbr.rel (0) target = $region25
  $region24: #{cnn_mnist_forward.1} parent=0 // pred_region
    _
  $region25: #{cnn_mnist_forward.1} parent=0 // pred_fallthru
    _
  // Predicated region
  $region26: #{cnn_mnist_forward.1} parent=0 // pred_check
    _
  $region27: #{cnn_mnist_forward.1} parent=0 // pred_check_branch
    %27 = sbr.rel (0) target = $region29
  $region28: #{cnn_mnist_forward.1} parent=0 // pred_region
    _
  $region29: #{cnn_mnist_forward.1} parent=0 // pred_fallthru
    _
  // Predicated region
  $region30: #{cnn_mnist_forward.1} parent=0 // pred_check
    _
  $region31: #{cnn_mnist_forward.1} parent=0 // pred_check_branch
    %29 = sbr.rel (0) target = $region33
  $region32: #{cnn_mnist_forward.1} parent=0 // pred_region
    _
  $region33: #{cnn_mnist_forward.1} parent=0 // pred_fallthru
    _
  // Predicated region
  $region34: #{cnn_mnist_forward.1} parent=0 // pred_check
    _
  $region35: #{cnn_mnist_forward.1} parent=0 // pred_check_branch
    %31 = sbr.rel (0) target = $region37
  $region36: #{cnn_mnist_forward.1} parent=0 // pred_region
    _
  $region37: #{cnn_mnist_forward.1} parent=0 // pred_fallthru
    _
  %v33 = vld [vmem:[%s0] sm:$0xff]
  %v34 = vld [vmem:[%s0 + $0x8] sm:$0xff]
  %v35 = vld [vmem:[%s0 + $0x10] sm:$0xff]
  %v36 = vld [vmem:[%s0 + $0x18] sm:$0xff]
  %v37 = vld [vmem:[%s0 + $0x20] sm:$0xff]
  %v38 = vld [vmem:[%s0 + $0x28] sm:$0xff]
  %v39 = vld [vmem:[%s0 + $0x30] sm:$0xff]
  %v40 = vld [vmem:[%s0 + $0x38] sm:$0xff]
  %v41 = vld [vmem:[%s0 + $0x40] sm:$0xff]
  %v42 = vld [vmem:[%s0 + $0x48] sm:$0xff]
  %v43 = vld [vmem:[%s0 + $0x50] sm:$0xff]
  %v44 = vld [vmem:[%s0 + $0x58] sm:$0xff]
  %v45 = vld [vmem:[%s0 + $0x60] sm:$0xff]
  %v46 = vld [vmem:[%s0 + $0x68] sm:$0xff]
  %v47 = vld [vmem:[%s0 + $0x70] sm:$0xff]
  %v48 = vld [vmem:[%s0 + $0x78] sm:$0xff]
  %v49 = vld [vmem:[%s0 + $0x80] sm:$0xff]
  %v50 = vld [vmem:[%s0 + $0x88] sm:$0xff]
  %v51 = vld [vmem:[%s0 + $0x90] sm:$0xff]
  %v52 = vld [vmem:[%s0 + $0x98] sm:$0xff]
  %v53 = vld [vmem:[%s0 + $0xa0] sm:$0xff]
  %v54 = vld [vmem:[%s0 + $0xa8] sm:$0xff]
  %v55 = vld [vmem:[%s0 + $0xb0] sm:$0xff]
  %v56 = vld [vmem:[%s0 + $0xb8] sm:$0xff]
  %v57 = vld [vmem:[%s0 + $0xc0] sm:$0xff]
  %v58 = vld [vmem:[%s0 + $0xc8] sm:$0xff]
  %v59 = vld [vmem:[%s0 + $0xd0] sm:$0xff]
  %v60 = vld [vmem:[%s0 + $0xd8] sm:$0xff]
  %v61 = vld [vmem:[%s0 + $0xe0] sm:$0xff]
  %v62 = vld [vmem:[%s0 + $0xe8] sm:$0xff]
  %v63 = vld [vmem:[%s0 + $0xf0] sm:$0xff]
  %v64 = vld [vmem:[%s0 + $0xf8] sm:$0xff]
  %v65 = vld [vmem:[%s0 + $0x100] sm:$0xff]
  %v66 = vld [vmem:[%s0 + $0x108] sm:$0xff]
  %v67 = vld [vmem:[%s0 + $0x110] sm:$0xff]
  %v68 = vld [vmem:[%s0 + $0x118] sm:$0xff]
  %v69 = vld [vmem:[%s0 + $0x120] sm:$0xff]
  %v70 = vld [vmem:[%s0 + $0x128] sm:$0xff]
  %v71 = vld [vmem:[%s0 + $0x130] sm:$0xff]
  %v72 = vld [vmem:[%s0 + $0x138] sm:$0xff]
  %v73 = vld [vmem:[%s0 + $0x140] sm:$0xff]
  %v74 = vld [vmem:[%s0 + $0x148] sm:$0xff]
  %v75 = vld [vmem:[%s0 + $0x150] sm:$0xff]
  %v76 = vld [vmem:[%s0 + $0x158] sm:$0xff]
  %v77 = vld [vmem:[%s0 + $0x160] sm:$0xff]
  %v78 = vld [vmem:[%s0 + $0x168] sm:$0xff]
  %v79 = vld [vmem:[%s0 + $0x170] sm:$0xff]
  %v80 = vld [vmem:[%s0 + $0x178] sm:$0xff]
  %v81 = vld [vmem:[%s0 + $0x180] sm:$0xff]
  %v82 = vld [vmem:[%s0 + $0x188] sm:$0xff]
  %v83 = vld [vmem:[%s0 + $0x190] sm:$0xff]
  %v84 = vld [vmem:[%s0 + $0x198] sm:$0xff]
  %v85 = vld [vmem:[%s0 + $0x1a0] sm:$0xff]
  %v86 = vld [vmem:[%s0 + $0x1a8] sm:$0xff]
  %v87 = vld [vmem:[%s0 + $0x1b0] sm:$0xff]
  %v88 = vld [vmem:[%s0 + $0x1b8] sm:$0xff]
  %v89 = vld [vmem:[%s0 + $0x1c0] sm:$0xff]
  %v90 = vld [vmem:[%s0 + $0x1c8] sm:$0xff]
  %v91 = vld [vmem:[%s0 + $0x1d0] sm:$0xff]
  %v92 = vld [vmem:[%s0 + $0x1d8] sm:$0xff]
  %v93 = vld [vmem:[%s0 + $0x1e0] sm:$0xff]
  %v94 = vld [vmem:[%s0 + $0x1e8] sm:$0xff]
  %v95 = vld [vmem:[%s0 + $0x1f0] sm:$0xff]
  %v96 = vld [vmem:[%s0 + $0x1f8] sm:$0xff]
  %v97 = vld [vmem:[%s0 + $0x200] sm:$0xff]
  %v98 = vld [vmem:[%s0 + $0x208] sm:$0xff]
  %v99 = vld [vmem:[%s0 + $0x210] sm:$0xff]
  %v100 = vld [vmem:[%s0 + $0x218] sm:$0xff]
  %v101 = vld [vmem:[%s0 + $0x220] sm:$0xff]
  %v102 = vld [vmem:[%s0 + $0x228] sm:$0xff]
  %v103 = vld [vmem:[%s0 + $0x230] sm:$0xff]
  %v104 = vld [vmem:[%s0 + $0x238] sm:$0xff]
  %v105 = vld [vmem:[%s0 + $0x240] sm:$0xff]
  %v106 = vld [vmem:[%s0 + $0x248] sm:$0xff]
  %v107 = vld [vmem:[%s0 + $0x250] sm:$0xff]
  %v108 = vld [vmem:[%s0 + $0x258] sm:$0xff]
  %v109 = vld [vmem:[%s0 + $0x260] sm:$0xff]
  %v110 = vld [vmem:[%s0 + $0x268] sm:$0xff]
  %v111 = vld [vmem:[%s0 + $0x270] sm:$0xff]
  %v112 = vld [vmem:[%s0 + $0x278] sm:$0xff]
  %v113 = vld [vmem:[%s0 + $0x280] sm:$0xff]
  %v114 = vld [vmem:[%s0 + $0x288] sm:$0xff]
  %v115 = vld [vmem:[%s0 + $0x290] sm:$0xff]
  %v116 = vld [vmem:[%s0 + $0x298] sm:$0xff]
  %v117 = vld [vmem:[%s0 + $0x2a0] sm:$0xff]
  %v118 = vld [vmem:[%s0 + $0x2a8] sm:$0xff]
  %v119 = vld [vmem:[%s0 + $0x2b0] sm:$0xff]
  %v120 = vld [vmem:[%s0 + $0x2b8] sm:$0xff]
  %v121 = vld [vmem:[%s0 + $0x2c0] sm:$0xff]
  %v122 = vld [vmem:[%s0 + $0x2c8] sm:$0xff]
  %v123 = vld [vmem:[%s0 + $0x2d0] sm:$0xff]
  %v124 = vld [vmem:[%s0 + $0x2d8] sm:$0xff]
  %v125 = vld [vmem:[%s0 + $0x2e0] sm:$0xff]
  %v126 = vld [vmem:[%s0 + $0x2e8] sm:$0xff]
  %v127 = vld [vmem:[%s0 + $0x2f0] sm:$0xff]
  %v128 = vld [vmem:[%s0 + $0x2f8] sm:$0xff]
  %v129 = vld [vmem:[%s1] sm:$0xff]
  %v130 = vld [vmem:[%s1 + $0x8] sm:$0xff]
  %v131 = vld [vmem:[%s1 + $0x10] sm:$0xff]
  %v132 = vld [vmem:[%s1 + $0x18] sm:$0xff]
  %v133 = vld [vmem:[%s1 + $0x20] sm:$0xff]
  %v134 = vld [vmem:[%s1 + $0x28] sm:$0xff]
  %v135 = vld [vmem:[%s1 + $0x30] sm:$0xff]
  %v136 = vld [vmem:[%s1 + $0x38] sm:$0xff]
  %v137 = vld [vmem:[%s1 + $0x40] sm:$0xff]
  %v138 = vld [vmem:[%s1 + $0x48] sm:$0xff]
  %v139 = vld [vmem:[%s1 + $0x50] sm:$0xff]
  %v140 = vld [vmem:[%s1 + $0x58] sm:$0xff]
  %v141 = vld [vmem:[%s1 + $0x60] sm:$0xff]
  %v142 = vld [vmem:[%s1 + $0x68] sm:$0xff]
  %v143 = vld [vmem:[%s1 + $0x70] sm:$0xff]
  %v144 = vld [vmem:[%s1 + $0x78] sm:$0xff]
  %v145 = vld [vmem:[%s1 + $0x80] sm:$0xff]
  %v146 = vld [vmem:[%s1 + $0x88] sm:$0x33]
  %v171 = vunpack.c.l.b16 %v33
  %v172 = vunpack.c.h.b16 %v33
  %v173 = vunpack.c.l.b16 %v34
  %v174 = vunpack.c.h.b16 %v34
  %v175 = vunpack.c.l.b16 %v35
  %v176 = vunpack.c.h.b16 %v35
  %v177 = vunpack.c.l.b16 %v36
  %v178 = vunpack.c.h.b16 %v36
  %v179 = vunpack.c.l.b16 %v37
  %v180 = vunpack.c.h.b16 %v37
  %v181 = vunpack.c.l.b16 %v38
  %v182 = vunpack.c.h.b16 %v38
  %v183 = vunpack.c.l.b16 %v39
  %v184 = vunpack.c.h.b16 %v39
  %v185 = vunpack.c.l.b16 %v40
  %v186 = vunpack.c.h.b16 %v40
  %v187 = vunpack.c.l.b16 %v41
  %v188 = vunpack.c.h.b16 %v41
  %v189 = vunpack.c.l.b16 %v42
  %v190 = vunpack.c.h.b16 %v42
  %v191 = vunpack.c.l.b16 %v43
  %v192 = vunpack.c.h.b16 %v43
  %v193 = vunpack.c.l.b16 %v44
  %v194 = vunpack.c.h.b16 %v44
  %v195 = vunpack.c.l.b16 %v45
  %v196 = vunpack.c.h.b16 %v45
  %v197 = vunpack.c.l.b16 %v46
  %v198 = vunpack.c.h.b16 %v46
  %v199 = vunpack.c.l.b16 %v47
  %v200 = vunpack.c.h.b16 %v47
  %v201 = vunpack.c.l.b16 %v48
  %v202 = vunpack.c.h.b16 %v48
  %v203 = vunpack.c.l.b16 %v49
  %v204 = vunpack.c.h.b16 %v49
  %v205 = vunpack.c.l.b16 %v50
  %v206 = vunpack.c.h.b16 %v50
  %v207 = vunpack.c.l.b16 %v51
  %v208 = vunpack.c.h.b16 %v51
  %v209 = vunpack.c.l.b16 %v52
  %v210 = vunpack.c.h.b16 %v52
  %v211 = vunpack.c.l.b16 %v53
  %v212 = vunpack.c.h.b16 %v53
  %v213 = vunpack.c.l.b16 %v54
  %v214 = vunpack.c.h.b16 %v54
  %v215 = vunpack.c.l.b16 %v55
  %v216 = vunpack.c.h.b16 %v55
  %v217 = vunpack.c.l.b16 %v56
  %v218 = vunpack.c.h.b16 %v56
  %v219 = vpack.c.b16 %v173, %v171
  %v220 = vpack.c.b16 %v174, %v172
  %v221 = vpack.c.b16 %v177, %v175
  %v222 = vpack.c.b16 %v178, %v176
  %v223 = vpack.c.b16 %v181, %v179
  %v224 = vpack.c.b16 %v182, %v180
  %v225 = vpack.c.b16 %v185, %v183
  %v226 = vpack.c.b16 %v186, %v184
  %v227 = vpack.c.b16 %v189, %v187
  %v228 = vpack.c.b16 %v190, %v188
  %v229 = vpack.c.b16 %v193, %v191
  %v230 = vpack.c.b16 %v194, %v192
  %v231 = vpack.c.b16 %v197, %v195
  %v232 = vpack.c.b16 %v198, %v196
  %v233 = vpack.c.b16 %v201, %v199
  %v234 = vpack.c.b16 %v202, %v200
  %v235 = vpack.c.b16 %v205, %v203
  %v236 = vpack.c.b16 %v206, %v204
  %v237 = vpack.c.b16 %v209, %v207
  %v238 = vpack.c.b16 %v210, %v208
  %v239 = vpack.c.b16 %v213, %v211
  %v240 = vpack.c.b16 %v214, %v212
  %v241 = vpack.c.b16 %v217, %v215
  %v242 = vpack.c.b16 %v218, %v216
  %v273 = vunpack.c.l.b16 %v129
  %v274 = vunpack.c.h.b16 %v129
  %v275 = vunpack.c.l.b16 %v130
  %v276 = vunpack.c.h.b16 %v130
  %v277 = vunpack.c.l.b16 %v131
  %v278 = vunpack.c.h.b16 %v131
  %v279 = vunpack.c.l.b16 %v132
  %v280 = vunpack.c.h.b16 %v132
  %v281 = vunpack.c.l.b16 %v133
  %v282 = vunpack.c.h.b16 %v133
  %v283 = vunpack.c.l.b16 %v134
  %v284 = vunpack.c.h.b16 %v134
  %v285 = vunpack.c.l.b16 %v135
  %v286 = vunpack.c.h.b16 %v135
  %v287 = vunpack.c.l.b16 %v136
  %v288 = vunpack.c.h.b16 %v136
  %v289 = vunpack.c.l.b16 %v137
  %v290 = vunpack.c.h.b16 %v137
  %v291 = vunpack.c.l.b16 %v138
  %v292 = vunpack.c.h.b16 %v138
  %v293 = vunpack.c.l.b16 %v139
  %v294 = vunpack.c.h.b16 %v139
  %v295 = vunpack.c.l.b16 %v140
  %v296 = vunpack.c.h.b16 %v140
  %v297 = vunpack.c.l.b16 %v141
  %v298 = vunpack.c.h.b16 %v141
  %v299 = vunpack.c.l.b16 %v142
  %v300 = vunpack.c.h.b16 %v142
  %v301 = vunpack.c.l.b16 %v143
  %v302 = vunpack.c.h.b16 %v143
  %v303 = vunpack.c.l.b16 %v144
  %v304 = vunpack.c.h.b16 %v144
  %v305 = vunpack.c.l.b16 %v145
  %v306 = vunpack.c.h.b16 %v145
  %v307 = vunpack.c.l.b16 %v146
  %v308 = vunpack.c.h.b16 %v146
  %v309 = vpack.c.b16 %v275, %v273
  %v310 = vpack.c.b16 %v276, %v274
  %v311 = vpack.c.b16 %v279, %v277
  %v312 = vpack.c.b16 %v280, %v278
  %v313 = vpack.c.b16 %v283, %v281
  %v314 = vpack.c.b16 %v284, %v282
  %v315 = vpack.c.b16 %v287, %v285
  %v316 = vpack.c.b16 %v288, %v286
  %v317 = vpack.c.b16 %v291, %v289
  %v318 = vpack.c.b16 %v292, %v290
  %v319 = vpack.c.b16 %v295, %v293
  %v320 = vpack.c.b16 %v296, %v294
  %v321 = vpack.c.b16 %v299, %v297
  %v322 = vpack.c.b16 %v300, %v298
  %v323 = vpack.c.b16 %v303, %v301
  %v324 = vpack.c.b16 %v304, %v302
  %v325 = vpack.c.b16 %v307, %v305
  %v326 = vpack.c.b16 %v308, %v306
  %vm343 = vcmask 97280
  %v345 = vsel %vm343, %v220, 0
  %v348 = vsel %vm343, %v222, 0
  %v351 = vsel %vm343, %v224, 0
  %v354 = vsel %vm343, %v226, 0
  %v357 = vsel %vm343, %v228, 0
  %v360 = vsel %vm343, %v230, 0
  %v363 = vsel %vm343, %v232, 0
  %v366 = vsel %vm343, %v234, 0
  %v369 = vsel %vm343, %v236, 0
  %v372 = vsel %vm343, %v238, 0
  %v375 = vsel %vm343, %v240, 0
  %v378 = vsel %vm343, %v242, 0
  %vm380 = vcmask 1045504
  %v382 = vsel %vm380, %v325, 0
  %v385 = vsel %vm380, %v326, 0
  %387 = vmatprep.subr.bf16.mxu0 %v310
  %388 = vmatpush1.bf16.msra.mxu0 %v309
  %389 = vmatprep.subr.bf16.mxu0 %v312
  %390 = vmatpush1.bf16.msra.mxu0 %v311
  %391 = vmatprep.subr.bf16.mxu0 %v314
  %392 = vmatpush1.bf16.msra.mxu0 %v313
  %393 = vmatprep.subr.bf16.mxu0 %v316
  %394 = vmatpush1.bf16.msra.mxu0 %v315
  %395 = vmatprep.subr.bf16.mxu0 %v318
  %396 = vmatpush1.bf16.msra.mxu0 %v317
  %397 = vmatprep.subr.bf16.mxu0 %v320
  %398 = vmatpush1.bf16.msra.mxu0 %v319
  %399 = vmatprep.subr.bf16.mxu0 %v322
  %400 = vmatpush1.bf16.msra.mxu0 %v321
  %401 = vmatprep.subr.bf16.mxu0 %v324
  %402 = vmatpush1.bf16.msra.mxu0 %v323
  %403 = vmatprep.subr.bf16.mxu0 %v385
  %404 = vmatpush1.bf16.msra.mxu0 %v382
  %405 = vmatprep.subr.bf16.mxu0 0
  %406 = vmatpush1.bf16.msra.mxu0 0
  %407 = vmatprep.subr.bf16.mxu0 0
  %408 = vmatpush1.bf16.msra.mxu0 0
  %409 = vmatprep.subr.bf16.mxu0 0
  %410 = vmatpush1.bf16.msra.mxu0 0
  %411 = vmatprep.subr.bf16.mxu0 0
  %412 = vmatpush1.bf16.msra.mxu0 0
  %413 = vmatprep.subr.bf16.mxu0 0
  %414 = vmatpush1.bf16.msra.mxu0 0
  %415 = vmatprep.subr.bf16.mxu0 0
  %416 = vmatpush1.bf16.msra.mxu0 0
  %417 = vmatprep.subr.bf16.mxu0 0
  %418 = vmatpush1.bf16.msra.mxu0 0
  %419 = vmatprep.mubr.bf16.mxu0 %v345
  %420 = vmatmul.mubr.bf16.gmra.mrb[0].mxu0 %v219
  %v421 = vpop.f32.mrb[0].mxu0
  %v422 = vadd.f32 0.0, %v421
  %v423 = vpop.f32.mrb[0].mxu0
  %v424 = vadd.f32 0.0, %v423
  %v425 = vpop.f32.mrb[0].mxu0
  %v426 = vadd.f32 0.0, %v425
  %v427 = vpop.f32.mrb[0].mxu0
  %v428 = vadd.f32 0.0, %v427
  %429 = vmatprep.mubr.bf16.mxu0 %v348
  %430 = vmatmul.mubr.bf16.gmra.mrb[0].mxu0 %v221
  %v431 = vpop.f32.mrb[0].mxu0
  %v432 = vadd.f32 0.0, %v431
  %v433 = vpop.f32.mrb[0].mxu0
  %v434 = vadd.f32 0.0, %v433
  %v435 = vpop.f32.mrb[0].mxu0
  %v436 = vadd.f32 0.0, %v435
  %v437 = vpop.f32.mrb[0].mxu0
  %v438 = vadd.f32 0.0, %v437
  %439 = vmatprep.mubr.bf16.mxu0 %v351
  %440 = vmatmul.mubr.bf16.gmra.mrb[0].mxu0 %v223
  %v441 = vpop.f32.mrb[0].mxu0
  %v442 = vadd.f32 0.0, %v441
  %v443 = vpop.f32.mrb[0].mxu0
  %v444 = vadd.f32 0.0, %v443
  %v445 = vpop.f32.mrb[0].mxu0
  %v446 = vadd.f32 0.0, %v445
  %v447 = vpop.f32.mrb[0].mxu0
  %v448 = vadd.f32 0.0, %v447
  %449 = vmatprep.mubr.bf16.mxu0 %v354
  %450 = vmatmul.mubr.bf16.gmra.mrb[0].mxu0 %v225
  %v451 = vpop.f32.mrb[0].mxu0
  %v452 = vadd.f32 0.0, %v451
  %v453 = vpop.f32.mrb[0].mxu0
  %v454 = vadd.f32 0.0, %v453
  %v455 = vpop.f32.mrb[0].mxu0
  %v456 = vadd.f32 0.0, %v455
  %v457 = vpop.f32.mrb[0].mxu0
  %v458 = vadd.f32 0.0, %v457
  %459 = vmatprep.mubr.bf16.mxu0 %v357
  %460 = vmatmul.mubr.bf16.gmra.mrb[0].mxu0 %v227
  %v461 = vpop.f32.mrb[0].mxu0
  %v462 = vadd.f32 0.0, %v461
  %v463 = vpop.f32.mrb[0].mxu0
  %v464 = vadd.f32 0.0, %v463
  %v465 = vpop.f32.mrb[0].mxu0
  %v466 = vadd.f32 0.0, %v465
  %v467 = vpop.f32.mrb[0].mxu0
  %v468 = vadd.f32 0.0, %v467
  %469 = vmatprep.mubr.bf16.mxu0 %v360
  %470 = vmatmul.mubr.bf16.gmra.mrb[0].mxu0 %v229
  %v471 = vpop.f32.mrb[0].mxu0
  %v472 = vadd.f32 0.0, %v471
  %v473 = vpop.f32.mrb[0].mxu0
  %v474 = vadd.f32 0.0, %v473
  %v475 = vpop.f32.mrb[0].mxu0
  %v476 = vadd.f32 0.0, %v475
  %v477 = vpop.f32.mrb[0].mxu0
  %v478 = vadd.f32 0.0, %v477
  %479 = vmatprep.mubr.bf16.mxu0 %v363
  %480 = vmatmul.mubr.bf16.gmra.mrb[0].mxu0 %v231
  %v481 = vpop.f32.mrb[0].mxu0
  %v482 = vadd.f32 0.0, %v481
  %v483 = vpop.f32.mrb[0].mxu0
  %v484 = vadd.f32 0.0, %v483
  %v485 = vpop.f32.mrb[0].mxu0
  %v486 = vadd.f32 0.0, %v485
  %v487 = vpop.f32.mrb[0].mxu0
  %v488 = vadd.f32 0.0, %v487
  %489 = vmatprep.mubr.bf16.mxu0 %v366
  %490 = vmatmul.mubr.bf16.gmra.mrb[0].mxu0 %v233
  %v491 = vpop.f32.mrb[0].mxu0
  %v492 = vadd.f32 0.0, %v491
  %v493 = vpop.f32.mrb[0].mxu0
  %v494 = vadd.f32 0.0, %v493
  %v495 = vpop.f32.mrb[0].mxu0
  %v496 = vadd.f32 0.0, %v495
  %v497 = vpop.f32.mrb[0].mxu0
  %v498 = vadd.f32 0.0, %v497
  %499 = vmatprep.mubr.bf16.mxu0 %v369
  %500 = vmatmul.mubr.bf16.gmra.mrb[0].mxu0 %v235
  %v501 = vpop.f32.mrb[0].mxu0
  %v502 = vadd.f32 0.0, %v501
  %v503 = vpop.f32.mrb[0].mxu0
  %v504 = vadd.f32 0.0, %v503
  %v505 = vpop.f32.mrb[0].mxu0
  %v506 = vadd.f32 0.0, %v505
  %v507 = vpop.f32.mrb[0].mxu0
  %v508 = vadd.f32 0.0, %v507
  %509 = vmatprep.mubr.bf16.mxu0 %v372
  %510 = vmatmul.mubr.bf16.gmra.mrb[0].mxu0 %v237
  %v511 = vpop.f32.mrb[0].mxu0
  %v512 = vadd.f32 0.0, %v511
  %v513 = vpop.f32.mrb[0].mxu0
  %v514 = vadd.f32 0.0, %v513
  %v515 = vpop.f32.mrb[0].mxu0
  %v516 = vadd.f32 0.0, %v515
  %v517 = vpop.f32.mrb[0].mxu0
  %v518 = vadd.f32 0.0, %v517
  %519 = vmatprep.mubr.bf16.mxu0 %v375
  %520 = vmatmul.mubr.bf16.gmra.mrb[0].mxu0 %v239
  %v521 = vpop.f32.mrb[0].mxu0
  %v522 = vadd.f32 0.0, %v521
  %v523 = vpop.f32.mrb[0].mxu0
  %v524 = vadd.f32 0.0, %v523
  %v525 = vpop.f32.mrb[0].mxu0
  %v526 = vadd.f32 0.0, %v525
  %v527 = vpop.f32.mrb[0].mxu0
  %v528 = vadd.f32 0.0, %v527
  %529 = vmatprep.mubr.bf16.mxu0 %v378
  %530 = vmatmul.mubr.bf16.gmra.mrb[0].mxu0 %v241
  %v531 = vpop.f32.mrb[0].mxu0
  %v532 = vadd.f32 0.0, %v531
  %v533 = vpop.f32.mrb[0].mxu0
  %v534 = vadd.f32 0.0, %v533
  %v535 = vpop.f32.mrb[0].mxu0
  %v536 = vadd.f32 0.0, %v535
  %v537 = vpop.f32.mrb[0].mxu0
  %v538 = vadd.f32 0.0, %v537
  %539 = vdwg.mxu0
  %v564 = vunpack.c.l.b16 %v57
  %v565 = vunpack.c.h.b16 %v57
  %v566 = vunpack.c.l.b16 %v58
  %v567 = vunpack.c.h.b16 %v58
  %v568 = vunpack.c.l.b16 %v59
  %v569 = vunpack.c.h.b16 %v59
  %v570 = vunpack.c.l.b16 %v60
  %v571 = vunpack.c.h.b16 %v60
  %v572 = vunpack.c.l.b16 %v61
  %v573 = vunpack.c.h.b16 %v61
  %v574 = vunpack.c.l.b16 %v62
  %v575 = vunpack.c.h.b16 %v62
  %v576 = vunpack.c.l.b16 %v63
  %v577 = vunpack.c.h.b16 %v63
  %v578 = vunpack.c.l.b16 %v64
  %v579 = vunpack.c.h.b16 %v64
  %v580 = vunpack.c.l.b16 %v65
  %v581 = vunpack.c.h.b16 %v65
  %v582 = vunpack.c.l.b16 %v66
  %v583 = vunpack.c.h.b16 %v66
  %v584 = vunpack.c.l.b16 %v67
  %v585 = vunpack.c.h.b16 %v67
  %v586 = vunpack.c.l.b16 %v68
  %v587 = vunpack.c.h.b16 %v68
  %v588 = vunpack.c.l.b16 %v69
  %v589 = vunpack.c.h.b16 %v69
  %v590 = vunpack.c.l.b16 %v70
  %v591 = vunpack.c.h.b16 %v70
  %v592 = vunpack.c.l.b16 %v71
  %v593 = vunpack.c.h.b16 %v71
  %v594 = vunpack.c.l.b16 %v72
  %v595 = vunpack.c.h.b16 %v72
  %v596 = vunpack.c.l.b16 %v73
  %v597 = vunpack.c.h.b16 %v73
  %v598 = vunpack.c.l.b16 %v74
  %v599 = vunpack.c.h.b16 %v74
  %v600 = vunpack.c.l.b16 %v75
  %v601 = vunpack.c.h.b16 %v75
  %v602 = vunpack.c.l.b16 %v76
  %v603 = vunpack.c.h.b16 %v76
  %v604 = vunpack.c.l.b16 %v77
  %v605 = vunpack.c.h.b16 %v77
  %v606 = vunpack.c.l.b16 %v78
  %v607 = vunpack.c.h.b16 %v78
  %v608 = vunpack.c.l.b16 %v79
  %v609 = vunpack.c.h.b16 %v79
  %v610 = vunpack.c.l.b16 %v80
  %v611 = vunpack.c.h.b16 %v80
  %v612 = vpack.c.b16 %v566, %v564
  %v613 = vpack.c.b16 %v567, %v565
  %v614 = vpack.c.b16 %v570, %v568
  %v615 = vpack.c.b16 %v571, %v569
  %v616 = vpack.c.b16 %v574, %v572
  %v617 = vpack.c.b16 %v575, %v573
  %v618 = vpack.c.b16 %v578, %v576
  %v619 = vpack.c.b16 %v579, %v577
  %v620 = vpack.c.b16 %v582, %v580
  %v621 = vpack.c.b16 %v583, %v581
  %v622 = vpack.c.b16 %v586, %v584
  %v623 = vpack.c.b16 %v587, %v585
  %v624 = vpack.c.b16 %v590, %v588
  %v625 = vpack.c.b16 %v591, %v589
  %v626 = vpack.c.b16 %v594, %v592
  %v627 = vpack.c.b16 %v595, %v593
  %v628 = vpack.c.b16 %v598, %v596
  %v629 = vpack.c.b16 %v599, %v597
  %v630 = vpack.c.b16 %v602, %v600
  %v631 = vpack.c.b16 %v603, %v601
  %v632 = vpack.c.b16 %v606, %v604
  %v633 = vpack.c.b16 %v607, %v605
  %v634 = vpack.c.b16 %v610, %v608
  %v635 = vpack.c.b16 %v611, %v609
  %v649 = vsel %vm343, %v613, 0
  %v652 = vsel %vm343, %v615, 0
  %v655 = vsel %vm343, %v617, 0
  %v658 = vsel %vm343, %v619, 0
  %v661 = vsel %vm343, %v621, 0
  %v664 = vsel %vm343, %v623, 0
  %v667 = vsel %vm343, %v625, 0
  %v670 = vsel %vm343, %v627, 0
  %v673 = vsel %vm343, %v629, 0
  %v676 = vsel %vm343, %v631, 0
  %v679 = vsel %vm343, %v633, 0
  %v682 = vsel %vm343, %v635, 0
  %684 = vmatprep.subr.bf16.mxu0 %v310
  %685 = vmatpush1.bf16.msra.mxu0 %v309
  %686 = vmatprep.subr.bf16.mxu0 %v312
  %687 = vmatpush1.bf16.msra.mxu0 %v311
  %688 = vmatprep.subr.bf16.mxu0 %v314
  %689 = vmatpush1.bf16.msra.mxu0 %v313
  %690 = vmatprep.subr.bf16.mxu0 %v316
  %691 = vmatpush1.bf16.msra.mxu0 %v315
  %692 = vmatprep.subr.bf16.mxu0 %v318
  %693 = vmatpush1.bf16.msra.mxu0 %v317
  %694 = vmatprep.subr.bf16.mxu0 %v320
  %695 = vmatpush1.bf16.msra.mxu0 %v319
  %696 = vmatprep.subr.bf16.mxu0 %v322
  %697 = vmatpush1.bf16.msra.mxu0 %v321
  %698 = vmatprep.subr.bf16.mxu0 %v324
  %699 = vmatpush1.bf16.msra.mxu0 %v323
  %700 = vmatprep.subr.bf16.mxu0 %v385
  %701 = vmatpush1.bf16.msra.mxu0 %v382
  %702 = vmatprep.subr.bf16.mxu0 0
  %703 = vmatpush1.bf16.msra.mxu0 0
  %704 = vmatprep.subr.bf16.mxu0 0
  %705 = vmatpush1.bf16.msra.mxu0 0
  %706 = vmatprep.subr.bf16.mxu0 0
  %707 = vmatpush1.bf16.msra.mxu0 0
  %708 = vmatprep.subr.bf16.mxu0 0
  %709 = vmatpush1.bf16.msra.mxu0 0
  %710 = vmatprep.subr.bf16.mxu0 0
  %711 = vmatpush1.bf16.msra.mxu0 0
  %712 = vmatprep.subr.bf16.mxu0 0
  %713 = vmatpush1.bf16.msra.mxu0 0
  %714 = vmatprep.subr.bf16.mxu0 0
  %715 = vmatpush1.bf16.msra.mxu0 0
  %716 = vmatprep.mubr.bf16.mxu0 %v649
  %717 = vmatmul.mubr.bf16.gmra.mrb[0].mxu0 %v612
  %v718 = vpop.f32.mrb[0].mxu0
  %v719 = vadd.f32 0.0, %v718
  %v720 = vpop.f32.mrb[0].mxu0
  %v721 = vadd.f32 0.0, %v720
  %v722 = vpop.f32.mrb[0].mxu0
  %v723 = vadd.f32 0.0, %v722
  %v724 = vpop.f32.mrb[0].mxu0
  %v725 = vadd.f32 0.0, %v724
  %726 = vmatprep.mubr.bf16.mxu0 %v652
  %727 = vmatmul.mubr.bf16.gmra.mrb[0].mxu0 %v614
  %v728 = vpop.f32.mrb[0].mxu0
  %v729 = vadd.f32 0.0, %v728
  %v730 = vpop.f32.mrb[0].mxu0
  %v731 = vadd.f32 0.0, %v730
  %v732 = vpop.f32.mrb[0].mxu0
  %v733 = vadd.f32 0.0, %v732
  %v734 = vpop.f32.mrb[0].mxu0
  %v735 = vadd.f32 0.0, %v734
  %736 = vmatprep.mubr.bf16.mxu0 %v655
  %737 = vmatmul.mubr.bf16.gmra.mrb[0].mxu0 %v616
  %v738 = vpop.f32.mrb[0].mxu0
  %v739 = vadd.f32 0.0, %v738
  %v740 = vpop.f32.mrb[0].mxu0
  %v741 = vadd.f32 0.0, %v740
  %v742 = vpop.f32.mrb[0].mxu0
  %v743 = vadd.f32 0.0, %v742
  %v744 = vpop.f32.mrb[0].mxu0
  %v745 = vadd.f32 0.0, %v744
  %746 = vmatprep.mubr.bf16.mxu0 %v658
  %747 = vmatmul.mubr.bf16.gmra.mrb[0].mxu0 %v618
  %v748 = vpop.f32.mrb[0].mxu0
  %v749 = vadd.f32 0.0, %v748
  %v750 = vpop.f32.mrb[0].mxu0
  %v751 = vadd.f32 0.0, %v750
  %v752 = vpop.f32.mrb[0].mxu0
  %v753 = vadd.f32 0.0, %v752
  %v754 = vpop.f32.mrb[0].mxu0
  %v755 = vadd.f32 0.0, %v754
  %756 = vmatprep.mubr.bf16.mxu0 %v661
  %757 = vmatmul.mubr.bf16.gmra.mrb[0].mxu0 %v620
  %v758 = vpop.f32.mrb[0].mxu0
  %v759 = vadd.f32 0.0, %v758
  %v760 = vpop.f32.mrb[0].mxu0
  %v761 = vadd.f32 0.0, %v760
  %v762 = vpop.f32.mrb[0].mxu0
  %v763 = vadd.f32 0.0, %v762
  %v764 = vpop.f32.mrb[0].mxu0
  %v765 = vadd.f32 0.0, %v764
  %766 = vmatprep.mubr.bf16.mxu0 %v664
  %767 = vmatmul.mubr.bf16.gmra.mrb[0].mxu0 %v622
  %v768 = vpop.f32.mrb[0].mxu0
  %v769 = vadd.f32 0.0, %v768
  %v770 = vpop.f32.mrb[0].mxu0
  %v771 = vadd.f32 0.0, %v770
  %v772 = vpop.f32.mrb[0].mxu0
  %v773 = vadd.f32 0.0, %v772
  %v774 = vpop.f32.mrb[0].mxu0
  %v775 = vadd.f32 0.0, %v774
  %776 = vmatprep.mubr.bf16.mxu0 %v667
  %777 = vmatmul.mubr.bf16.gmra.mrb[0].mxu0 %v624
  %v778 = vpop.f32.mrb[0].mxu0
  %v779 = vadd.f32 0.0, %v778
  %v780 = vpop.f32.mrb[0].mxu0
  %v781 = vadd.f32 0.0, %v780
  %v782 = vpop.f32.mrb[0].mxu0
  %v783 = vadd.f32 0.0, %v782
  %v784 = vpop.f32.mrb[0].mxu0
  %v785 = vadd.f32 0.0, %v784
  %786 = vmatprep.mubr.bf16.mxu0 %v670
  %787 = vmatmul.mubr.bf16.gmra.mrb[0].mxu0 %v626
  %v788 = vpop.f32.mrb[0].mxu0
  %v789 = vadd.f32 0.0, %v788
  %v790 = vpop.f32.mrb[0].mxu0
  %v791 = vadd.f32 0.0, %v790
  %v792 = vpop.f32.mrb[0].mxu0
  %v793 = vadd.f32 0.0, %v792
  %v794 = vpop.f32.mrb[0].mxu0
  %v795 = vadd.f32 0.0, %v794
  %796 = vmatprep.mubr.bf16.mxu0 %v673
  %797 = vmatmul.mubr.bf16.gmra.mrb[0].mxu0 %v628
  %v798 = vpop.f32.mrb[0].mxu0
  %v799 = vadd.f32 0.0, %v798
  %v800 = vpop.f32.mrb[0].mxu0
  %v801 = vadd.f32 0.0, %v800
  %v802 = vpop.f32.mrb[0].mxu0
  %v803 = vadd.f32 0.0, %v802
  %v804 = vpop.f32.mrb[0].mxu0
  %v805 = vadd.f32 0.0, %v804
  %806 = vmatprep.mubr.bf16.mxu0 %v676
  %807 = vmatmul.mubr.bf16.gmra.mrb[0].mxu0 %v630
  %v808 = vpop.f32.mrb[0].mxu0
  %v809 = vadd.f32 0.0, %v808
  %v810 = vpop.f32.mrb[0].mxu0
  %v811 = vadd.f32 0.0, %v810
  %v812 = vpop.f32.mrb[0].mxu0
  %v813 = vadd.f32 0.0, %v812
  %v814 = vpop.f32.mrb[0].mxu0
  %v815 = vadd.f32 0.0, %v814
  %816 = vmatprep.mubr.bf16.mxu0 %v679
  %817 = vmatmul.mubr.bf16.gmra.mrb[0].mxu0 %v632
  %v818 = vpop.f32.mrb[0].mxu0
  %v819 = vadd.f32 0.0, %v818
  %v820 = vpop.f32.mrb[0].mxu0
  %v821 = vadd.f32 0.0, %v820
  %v822 = vpop.f32.mrb[0].mxu0
  %v823 = vadd.f32 0.0, %v822
  %v824 = vpop.f32.mrb[0].mxu0
  %v825 = vadd.f32 0.0, %v824
  %826 = vmatprep.mubr.bf16.mxu0 %v682
  %827 = vmatmul.mubr.bf16.gmra.mrb[0].mxu0 %v634
  %v828 = vpop.f32.mrb[0].mxu0
  %v829 = vadd.f32 0.0, %v828
  %v830 = vpop.f32.mrb[0].mxu0
  %v831 = vadd.f32 0.0, %v830
  %v832 = vpop.f32.mrb[0].mxu0
  %v833 = vadd.f32 0.0, %v832
  %v834 = vpop.f32.mrb[0].mxu0
  %v835 = vadd.f32 0.0, %v834
  %836 = vdwg.mxu0
  %v861 = vunpack.c.l.b16 %v81
  %v862 = vunpack.c.h.b16 %v81
  %v863 = vunpack.c.l.b16 %v82
  %v864 = vunpack.c.h.b16 %v82
  %v865 = vunpack.c.l.b16 %v83
  %v866 = vunpack.c.h.b16 %v83
  %v867 = vunpack.c.l.b16 %v84
  %v868 = vunpack.c.h.b16 %v84
  %v869 = vunpack.c.l.b16 %v85
  %v870 = vunpack.c.h.b16 %v85
  %v871 = vunpack.c.l.b16 %v86
  %v872 = vunpack.c.h.b16 %v86
  %v873 = vunpack.c.l.b16 %v87
  %v874 = vunpack.c.h.b16 %v87
  %v875 = vunpack.c.l.b16 %v88
  %v876 = vunpack.c.h.b16 %v88
  %v877 = vunpack.c.l.b16 %v89
  %v878 = vunpack.c.h.b16 %v89
  %v879 = vunpack.c.l.b16 %v90
  %v880 = vunpack.c.h.b16 %v90
  %v881 = vunpack.c.l.b16 %v91
  %v882 = vunpack.c.h.b16 %v91
  %v883 = vunpack.c.l.b16 %v92
  %v884 = vunpack.c.h.b16 %v92
  %v885 = vunpack.c.l.b16 %v93
  %v886 = vunpack.c.h.b16 %v93
  %v887 = vunpack.c.l.b16 %v94
  %v888 = vunpack.c.h.b16 %v94
  %v889 = vunpack.c.l.b16 %v95
  %v890 = vunpack.c.h.b16 %v95
  %v891 = vunpack.c.l.b16 %v96
  %v892 = vunpack.c.h.b16 %v96
  %v893 = vunpack.c.l.b16 %v97
  %v894 = vunpack.c.h.b16 %v97
  %v895 = vunpack.c.l.b16 %v98
  %v896 = vunpack.c.h.b16 %v98
  %v897 = vunpack.c.l.b16 %v99
  %v898 = vunpack.c.h.b16 %v99
  %v899 = vunpack.c.l.b16 %v100
  %v900 = vunpack.c.h.b16 %v100
  %v901 = vunpack.c.l.b16 %v101
  %v902 = vunpack.c.h.b16 %v101
  %v903 = vunpack.c.l.b16 %v102
  %v904 = vunpack.c.h.b16 %v102
  %v905 = vunpack.c.l.b16 %v103
  %v906 = vunpack.c.h.b16 %v103
  %v907 = vunpack.c.l.b16 %v104
  %v908 = vunpack.c.h.b16 %v104
  %v909 = vpack.c.b16 %v863, %v861
  %v910 = vpack.c.b16 %v864, %v862
  %v911 = vpack.c.b16 %v867, %v865
  %v912 = vpack.c.b16 %v868, %v866
  %v913 = vpack.c.b16 %v871, %v869
  %v914 = vpack.c.b16 %v872, %v870
  %v915 = vpack.c.b16 %v875, %v873
  %v916 = vpack.c.b16 %v876, %v874
  %v917 = vpack.c.b16 %v879, %v877
  %v918 = vpack.c.b16 %v880, %v878
  %v919 = vpack.c.b16 %v883, %v881
  %v920 = vpack.c.b16 %v884, %v882
  %v921 = vpack.c.b16 %v887, %v885
  %v922 = vpack.c.b16 %v888, %v886
  %v923 = vpack.c.b16 %v891, %v889
  %v924 = vpack.c.b16 %v892, %v890
  %v925 = vpack.c.b16 %v895, %v893
  %v926 = vpack.c.b16 %v896, %v894
  %v927 = vpack.c.b16 %v899, %v897
  %v928 = vpack.c.b16 %v900, %v898
  %v929 = vpack.c.b16 %v903, %v901
  %v930 = vpack.c.b16 %v904, %v902
  %v931 = vpack.c.b16 %v907, %v905
  %v932 = vpack.c.b16 %v908, %v906
  %v946 = vsel %vm343, %v910, 0
  %v949 = vsel %vm343, %v912, 0
  %v952 = vsel %vm343, %v914, 0
  %v955 = vsel %vm343, %v916, 0
  %v958 = vsel %vm343, %v918, 0
  %v961 = vsel %vm343, %v920, 0
  %v964 = vsel %vm343, %v922, 0
  %v967 = vsel %vm343, %v924, 0
  %v970 = vsel %vm343, %v926, 0
  %v973 = vsel %vm343, %v928, 0
  %v976 = vsel %vm343, %v930, 0
  %v979 = vsel %vm343, %v932, 0
  %981 = vmatprep.subr.bf16.mxu0 %v310
  %982 = vmatpush1.bf16.msra.mxu0 %v309
  %983 = vmatprep.subr.bf16.mxu0 %v312
  %984 = vmatpush1.bf16.msra.mxu0 %v311
  %985 = vmatprep.subr.bf16.mxu0 %v314
  %986 = vmatpush1.bf16.msra.mxu0 %v313
  %987 = vmatprep.subr.bf16.mxu0 %v316
  %988 = vmatpush1.bf16.msra.mxu0 %v315
  %989 = vmatprep.subr.bf16.mxu0 %v318
  %990 = vmatpush1.bf16.msra.mxu0 %v317
  %991 = vmatprep.subr.bf16.mxu0 %v320
  %992 = vmatpush1.bf16.msra.mxu0 %v319
  %993 = vmatprep.subr.bf16.mxu0 %v322
  %994 = vmatpush1.bf16.msra.mxu0 %v321
  %995 = vmatprep.subr.bf16.mxu0 %v324
  %996 = vmatpush1.bf16.msra.mxu0 %v323
  %997 = vmatprep.subr.bf16.mxu0 %v385
  %998 = vmatpush1.bf16.msra.mxu0 %v382
  %999 = vmatprep.subr.bf16.mxu0 0
  %1000 = vmatpush1.bf16.msra.mxu0 0
  %1001 = vmatprep.subr.bf16.mxu0 0
  %1002 = vmatpush1.bf16.msra.mxu0 0
  %1003 = vmatprep.subr.bf16.mxu0 0
  %1004 = vmatpush1.bf16.msra.mxu0 0
  %1005 = vmatprep.subr.bf16.mxu0 0
  %1006 = vmatpush1.bf16.msra.mxu0 0
  %1007 = vmatprep.subr.bf16.mxu0 0
  %1008 = vmatpush1.bf16.msra.mxu0 0
  %1009 = vmatprep.subr.bf16.mxu0 0
  %1010 = vmatpush1.bf16.msra.mxu0 0
  %1011 = vmatprep.subr.bf16.mxu0 0
  %1012 = vmatpush1.bf16.msra.mxu0 0
  %1013 = vmatprep.mubr.bf16.mxu0 %v946
  %1014 = vmatmul.mubr.bf16.gmra.mrb[0].mxu0 %v909
  %v1015 = vpop.f32.mrb[0].mxu0
  %v1016 = vadd.f32 0.0, %v1015
  %v1017 = vpop.f32.mrb[0].mxu0
  %v1018 = vadd.f32 0.0, %v1017
  %v1019 = vpop.f32.mrb[0].mxu0
  %v1020 = vadd.f32 0.0, %v1019
  %v1021 = vpop.f32.mrb[0].mxu0
  %v1022 = vadd.f32 0.0, %v1021
  %1023 = vmatprep.mubr.bf16.mxu0 %v949
  %1024 = vmatmul.mubr.bf16.gmra.mrb[0].mxu0 %v911
  %v1025 = vpop.f32.mrb[0].mxu0
  %v1026 = vadd.f32 0.0, %v1025
  %v1027 = vpop.f32.mrb[0].mxu0
  %v1028 = vadd.f32 0.0, %v1027
  %v1029 = vpop.f32.mrb[0].mxu0
  %v1030 = vadd.f32 0.0, %v1029
  %v1031 = vpop.f32.mrb[0].mxu0
  %v1032 = vadd.f32 0.0, %v1031
  %1033 = vmatprep.mubr.bf16.mxu0 %v952
  %1034 = vmatmul.mubr.bf16.gmra.mrb[0].mxu0 %v913
  %v1035 = vpop.f32.mrb[0].mxu0
  %v1036 = vadd.f32 0.0, %v1035
  %v1037 = vpop.f32.mrb[0].mxu0
  %v1038 = vadd.f32 0.0, %v1037
  %v1039 = vpop.f32.mrb[0].mxu0
  %v1040 = vadd.f32 0.0, %v1039
  %v1041 = vpop.f32.mrb[0].mxu0
  %v1042 = vadd.f32 0.0, %v1041
  %1043 = vmatprep.mubr.bf16.mxu0 %v955
  %1044 = vmatmul.mubr.bf16.gmra.mrb[0].mxu0 %v915
  %v1045 = vpop.f32.mrb[0].mxu0
  %v1046 = vadd.f32 0.0, %v1045
  %v1047 = vpop.f32.mrb[0].mxu0
  %v1048 = vadd.f32 0.0, %v1047
  %v1049 = vpop.f32.mrb[0].mxu0
  %v1050 = vadd.f32 0.0, %v1049
  %v1051 = vpop.f32.mrb[0].mxu0
  %v1052 = vadd.f32 0.0, %v1051
  %1053 = vmatprep.mubr.bf16.mxu0 %v958
  %1054 = vmatmul.mubr.bf16.gmra.mrb[0].mxu0 %v917
  %v1055 = vpop.f32.mrb[0].mxu0
  %v1056 = vadd.f32 0.0, %v1055
  %v1057 = vpop.f32.mrb[0].mxu0
  %v1058 = vadd.f32 0.0, %v1057
  %v1059 = vpop.f32.mrb[0].mxu0
  %v1060 = vadd.f32 0.0, %v1059
  %v1061 = vpop.f32.mrb[0].mxu0
  %v1062 = vadd.f32 0.0, %v1061
  %1063 = vmatprep.mubr.bf16.mxu0 %v961
  %1064 = vmatmul.mubr.bf16.gmra.mrb[0].mxu0 %v919
  %v1065 = vpop.f32.mrb[0].mxu0
  %v1066 = vadd.f32 0.0, %v1065
  %v1067 = vpop.f32.mrb[0].mxu0
  %v1068 = vadd.f32 0.0, %v1067
  %v1069 = vpop.f32.mrb[0].mxu0
  %v1070 = vadd.f32 0.0, %v1069
  %v1071 = vpop.f32.mrb[0].mxu0
  %v1072 = vadd.f32 0.0, %v1071
  %1073 = vmatprep.mubr.bf16.mxu0 %v964
  %1074 = vmatmul.mubr.bf16.gmra.mrb[0].mxu0 %v921
  %v1075 = vpop.f32.mrb[0].mxu0
  %v1076 = vadd.f32 0.0, %v1075
  %v1077 = vpop.f32.mrb[0].mxu0
  %v1078 = vadd.f32 0.0, %v1077
  %v1079 = vpop.f32.mrb[0].mxu0
  %v1080 = vadd.f32 0.0, %v1079
  %v1081 = vpop.f32.mrb[0].mxu0
  %v1082 = vadd.f32 0.0, %v1081
  %1083 = vmatprep.mubr.bf16.mxu0 %v967
  %1084 = vmatmul.mubr.bf16.gmra.mrb[0].mxu0 %v923
  %v1085 = vpop.f32.mrb[0].mxu0
  %v1086 = vadd.f32 0.0, %v1085
  %v1087 = vpop.f32.mrb[0].mxu0
  %v1088 = vadd.f32 0.0, %v1087
  %v1089 = vpop.f32.mrb[0].mxu0
  %v1090 = vadd.f32 0.0, %v1089
  %v1091 = vpop.f32.mrb[0].mxu0
  %v1092 = vadd.f32 0.0, %v1091
  %1093 = vmatprep.mubr.bf16.mxu0 %v970
  %1094 = vmatmul.mubr.bf16.gmra.mrb[0].mxu0 %v925
  %v1095 = vpop.f32.mrb[0].mxu0
  %v1096 = vadd.f32 0.0, %v1095
  %v1097 = vpop.f32.mrb[0].mxu0
  %v1098 = vadd.f32 0.0, %v1097
  %v1099 = vpop.f32.mrb[0].mxu0
  %v1100 = vadd.f32 0.0, %v1099
  %v1101 = vpop.f32.mrb[0].mxu0
  %v1102 = vadd.f32 0.0, %v1101
  %1103 = vmatprep.mubr.bf16.mxu0 %v973
  %1104 = vmatmul.mubr.bf16.gmra.mrb[0].mxu0 %v927
  %v1105 = vpop.f32.mrb[0].mxu0
  %v1106 = vadd.f32 0.0, %v1105
  %v1107 = vpop.f32.mrb[0].mxu0
  %v1108 = vadd.f32 0.0, %v1107
  %v1109 = vpop.f32.mrb[0].mxu0
  %v1110 = vadd.f32 0.0, %v1109
  %v1111 = vpop.f32.mrb[0].mxu0
  %v1112 = vadd.f32 0.0, %v1111
  %1113 = vmatprep.mubr.bf16.mxu0 %v976
  %1114 = vmatmul.mubr.bf16.gmra.mrb[0].mxu0 %v929
  %v1115 = vpop.f32.mrb[0].mxu0
  %v1116 = vadd.f32 0.0, %v1115
  %v1117 = vpop.f32.mrb[0].mxu0
  %v1118 = vadd.f32 0.0, %v1117
  %v1119 = vpop.f32.mrb[0].mxu0
  %v1120 = vadd.f32 0.0, %v1119
  %v1121 = vpop.f32.mrb[0].mxu0
  %v1122 = vadd.f32 0.0, %v1121
  %1123 = vmatprep.mubr.bf16.mxu0 %v979
  %1124 = vmatmul.mubr.bf16.gmra.mrb[0].mxu0 %v931
  %v1125 = vpop.f32.mrb[0].mxu0
  %v1126 = vadd.f32 0.0, %v1125
  %v1127 = vpop.f32.mrb[0].mxu0
  %v1128 = vadd.f32 0.0, %v1127
  %v1129 = vpop.f32.mrb[0].mxu0
  %v1130 = vadd.f32 0.0, %v1129
  %v1131 = vpop.f32.mrb[0].mxu0
  %v1132 = vadd.f32 0.0, %v1131
  %1133 = vdwg.mxu0
  %v1158 = vunpack.c.l.b16 %v105
  %v1159 = vunpack.c.h.b16 %v105
  %v1160 = vunpack.c.l.b16 %v106
  %v1161 = vunpack.c.h.b16 %v106
  %v1162 = vunpack.c.l.b16 %v107
  %v1163 = vunpack.c.h.b16 %v107
  %v1164 = vunpack.c.l.b16 %v108
  %v1165 = vunpack.c.h.b16 %v108
  %v1166 = vunpack.c.l.b16 %v109
  %v1167 = vunpack.c.h.b16 %v109
  %v1168 = vunpack.c.l.b16 %v110
  %v1169 = vunpack.c.h.b16 %v110
  %v1170 = vunpack.c.l.b16 %v111
  %v1171 = vunpack.c.h.b16 %v111
  %v1172 = vunpack.c.l.b16 %v112
  %v1173 = vunpack.c.h.b16 %v112
  %v1174 = vunpack.c.l.b16 %v113
  %v1175 = vunpack.c.h.b16 %v113
  %v1176 = vunpack.c.l.b16 %v114
  %v1177 = vunpack.c.h.b16 %v114
  %v1178 = vunpack.c.l.b16 %v115
  %v1179 = vunpack.c.h.b16 %v115
  %v1180 = vunpack.c.l.b16 %v116
  %v1181 = vunpack.c.h.b16 %v116
  %v1182 = vunpack.c.l.b16 %v117
  %v1183 = vunpack.c.h.b16 %v117
  %v1184 = vunpack.c.l.b16 %v118
  %v1185 = vunpack.c.h.b16 %v118
  %v1186 = vunpack.c.l.b16 %v119
  %v1187 = vunpack.c.h.b16 %v119
  %v1188 = vunpack.c.l.b16 %v120
  %v1189 = vunpack.c.h.b16 %v120
  %v1190 = vunpack.c.l.b16 %v121
  %v1191 = vunpack.c.h.b16 %v121
  %v1192 = vunpack.c.l.b16 %v122
  %v1193 = vunpack.c.h.b16 %v122
  %v1194 = vunpack.c.l.b16 %v123
  %v1195 = vunpack.c.h.b16 %v123
  %v1196 = vunpack.c.l.b16 %v124
  %v1197 = vunpack.c.h.b16 %v124
  %v1198 = vunpack.c.l.b16 %v125
  %v1199 = vunpack.c.h.b16 %v125
  %v1200 = vunpack.c.l.b16 %v126
  %v1201 = vunpack.c.h.b16 %v126
  %v1202 = vunpack.c.l.b16 %v127
  %v1203 = vunpack.c.h.b16 %v127
  %v1204 = vunpack.c.l.b16 %v128
  %v1205 = vunpack.c.h.b16 %v128
  %v1206 = vpack.c.b16 %v1160, %v1158
  %v1207 = vpack.c.b16 %v1161, %v1159
  %v1208 = vpack.c.b16 %v1164, %v1162
  %v1209 = vpack.c.b16 %v1165, %v1163
  %v1210 = vpack.c.b16 %v1168, %v1166
  %v1211 = vpack.c.b16 %v1169, %v1167
  %v1212 = vpack.c.b16 %v1172, %v1170
  %v1213 = vpack.c.b16 %v1173, %v1171
  %v1214 = vpack.c.b16 %v1176, %v1174
  %v1215 = vpack.c.b16 %v1177, %v1175
  %v1216 = vpack.c.b16 %v1180, %v1178
  %v1217 = vpack.c.b16 %v1181, %v1179
  %v1218 = vpack.c.b16 %v1184, %v1182
  %v1219 = vpack.c.b16 %v1185, %v1183
  %v1220 = vpack.c.b16 %v1188, %v1186
  %v1221 = vpack.c.b16 %v1189, %v1187
  %v1222 = vpack.c.b16 %v1192, %v1190
  %v1223 = vpack.c.b16 %v1193, %v1191
  %v1224 = vpack.c.b16 %v1196, %v1194
  %v1225 = vpack.c.b16 %v1197, %v1195
  %v1226 = vpack.c.b16 %v1200, %v1198
  %v1227 = vpack.c.b16 %v1201, %v1199
  %v1228 = vpack.c.b16 %v1204, %v1202
  %v1229 = vpack.c.b16 %v1205, %v1203
  %v1243 = vsel %vm343, %v1207, 0
  %v1246 = vsel %vm343, %v1209, 0
  %v1249 = vsel %vm343, %v1211, 0
  %v1252 = vsel %vm343, %v1213, 0
  %v1255 = vsel %vm343, %v1215, 0
  %v1258 = vsel %vm343, %v1217, 0
  %v1261 = vsel %vm343, %v1219, 0
  %v1264 = vsel %vm343, %v1221, 0
  %v1267 = vsel %vm343, %v1223, 0
  %v1270 = vsel %vm343, %v1225, 0
  %v1273 = vsel %vm343, %v1227, 0
  %v1276 = vsel %vm343, %v1229, 0
  %1278 = vmatprep.subr.bf16.mxu0 %v310
  %1279 = vmatpush1.bf16.msra.mxu0 %v309
  %1280 = vmatprep.subr.bf16.mxu0 %v312
  %1281 = vmatpush1.bf16.msra.mxu0 %v311
  %1282 = vmatprep.subr.bf16.mxu0 %v314
  %1283 = vmatpush1.bf16.msra.mxu0 %v313
  %1284 = vmatprep.subr.bf16.mxu0 %v316
  %1285 = vmatpush1.bf16.msra.mxu0 %v315
  %1286 = vmatprep.subr.bf16.mxu0 %v318
  %1287 = vmatpush1.bf16.msra.mxu0 %v317
  %1288 = vmatprep.subr.bf16.mxu0 %v320
  %1289 = vmatpush1.bf16.msra.mxu0 %v319
  %1290 = vmatprep.subr.bf16.mxu0 %v322
  %1291 = vmatpush1.bf16.msra.mxu0 %v321
  %1292 = vmatprep.subr.bf16.mxu0 %v324
  %1293 = vmatpush1.bf16.msra.mxu0 %v323
  %1294 = vmatprep.subr.bf16.mxu0 %v385
  %1295 = vmatpush1.bf16.msra.mxu0 %v382
  %1296 = vmatprep.subr.bf16.mxu0 0
  %1297 = vmatpush1.bf16.msra.mxu0 0
  %1298 = vmatprep.subr.bf16.mxu0 0
  %1299 = vmatpush1.bf16.msra.mxu0 0
  %1300 = vmatprep.subr.bf16.mxu0 0
  %1301 = vmatpush1.bf16.msra.mxu0 0
  %1302 = vmatprep.subr.bf16.mxu0 0
  %1303 = vmatpush1.bf16.msra.mxu0 0
  %1304 = vmatprep.subr.bf16.mxu0 0
  %1305 = vmatpush1.bf16.msra.mxu0 0
  %1306 = vmatprep.subr.bf16.mxu0 0
  %1307 = vmatpush1.bf16.msra.mxu0 0
  %1308 = vmatprep.subr.bf16.mxu0 0
  %1309 = vmatpush1.bf16.msra.mxu0 0
  %1310 = vmatprep.mubr.bf16.mxu0 %v1243
  %1311 = vmatmul.mubr.bf16.gmra.mrb[0].mxu0 %v1206
  %v1312 = vpop.f32.mrb[0].mxu0
  %v1313 = vadd.f32 0.0, %v1312
  %v1314 = vpop.f32.mrb[0].mxu0
  %v1315 = vadd.f32 0.0, %v1314
  %v1316 = vpop.f32.mrb[0].mxu0
  %v1317 = vadd.f32 0.0, %v1316
  %v1318 = vpop.f32.mrb[0].mxu0
  %v1319 = vadd.f32 0.0, %v1318
  %1320 = vmatprep.mubr.bf16.mxu0 %v1246
  %1321 = vmatmul.mubr.bf16.gmra.mrb[0].mxu0 %v1208
  %v1322 = vpop.f32.mrb[0].mxu0
  %v1323 = vadd.f32 0.0, %v1322
  %v1324 = vpop.f32.mrb[0].mxu0
  %v1325 = vadd.f32 0.0, %v1324
  %v1326 = vpop.f32.mrb[0].mxu0
  %v1327 = vadd.f32 0.0, %v1326
  %v1328 = vpop.f32.mrb[0].mxu0
  %v1329 = vadd.f32 0.0, %v1328
  %1330 = vmatprep.mubr.bf16.mxu0 %v1249
  %1331 = vmatmul.mubr.bf16.gmra.mrb[0].mxu0 %v1210
  %v1332 = vpop.f32.mrb[0].mxu0
  %v1333 = vadd.f32 0.0, %v1332
  %v1334 = vpop.f32.mrb[0].mxu0
  %v1335 = vadd.f32 0.0, %v1334
  %v1336 = vpop.f32.mrb[0].mxu0
  %v1337 = vadd.f32 0.0, %v1336
  %v1338 = vpop.f32.mrb[0].mxu0
  %v1339 = vadd.f32 0.0, %v1338
  %1340 = vmatprep.mubr.bf16.mxu0 %v1252
  %1341 = vmatmul.mubr.bf16.gmra.mrb[0].mxu0 %v1212
  %v1342 = vpop.f32.mrb[0].mxu0
  %v1343 = vadd.f32 0.0, %v1342
  %v1344 = vpop.f32.mrb[0].mxu0
  %v1345 = vadd.f32 0.0, %v1344
  %v1346 = vpop.f32.mrb[0].mxu0
  %v1347 = vadd.f32 0.0, %v1346
  %v1348 = vpop.f32.mrb[0].mxu0
  %v1349 = vadd.f32 0.0, %v1348
  %1350 = vmatprep.mubr.bf16.mxu0 %v1255
  %1351 = vmatmul.mubr.bf16.gmra.mrb[0].mxu0 %v1214
  %v1352 = vpop.f32.mrb[0].mxu0
  %v1353 = vadd.f32 0.0, %v1352
  %v1354 = vpop.f32.mrb[0].mxu0
  %v1355 = vadd.f32 0.0, %v1354
  %v1356 = vpop.f32.mrb[0].mxu0
  %v1357 = vadd.f32 0.0, %v1356
  %v1358 = vpop.f32.mrb[0].mxu0
  %v1359 = vadd.f32 0.0, %v1358
  %1360 = vmatprep.mubr.bf16.mxu0 %v1258
  %1361 = vmatmul.mubr.bf16.gmra.mrb[0].mxu0 %v1216
  %v1362 = vpop.f32.mrb[0].mxu0
  %v1363 = vadd.f32 0.0, %v1362
  %v1364 = vpop.f32.mrb[0].mxu0
  %v1365 = vadd.f32 0.0, %v1364
  %v1366 = vpop.f32.mrb[0].mxu0
  %v1367 = vadd.f32 0.0, %v1366
  %v1368 = vpop.f32.mrb[0].mxu0
  %v1369 = vadd.f32 0.0, %v1368
  %1370 = vmatprep.mubr.bf16.mxu0 %v1261
  %1371 = vmatmul.mubr.bf16.gmra.mrb[0].mxu0 %v1218
  %v1372 = vpop.f32.mrb[0].mxu0
  %v1373 = vadd.f32 0.0, %v1372
  %v1374 = vpop.f32.mrb[0].mxu0
  %v1375 = vadd.f32 0.0, %v1374
  %v1376 = vpop.f32.mrb[0].mxu0
  %v1377 = vadd.f32 0.0, %v1376
  %v1378 = vpop.f32.mrb[0].mxu0
  %v1379 = vadd.f32 0.0, %v1378
  %1380 = vmatprep.mubr.bf16.mxu0 %v1264
  %1381 = vmatmul.mubr.bf16.gmra.mrb[0].mxu0 %v1220
  %v1382 = vpop.f32.mrb[0].mxu0
  %v1383 = vadd.f32 0.0, %v1382
  %v1384 = vpop.f32.mrb[0].mxu0
  %v1385 = vadd.f32 0.0, %v1384
  %v1386 = vpop.f32.mrb[0].mxu0
  %v1387 = vadd.f32 0.0, %v1386
  %v1388 = vpop.f32.mrb[0].mxu0
  %v1389 = vadd.f32 0.0, %v1388
  %1390 = vmatprep.mubr.bf16.mxu0 %v1267
  %1391 = vmatmul.mubr.bf16.gmra.mrb[0].mxu0 %v1222
  %v1392 = vpop.f32.mrb[0].mxu0
  %v1393 = vadd.f32 0.0, %v1392
  %v1394 = vpop.f32.mrb[0].mxu0
  %v1395 = vadd.f32 0.0, %v1394
  %v1396 = vpop.f32.mrb[0].mxu0
  %v1397 = vadd.f32 0.0, %v1396
  %v1398 = vpop.f32.mrb[0].mxu0
  %v1399 = vadd.f32 0.0, %v1398
  %1400 = vmatprep.mubr.bf16.mxu0 %v1270
  %1401 = vmatmul.mubr.bf16.gmra.mrb[0].mxu0 %v1224
  %v1402 = vpop.f32.mrb[0].mxu0
  %v1403 = vadd.f32 0.0, %v1402
  %v1404 = vpop.f32.mrb[0].mxu0
  %v1405 = vadd.f32 0.0, %v1404
  %v1406 = vpop.f32.mrb[0].mxu0
  %v1407 = vadd.f32 0.0, %v1406
  %v1408 = vpop.f32.mrb[0].mxu0
  %v1409 = vadd.f32 0.0, %v1408
  %1410 = vmatprep.mubr.bf16.mxu0 %v1273
  %1411 = vmatmul.mubr.bf16.gmra.mrb[0].mxu0 %v1226
  %v1412 = vpop.f32.mrb[0].mxu0
  %v1413 = vadd.f32 0.0, %v1412
  %v1414 = vpop.f32.mrb[0].mxu0
  %v1415 = vadd.f32 0.0, %v1414
  %v1416 = vpop.f32.mrb[0].mxu0
  %v1417 = vadd.f32 0.0, %v1416
  %v1418 = vpop.f32.mrb[0].mxu0
  %v1419 = vadd.f32 0.0, %v1418
  %1420 = vmatprep.mubr.bf16.mxu0 %v1276
  %1421 = vmatmul.mubr.bf16.gmra.mrb[0].mxu0 %v1228
  %v1422 = vpop.f32.mrb[0].mxu0
  %v1423 = vadd.f32 0.0, %v1422
  %v1424 = vpop.f32.mrb[0].mxu0
  %v1425 = vadd.f32 0.0, %v1424
  %v1426 = vpop.f32.mrb[0].mxu0
  %v1427 = vadd.f32 0.0, %v1426
  %v1428 = vpop.f32.mrb[0].mxu0
  %v1429 = vadd.f32 0.0, %v1428
  %1430 = vdwg.mxu0
  %v1431 = vld [vmem:[%s2] sm:$0x1]
  %v1432 = vmax.f32 %v422, %v719
  %v1433 = vmax.f32 %v424, %v721
  %v1434 = vmax.f32 %v426, %v723
  %v1435 = vmax.f32 %v428, %v725
  %v1436 = vmax.f32 %v432, %v729
  %v1437 = vmax.f32 %v434, %v731
  %v1438 = vmax.f32 %v436, %v733
  %v1439 = vmax.f32 %v438, %v735
  %v1440 = vmax.f32 %v442, %v739
  %v1441 = vmax.f32 %v444, %v741
  %v1442 = vmax.f32 %v446, %v743
  %v1443 = vmax.f32 %v448, %v745
  %v1444 = vmax.f32 %v452, %v749
  %v1445 = vmax.f32 %v454, %v751
  %v1446 = vmax.f32 %v456, %v753
  %v1447 = vmax.f32 %v458, %v755
  %v1448 = vmax.f32 %v462, %v759
  %v1449 = vmax.f32 %v464, %v761
  %v1450 = vmax.f32 %v466, %v763
  %v1451 = vmax.f32 %v468, %v765
  %v1452 = vmax.f32 %v472, %v769
  %v1453 = vmax.f32 %v474, %v771
  %v1454 = vmax.f32 %v476, %v773
  %v1455 = vmax.f32 %v478, %v775
  %v1456 = vmax.f32 %v482, %v779
  %v1457 = vmax.f32 %v484, %v781
  %v1458 = vmax.f32 %v486, %v783
  %v1459 = vmax.f32 %v488, %v785
  %v1460 = vmax.f32 %v492, %v789
  %v1461 = vmax.f32 %v494, %v791
  %v1462 = vmax.f32 %v496, %v793
  %v1463 = vmax.f32 %v498, %v795
  %v1464 = vmax.f32 %v502, %v799
  %v1465 = vmax.f32 %v504, %v801
  %v1466 = vmax.f32 %v506, %v803
  %v1467 = vmax.f32 %v508, %v805
  %v1468 = vmax.f32 %v512, %v809
  %v1469 = vmax.f32 %v514, %v811
  %v1470 = vmax.f32 %v516, %v813
  %v1471 = vmax.f32 %v518, %v815
  %v1472 = vmax.f32 %v522, %v819
  %v1473 = vmax.f32 %v524, %v821
  %v1474 = vmax.f32 %v526, %v823
  %v1475 = vmax.f32 %v528, %v825
  %v1476 = vmax.f32 %v532, %v829
  %v1477 = vmax.f32 %v534, %v831
  %v1478 = vmax.f32 %v536, %v833
  %v1479 = vmax.f32 %v538, %v835
  %v1480 = vmax.f32 %v1432, %v1433
  %v1481 = vmax.f32 %v1434, %v1435
  %v1482 = vmax.f32 %v1436, %v1437
  %v1483 = vmax.f32 %v1438, %v1439
  %v1484 = vmax.f32 %v1440, %v1441
  %v1485 = vmax.f32 %v1442, %v1443
  %v1486 = vmax.f32 %v1444, %v1445
  %v1487 = vmax.f32 %v1446, %v1447
  %v1488 = vmax.f32 %v1448, %v1449
  %v1489 = vmax.f32 %v1450, %v1451
  %v1490 = vmax.f32 %v1452, %v1453
  %v1491 = vmax.f32 %v1454, %v1455
  %v1492 = vmax.f32 %v1456, %v1457
  %v1493 = vmax.f32 %v1458, %v1459
  %v1494 = vmax.f32 %v1460, %v1461
  %v1495 = vmax.f32 %v1462, %v1463
  %v1496 = vmax.f32 %v1464, %v1465
  %v1497 = vmax.f32 %v1466, %v1467
  %v1498 = vmax.f32 %v1468, %v1469
  %v1499 = vmax.f32 %v1470, %v1471
  %v1500 = vmax.f32 %v1472, %v1473
  %v1501 = vmax.f32 %v1474, %v1475
  %v1502 = vmax.f32 %v1476, %v1477
  %v1503 = vmax.f32 %v1478, %v1479
  %v1505 = vlaneseq
  %v1506 = vshrl.u32 %v1505, 7
  %v1507 = vsub.s32 0, %v1506
  %v1508 = vrot.slane %v1431, %v1507
  %v1510 = vadd.f32 %v1480, %v1508
  %v1511 = vadd.f32 %v1481, %v1508
  %v1512 = vadd.f32 %v1482, %v1508
  %v1513 = vadd.f32 %v1483, %v1508
  %v1514 = vadd.f32 %v1484, %v1508
  %v1515 = vadd.f32 %v1485, %v1508
  %v1516 = vadd.f32 %v1486, %v1508
  %v1517 = vadd.f32 %v1487, %v1508
  %v1518 = vadd.f32 %v1488, %v1508
  %v1519 = vadd.f32 %v1489, %v1508
  %v1520 = vadd.f32 %v1490, %v1508
  %v1521 = vadd.f32 %v1491, %v1508
  %v1522 = vadd.f32 %v1492, %v1508
  %v1523 = vadd.f32 %v1493, %v1508
  %v1524 = vadd.f32 %v1494, %v1508
  %v1525 = vadd.f32 %v1495, %v1508
  %v1526 = vadd.f32 %v1496, %v1508
  %v1527 = vadd.f32 %v1497, %v1508
  %v1528 = vadd.f32 %v1498, %v1508
  %v1529 = vadd.f32 %v1499, %v1508
  %v1530 = vadd.f32 %v1500, %v1508
  %v1531 = vadd.f32 %v1501, %v1508
  %v1532 = vadd.f32 %v1502, %v1508
  %v1533 = vadd.f32 %v1503, %v1508
  %v1534 = vmax.f32 %v1510, 0.0
  %v1535 = vmax.f32 %v1511, 0.0
  %v1536 = vmax.f32 %v1512, 0.0
  %v1537 = vmax.f32 %v1513, 0.0
  %v1538 = vmax.f32 %v1514, 0.0
  %v1539 = vmax.f32 %v1515, 0.0
  %v1540 = vmax.f32 %v1516, 0.0
  %v1541 = vmax.f32 %v1517, 0.0
  %v1542 = vmax.f32 %v1518, 0.0
  %v1543 = vmax.f32 %v1519, 0.0
  %v1544 = vmax.f32 %v1520, 0.0
  %v1545 = vmax.f32 %v1521, 0.0
  %v1546 = vmax.f32 %v1522, 0.0
  %v1547 = vmax.f32 %v1523, 0.0
  %v1548 = vmax.f32 %v1524, 0.0
  %v1549 = vmax.f32 %v1525, 0.0
  %v1550 = vmax.f32 %v1526, 0.0
  %v1551 = vmax.f32 %v1527, 0.0
  %v1552 = vmax.f32 %v1528, 0.0
  %v1553 = vmax.f32 %v1529, 0.0
  %v1554 = vmax.f32 %v1530, 0.0
  %v1555 = vmax.f32 %v1531, 0.0
  %v1556 = vmax.f32 %v1532, 0.0
  %v1557 = vmax.f32 %v1533, 0.0
  %v1558 = vpack.c.bf16 %v1535, %v1534
  %v1559 = vpack.c.bf16 %v1537, %v1536
  %v1560 = vpack.c.bf16 %v1539, %v1538
  %v1561 = vpack.c.bf16 %v1541, %v1540
  %v1562 = vpack.c.bf16 %v1543, %v1542
  %v1563 = vpack.c.bf16 %v1545, %v1544
  %v1564 = vpack.c.bf16 %v1547, %v1546
  %v1565 = vpack.c.bf16 %v1549, %v1548
  %v1566 = vpack.c.bf16 %v1551, %v1550
  %v1567 = vpack.c.bf16 %v1553, %v1552
  %v1568 = vpack.c.bf16 %v1555, %v1554
  %v1569 = vpack.c.bf16 %v1557, %v1556
  %v1570 = vmax.f32 %v1016, %v1313
  %v1571 = vmax.f32 %v1018, %v1315
  %v1572 = vmax.f32 %v1020, %v1317
  %v1573 = vmax.f32 %v1022, %v1319
  %v1574 = vmax.f32 %v1026, %v1323
  %v1575 = vmax.f32 %v1028, %v1325
  %v1576 = vmax.f32 %v1030, %v1327
  %v1577 = vmax.f32 %v1032, %v1329
  %v1578 = vmax.f32 %v1036, %v1333
  %v1579 = vmax.f32 %v1038, %v1335
  %v1580 = vmax.f32 %v1040, %v1337
  %v1581 = vmax.f32 %v1042, %v1339
  %v1582 = vmax.f32 %v1046, %v1343
  %v1583 = vmax.f32 %v1048, %v1345
  %v1584 = vmax.f32 %v1050, %v1347
  %v1585 = vmax.f32 %v1052, %v1349
  %v1586 = vmax.f32 %v1056, %v1353
  %v1587 = vmax.f32 %v1058, %v1355
  %v1588 = vmax.f32 %v1060, %v1357
  %v1589 = vmax.f32 %v1062, %v1359
  %v1590 = vmax.f32 %v1066, %v1363
  %v1591 = vmax.f32 %v1068, %v1365
  %v1592 = vmax.f32 %v1070, %v1367
  %v1593 = vmax.f32 %v1072, %v1369
  %v1594 = vmax.f32 %v1076, %v1373
  %v1595 = vmax.f32 %v1078, %v1375
  %v1596 = vmax.f32 %v1080, %v1377
  %v1597 = vmax.f32 %v1082, %v1379
  %v1598 = vmax.f32 %v1086, %v1383
  %v1599 = vmax.f32 %v1088, %v1385
  %v1600 = vmax.f32 %v1090, %v1387
  %v1601 = vmax.f32 %v1092, %v1389
  %v1602 = vmax.f32 %v1096, %v1393
  %v1603 = vmax.f32 %v1098, %v1395
  %v1604 = vmax.f32 %v1100, %v1397
  %v1605 = vmax.f32 %v1102, %v1399
  %v1606 = vmax.f32 %v1106, %v1403
  %v1607 = vmax.f32 %v1108, %v1405
  %v1608 = vmax.f32 %v1110, %v1407
  %v1609 = vmax.f32 %v1112, %v1409
  %v1610 = vmax.f32 %v1116, %v1413
  %v1611 = vmax.f32 %v1118, %v1415
  %v1612 = vmax.f32 %v1120, %v1417
  %v1613 = vmax.f32 %v1122, %v1419
  %v1614 = vmax.f32 %v1126, %v1423
  %v1615 = vmax.f32 %v1128, %v1425
  %v1616 = vmax.f32 %v1130, %v1427
  %v1617 = vmax.f32 %v1132, %v1429
  %v1618 = vmax.f32 %v1570, %v1571
  %v1619 = vmax.f32 %v1572, %v1573
  %v1620 = vmax.f32 %v1574, %v1575
  %v1621 = vmax.f32 %v1576, %v1577
  %v1622 = vmax.f32 %v1578, %v1579
  %v1623 = vmax.f32 %v1580, %v1581
  %v1624 = vmax.f32 %v1582, %v1583
  %v1625 = vmax.f32 %v1584, %v1585
  %v1626 = vmax.f32 %v1586, %v1587
  %v1627 = vmax.f32 %v1588, %v1589
  %v1628 = vmax.f32 %v1590, %v1591
  %v1629 = vmax.f32 %v1592, %v1593
  %v1630 = vmax.f32 %v1594, %v1595
  %v1631 = vmax.f32 %v1596, %v1597
  %v1632 = vmax.f32 %v1598, %v1599
  %v1633 = vmax.f32 %v1600, %v1601
  %v1634 = vmax.f32 %v1602, %v1603
  %v1635 = vmax.f32 %v1604, %v1605
  %v1636 = vmax.f32 %v1606, %v1607
  %v1637 = vmax.f32 %v1608, %v1609
  %v1638 = vmax.f32 %v1610, %v1611
  %v1639 = vmax.f32 %v1612, %v1613
  %v1640 = vmax.f32 %v1614, %v1615
  %v1641 = vmax.f32 %v1616, %v1617
  %v1642 = vadd.f32 %v1618, %v1508
  %v1643 = vadd.f32 %v1619, %v1508
  %v1644 = vadd.f32 %v1620, %v1508
  %v1645 = vadd.f32 %v1621, %v1508
  %v1646 = vadd.f32 %v1622, %v1508
  %v1647 = vadd.f32 %v1623, %v1508
  %v1648 = vadd.f32 %v1624, %v1508
  %v1649 = vadd.f32 %v1625, %v1508
  %v1650 = vadd.f32 %v1626, %v1508
  %v1651 = vadd.f32 %v1627, %v1508
  %v1652 = vadd.f32 %v1628, %v1508
  %v1653 = vadd.f32 %v1629, %v1508
  %v1654 = vadd.f32 %v1630, %v1508
  %v1655 = vadd.f32 %v1631, %v1508
  %v1656 = vadd.f32 %v1632, %v1508
  %v1657 = vadd.f32 %v1633, %v1508
  %v1658 = vadd.f32 %v1634, %v1508
  %v1659 = vadd.f32 %v1635, %v1508
  %v1660 = vadd.f32 %v1636, %v1508
  %v1661 = vadd.f32 %v1637, %v1508
  %v1662 = vadd.f32 %v1638, %v1508
  %v1663 = vadd.f32 %v1639, %v1508
  %v1664 = vadd.f32 %v1640, %v1508
  %v1665 = vadd.f32 %v1641, %v1508
  %v1666 = vmax.f32 %v1642, 0.0
  %v1667 = vmax.f32 %v1643, 0.0
  %v1668 = vmax.f32 %v1644, 0.0
  %v1669 = vmax.f32 %v1645, 0.0
  %v1670 = vmax.f32 %v1646, 0.0
  %v1671 = vmax.f32 %v1647, 0.0
  %v1672 = vmax.f32 %v1648, 0.0
  %v1673 = vmax.f32 %v1649, 0.0
  %v1674 = vmax.f32 %v1650, 0.0
  %v1675 = vmax.f32 %v1651, 0.0
  %v1676 = vmax.f32 %v1652, 0.0
  %v1677 = vmax.f32 %v1653, 0.0
  %v1678 = vmax.f32 %v1654, 0.0
  %v1679 = vmax.f32 %v1655, 0.0
  %v1680 = vmax.f32 %v1656, 0.0
  %v1681 = vmax.f32 %v1657, 0.0
  %v1682 = vmax.f32 %v1658, 0.0
  %v1683 = vmax.f32 %v1659, 0.0
  %v1684 = vmax.f32 %v1660, 0.0
  %v1685 = vmax.f32 %v1661, 0.0
  %v1686 = vmax.f32 %v1662, 0.0
  %v1687 = vmax.f32 %v1663, 0.0
  %v1688 = vmax.f32 %v1664, 0.0
  %v1689 = vmax.f32 %v1665, 0.0
  %v1690 = vpack.c.bf16 %v1667, %v1666
  %v1691 = vpack.c.bf16 %v1669, %v1668
  %v1692 = vpack.c.bf16 %v1671, %v1670
  %v1693 = vpack.c.bf16 %v1673, %v1672
  %v1694 = vpack.c.bf16 %v1675, %v1674
  %v1695 = vpack.c.bf16 %v1677, %v1676
  %v1696 = vpack.c.bf16 %v1679, %v1678
  %v1697 = vpack.c.bf16 %v1681, %v1680
  %v1698 = vpack.c.bf16 %v1683, %v1682
  %v1699 = vpack.c.bf16 %v1685, %v1684
  %v1700 = vpack.c.bf16 %v1687, %v1686
  %v1701 = vpack.c.bf16 %v1689, %v1688
  %v1702 = vld [vmem:[%s3] sm:$0xff]
  %v1703 = vld [vmem:[%s3 + $0x8] sm:$0xff]
  %v1704 = vld [vmem:[%s3 + $0x10] sm:$0xff]
  %v1705 = vld [vmem:[%s3 + $0x18] sm:$0xff]
  %v1706 = vld [vmem:[%s3 + $0x20] sm:$0xff]
  %v1707 = vld [vmem:[%s3 + $0x28] sm:$0xff]
  %v1708 = vld [vmem:[%s3 + $0x30] sm:$0xff]
  %v1709 = vld [vmem:[%s3 + $0x38] sm:$0xff]
  %v1710 = vld [vmem:[%s3 + $0x40] sm:$0xff]
  %v1711 = vld [vmem:[%s3 + $0x48] sm:$0xff]
  %v1712 = vld [vmem:[%s3 + $0x50] sm:$0xff]
  %v1713 = vld [vmem:[%s3 + $0x58] sm:$0xff]
  %v1714 = vld [vmem:[%s3 + $0x60] sm:$0xff]
  %v1715 = vld [vmem:[%s3 + $0x68] sm:$0xff]
  %v1716 = vld [vmem:[%s3 + $0x70] sm:$0xff]
  %v1717 = vld [vmem:[%s3 + $0x78] sm:$0xff]
  %s1718 = scalar_lea.vmem %s3, 128
  %v1719 = vld [vmem:[%s1718] sm:$0xff]
  %v1720 = vld [vmem:[%s1718 + $0x8] sm:$0xff]
  %v1721 = vld [vmem:[%s1718 + $0x10] sm:$0xff]
  %v1722 = vld [vmem:[%s1718 + $0x18] sm:$0xff]
  %v1723 = vld [vmem:[%s1718 + $0x20] sm:$0xff]
  %v1724 = vld [vmem:[%s1718 + $0x28] sm:$0xff]
  %v1725 = vld [vmem:[%s1718 + $0x30] sm:$0xff]
  %v1726 = vld [vmem:[%s1718 + $0x38] sm:$0xff]
  %v1727 = vld [vmem:[%s1718 + $0x40] sm:$0xff]
  %v1728 = vld [vmem:[%s1718 + $0x48] sm:$0xff]
  %v1729 = vld [vmem:[%s1718 + $0x50] sm:$0xff]
  %v1730 = vld [vmem:[%s1718 + $0x58] sm:$0xff]
  %v1731 = vld [vmem:[%s1718 + $0x60] sm:$0xff]
  %v1732 = vld [vmem:[%s1718 + $0x68] sm:$0xff]
  %v1733 = vld [vmem:[%s1718 + $0x70] sm:$0xff]
  %v1734 = vld [vmem:[%s1718 + $0x78] sm:$0xff]
  %v1751 = vunpack.c.l.b16 %v1719
  %v1752 = vunpack.c.h.b16 %v1719
  %v1753 = vunpack.c.l.b16 %v1720
  %v1754 = vunpack.c.h.b16 %v1720
  %v1755 = vunpack.c.l.b16 %v1721
  %v1756 = vunpack.c.h.b16 %v1721
  %v1757 = vunpack.c.l.b16 %v1722
  %v1758 = vunpack.c.h.b16 %v1722
  %v1759 = vunpack.c.l.b16 %v1723
  %v1760 = vunpack.c.h.b16 %v1723
  %v1761 = vunpack.c.l.b16 %v1724
  %v1762 = vunpack.c.h.b16 %v1724
  %v1763 = vunpack.c.l.b16 %v1725
  %v1764 = vunpack.c.h.b16 %v1725
  %v1765 = vunpack.c.l.b16 %v1726
  %v1766 = vunpack.c.h.b16 %v1726
  %v1767 = vunpack.c.l.b16 %v1727
  %v1768 = vunpack.c.h.b16 %v1727
  %v1769 = vunpack.c.l.b16 %v1728
  %v1770 = vunpack.c.h.b16 %v1728
  %v1771 = vunpack.c.l.b16 %v1729
  %v1772 = vunpack.c.h.b16 %v1729
  %v1773 = vunpack.c.l.b16 %v1730
  %v1774 = vunpack.c.h.b16 %v1730
  %v1775 = vunpack.c.l.b16 %v1731
  %v1776 = vunpack.c.h.b16 %v1731
  %v1777 = vunpack.c.l.b16 %v1732
  %v1778 = vunpack.c.h.b16 %v1732
  %v1779 = vunpack.c.l.b16 %v1733
  %v1780 = vunpack.c.h.b16 %v1733
  %v1781 = vunpack.c.l.b16 %v1734
  %v1782 = vunpack.c.h.b16 %v1734
  %v1783 = vpack.c.b16 %v1753, %v1751
  %v1784 = vpack.c.b16 %v1754, %v1752
  %v1785 = vpack.c.b16 %v1757, %v1755
  %v1786 = vpack.c.b16 %v1758, %v1756
  %v1787 = vpack.c.b16 %v1761, %v1759
  %v1788 = vpack.c.b16 %v1762, %v1760
  %v1789 = vpack.c.b16 %v1765, %v1763
  %v1790 = vpack.c.b16 %v1766, %v1764
  %v1791 = vpack.c.b16 %v1769, %v1767
  %v1792 = vpack.c.b16 %v1770, %v1768
  %v1793 = vpack.c.b16 %v1773, %v1771
  %v1794 = vpack.c.b16 %v1774, %v1772
  %v1795 = vpack.c.b16 %v1777, %v1775
  %v1796 = vpack.c.b16 %v1778, %v1776
  %v1797 = vpack.c.b16 %v1781, %v1779
  %v1798 = vpack.c.b16 %v1782, %v1780
  %1815 = vmatprep.subr.bf16.mxu0 %v1784
  %1816 = vmatpush1.bf16.msra.mxu0 %v1783
  %1817 = vmatprep.subr.bf16.mxu0 %v1786
  %1818 = vmatpush1.bf16.msra.mxu0 %v1785
  %1819 = vmatprep.subr.bf16.mxu0 %v1788
  %1820 = vmatpush1.bf16.msra.mxu0 %v1787
  %1821 = vmatprep.subr.bf16.mxu0 %v1790
  %1822 = vmatpush1.bf16.msra.mxu0 %v1789
  %1823 = vmatprep.subr.bf16.mxu0 %v1792
  %1824 = vmatpush1.bf16.msra.mxu0 %v1791
  %1825 = vmatprep.subr.bf16.mxu0 %v1794
  %1826 = vmatpush1.bf16.msra.mxu0 %v1793
  %1827 = vmatprep.subr.bf16.mxu0 %v1796
  %1828 = vmatpush1.bf16.msra.mxu0 %v1795
  %1829 = vmatprep.subr.bf16.mxu0 %v1798
  %1830 = vmatpush1.bf16.msra.mxu0 %v1797
  %1831 = vmatprep.subr.bf16.mxu0 0
  %1832 = vmatpush1.bf16.msra.mxu0 0
  %1833 = vmatprep.subr.bf16.mxu0 0
  %1834 = vmatpush1.bf16.msra.mxu0 0
  %1835 = vmatprep.subr.bf16.mxu0 0
  %1836 = vmatpush1.bf16.msra.mxu0 0
  %1837 = vmatprep.subr.bf16.mxu0 0
  %1838 = vmatpush1.bf16.msra.mxu0 0
  %1839 = vmatprep.subr.bf16.mxu0 0
  %1840 = vmatpush1.bf16.msra.mxu0 0
  %1841 = vmatprep.subr.bf16.mxu0 0
  %1842 = vmatpush1.bf16.msra.mxu0 0
  %1843 = vmatprep.subr.bf16.mxu0 0
  %1844 = vmatpush1.bf16.msra.mxu0 0
  %1845 = vmatprep.subr.bf16.mxu0 0
  %1846 = vmatpush1.bf16.msra.mxu0 0
  %1847 = vmatprep.mubr.bf16.mxu0 0
  %1848 = vmatmul.mubr.bf16.gmra.mrb[0].mxu0 %v1690
  %v1849 = vpop.f32.mrb[0].mxu0
  %v1850 = vadd.f32 0.0, %v1849
  %v1851 = vpop.f32.mrb[0].mxu0
  %v1852 = vadd.f32 0.0, %v1851
  %v1853 = vpop.f32.mrb[0].mxu0
  %v1854 = vadd.f32 0.0, %v1853
  %v1855 = vpop.f32.mrb[0].mxu0
  %v1856 = vadd.f32 0.0, %v1855
  %1857 = vmatprep.mubr.bf16.mxu0 0
  %1858 = vmatmul.mubr.bf16.gmra.mrb[0].mxu0 %v1691
  %v1859 = vpop.f32.mrb[0].mxu0
  %v1860 = vadd.f32 0.0, %v1859
  %v1861 = vpop.f32.mrb[0].mxu0
  %v1862 = vadd.f32 0.0, %v1861
  %v1863 = vpop.f32.mrb[0].mxu0
  %v1864 = vadd.f32 0.0, %v1863
  %v1865 = vpop.f32.mrb[0].mxu0
  %v1866 = vadd.f32 0.0, %v1865
  %1867 = vmatprep.mubr.bf16.mxu0 0
  %1868 = vmatmul.mubr.bf16.gmra.mrb[0].mxu0 %v1692
  %v1869 = vpop.f32.mrb[0].mxu0
  %v1870 = vadd.f32 0.0, %v1869
  %v1871 = vpop.f32.mrb[0].mxu0
  %v1872 = vadd.f32 0.0, %v1871
  %v1873 = vpop.f32.mrb[0].mxu0
  %v1874 = vadd.f32 0.0, %v1873
  %v1875 = vpop.f32.mrb[0].mxu0
  %v1876 = vadd.f32 0.0, %v1875
  %1877 = vmatprep.mubr.bf16.mxu0 0
  %1878 = vmatmul.mubr.bf16.gmra.mrb[0].mxu0 %v1693
  %v1879 = vpop.f32.mrb[0].mxu0
  %v1880 = vadd.f32 0.0, %v1879
  %v1881 = vpop.f32.mrb[0].mxu0
  %v1882 = vadd.f32 0.0, %v1881
  %v1883 = vpop.f32.mrb[0].mxu0
  %v1884 = vadd.f32 0.0, %v1883
  %v1885 = vpop.f32.mrb[0].mxu0
  %v1886 = vadd.f32 0.0, %v1885
  %1887 = vmatprep.mubr.bf16.mxu0 0
  %1888 = vmatmul.mubr.bf16.gmra.mrb[0].mxu0 %v1694
  %v1889 = vpop.f32.mrb[0].mxu0
  %v1890 = vadd.f32 0.0, %v1889
  %v1891 = vpop.f32.mrb[0].mxu0
  %v1892 = vadd.f32 0.0, %v1891
  %v1893 = vpop.f32.mrb[0].mxu0
  %v1894 = vadd.f32 0.0, %v1893
  %v1895 = vpop.f32.mrb[0].mxu0
  %v1896 = vadd.f32 0.0, %v1895
  %1897 = vmatprep.mubr.bf16.mxu0 0
  %1898 = vmatmul.mubr.bf16.gmra.mrb[0].mxu0 %v1695
  %v1899 = vpop.f32.mrb[0].mxu0
  %v1900 = vadd.f32 0.0, %v1899
  %v1901 = vpop.f32.mrb[0].mxu0
  %v1902 = vadd.f32 0.0, %v1901
  %v1903 = vpop.f32.mrb[0].mxu0
  %v1904 = vadd.f32 0.0, %v1903
  %v1905 = vpop.f32.mrb[0].mxu0
  %v1906 = vadd.f32 0.0, %v1905
  %1907 = vmatprep.mubr.bf16.mxu0 0
  %1908 = vmatmul.mubr.bf16.gmra.mrb[0].mxu0 %v1696
  %v1909 = vpop.f32.mrb[0].mxu0
  %v1910 = vadd.f32 0.0, %v1909
  %v1911 = vpop.f32.mrb[0].mxu0
  %v1912 = vadd.f32 0.0, %v1911
  %v1913 = vpop.f32.mrb[0].mxu0
  %v1914 = vadd.f32 0.0, %v1913
  %v1915 = vpop.f32.mrb[0].mxu0
  %v1916 = vadd.f32 0.0, %v1915
  %1917 = vmatprep.mubr.bf16.mxu0 0
  %1918 = vmatmul.mubr.bf16.gmra.mrb[0].mxu0 %v1697
  %v1919 = vpop.f32.mrb[0].mxu0
  %v1920 = vadd.f32 0.0, %v1919
  %v1921 = vpop.f32.mrb[0].mxu0
  %v1922 = vadd.f32 0.0, %v1921
  %v1923 = vpop.f32.mrb[0].mxu0
  %v1924 = vadd.f32 0.0, %v1923
  %v1925 = vpop.f32.mrb[0].mxu0
  %v1926 = vadd.f32 0.0, %v1925
  %1927 = vdwg.mxu0
  %v1944 = vunpack.c.l.b16 %v1702
  %v1945 = vunpack.c.h.b16 %v1702
  %v1946 = vunpack.c.l.b16 %v1703
  %v1947 = vunpack.c.h.b16 %v1703
  %v1948 = vunpack.c.l.b16 %v1704
  %v1949 = vunpack.c.h.b16 %v1704
  %v1950 = vunpack.c.l.b16 %v1705
  %v1951 = vunpack.c.h.b16 %v1705
  %v1952 = vunpack.c.l.b16 %v1706
  %v1953 = vunpack.c.h.b16 %v1706
  %v1954 = vunpack.c.l.b16 %v1707
  %v1955 = vunpack.c.h.b16 %v1707
  %v1956 = vunpack.c.l.b16 %v1708
  %v1957 = vunpack.c.h.b16 %v1708
  %v1958 = vunpack.c.l.b16 %v1709
  %v1959 = vunpack.c.h.b16 %v1709
  %v1960 = vunpack.c.l.b16 %v1710
  %v1961 = vunpack.c.h.b16 %v1710
  %v1962 = vunpack.c.l.b16 %v1711
  %v1963 = vunpack.c.h.b16 %v1711
  %v1964 = vunpack.c.l.b16 %v1712
  %v1965 = vunpack.c.h.b16 %v1712
  %v1966 = vunpack.c.l.b16 %v1713
  %v1967 = vunpack.c.h.b16 %v1713
  %v1968 = vunpack.c.l.b16 %v1714
  %v1969 = vunpack.c.h.b16 %v1714
  %v1970 = vunpack.c.l.b16 %v1715
  %v1971 = vunpack.c.h.b16 %v1715
  %v1972 = vunpack.c.l.b16 %v1716
  %v1973 = vunpack.c.h.b16 %v1716
  %v1974 = vunpack.c.l.b16 %v1717
  %v1975 = vunpack.c.h.b16 %v1717
  %v1976 = vpack.c.b16 %v1946, %v1944
  %v1977 = vpack.c.b16 %v1947, %v1945
  %v1978 = vpack.c.b16 %v1950, %v1948
  %v1979 = vpack.c.b16 %v1951, %v1949
  %v1980 = vpack.c.b16 %v1954, %v1952
  %v1981 = vpack.c.b16 %v1955, %v1953
  %v1982 = vpack.c.b16 %v1958, %v1956
  %v1983 = vpack.c.b16 %v1959, %v1957
  %v1984 = vpack.c.b16 %v1962, %v1960
  %v1985 = vpack.c.b16 %v1963, %v1961
  %v1986 = vpack.c.b16 %v1966, %v1964
  %v1987 = vpack.c.b16 %v1967, %v1965
  %v1988 = vpack.c.b16 %v1970, %v1968
  %v1989 = vpack.c.b16 %v1971, %v1969
  %v1990 = vpack.c.b16 %v1974, %v1972
  %v1991 = vpack.c.b16 %v1975, %v1973
  %2008 = vmatprep.subr.bf16.mxu0 %v1977
  %2009 = vmatpush1.bf16.msra.mxu0 %v1976
  %2010 = vmatprep.subr.bf16.mxu0 %v1979
  %2011 = vmatpush1.bf16.msra.mxu0 %v1978
  %2012 = vmatprep.subr.bf16.mxu0 %v1981
  %2013 = vmatpush1.bf16.msra.mxu0 %v1980
  %2014 = vmatprep.subr.bf16.mxu0 %v1983
  %2015 = vmatpush1.bf16.msra.mxu0 %v1982
  %2016 = vmatprep.subr.bf16.mxu0 %v1985
  %2017 = vmatpush1.bf16.msra.mxu0 %v1984
  %2018 = vmatprep.subr.bf16.mxu0 %v1987
  %2019 = vmatpush1.bf16.msra.mxu0 %v1986
  %2020 = vmatprep.subr.bf16.mxu0 %v1989
  %2021 = vmatpush1.bf16.msra.mxu0 %v1988
  %2022 = vmatprep.subr.bf16.mxu0 %v1991
  %2023 = vmatpush1.bf16.msra.mxu0 %v1990
  %2024 = vmatprep.subr.bf16.mxu0 0
  %2025 = vmatpush1.bf16.msra.mxu0 0
  %2026 = vmatprep.subr.bf16.mxu0 0
  %2027 = vmatpush1.bf16.msra.mxu0 0
  %2028 = vmatprep.subr.bf16.mxu0 0
  %2029 = vmatpush1.bf16.msra.mxu0 0
  %2030 = vmatprep.subr.bf16.mxu0 0
  %2031 = vmatpush1.bf16.msra.mxu0 0
  %2032 = vmatprep.subr.bf16.mxu0 0
  %2033 = vmatpush1.bf16.msra.mxu0 0
  %2034 = vmatprep.subr.bf16.mxu0 0
  %2035 = vmatpush1.bf16.msra.mxu0 0
  %2036 = vmatprep.subr.bf16.mxu0 0
  %2037 = vmatpush1.bf16.msra.mxu0 0
  %2038 = vmatprep.subr.bf16.mxu0 0
  %2039 = vmatpush1.bf16.msra.mxu0 0
  %2040 = vmatprep.mubr.bf16.mxu0 0
  %2041 = vmatmul.mubr.bf16.gmra.mrb[0].mxu0 %v1558
  %v2042 = vpop.f32.mrb[0].mxu0
  %v2043 = vadd.f32 %v1850, %v2042
  %v2044 = vpop.f32.mrb[0].mxu0
  %v2045 = vadd.f32 %v1852, %v2044
  %v2046 = vpop.f32.mrb[0].mxu0
  %v2047 = vadd.f32 %v1854, %v2046
  %v2048 = vpop.f32.mrb[0].mxu0
  %v2049 = vadd.f32 %v1856, %v2048
  %2050 = vmatprep.mubr.bf16.mxu0 0
  %2051 = vmatmul.mubr.bf16.gmra.mrb[0].mxu0 %v1559
  %v2052 = vpop.f32.mrb[0].mxu0
  %v2053 = vadd.f32 %v1860, %v2052
  %v2054 = vpop.f32.mrb[0].mxu0
  %v2055 = vadd.f32 %v1862, %v2054
  %v2056 = vpop.f32.mrb[0].mxu0
  %v2057 = vadd.f32 %v1864, %v2056
  %v2058 = vpop.f32.mrb[0].mxu0
  %v2059 = vadd.f32 %v1866, %v2058
  %2060 = vmatprep.mubr.bf16.mxu0 0
  %2061 = vmatmul.mubr.bf16.gmra.mrb[0].mxu0 %v1560
  %v2062 = vpop.f32.mrb[0].mxu0
  %v2063 = vadd.f32 %v1870, %v2062
  %v2064 = vpop.f32.mrb[0].mxu0
  %v2065 = vadd.f32 %v1872, %v2064
  %v2066 = vpop.f32.mrb[0].mxu0
  %v2067 = vadd.f32 %v1874, %v2066
  %v2068 = vpop.f32.mrb[0].mxu0
  %v2069 = vadd.f32 %v1876, %v2068
  %2070 = vmatprep.mubr.bf16.mxu0 0
  %2071 = vmatmul.mubr.bf16.gmra.mrb[0].mxu0 %v1561
  %v2072 = vpop.f32.mrb[0].mxu0
  %v2073 = vadd.f32 %v1880, %v2072
  %v2074 = vpop.f32.mrb[0].mxu0
  %v2075 = vadd.f32 %v1882, %v2074
  %v2076 = vpop.f32.mrb[0].mxu0
  %v2077 = vadd.f32 %v1884, %v2076
  %v2078 = vpop.f32.mrb[0].mxu0
  %v2079 = vadd.f32 %v1886, %v2078
  %2080 = vmatprep.mubr.bf16.mxu0 0
  %2081 = vmatmul.mubr.bf16.gmra.mrb[0].mxu0 %v1562
  %v2082 = vpop.f32.mrb[0].mxu0
  %v2083 = vadd.f32 %v1890, %v2082
  %v2084 = vpop.f32.mrb[0].mxu0
  %v2085 = vadd.f32 %v1892, %v2084
  %v2086 = vpop.f32.mrb[0].mxu0
  %v2087 = vadd.f32 %v1894, %v2086
  %v2088 = vpop.f32.mrb[0].mxu0
  %v2089 = vadd.f32 %v1896, %v2088
  %2090 = vmatprep.mubr.bf16.mxu0 0
  %2091 = vmatmul.mubr.bf16.gmra.mrb[0].mxu0 %v1563
  %v2092 = vpop.f32.mrb[0].mxu0
  %v2093 = vadd.f32 %v1900, %v2092
  %v2094 = vpop.f32.mrb[0].mxu0
  %v2095 = vadd.f32 %v1902, %v2094
  %v2096 = vpop.f32.mrb[0].mxu0
  %v2097 = vadd.f32 %v1904, %v2096
  %v2098 = vpop.f32.mrb[0].mxu0
  %v2099 = vadd.f32 %v1906, %v2098
  %2100 = vmatprep.mubr.bf16.mxu0 0
  %2101 = vmatmul.mubr.bf16.gmra.mrb[0].mxu0 %v1564
  %v2102 = vpop.f32.mrb[0].mxu0
  %v2103 = vadd.f32 %v1910, %v2102
  %v2104 = vpop.f32.mrb[0].mxu0
  %v2105 = vadd.f32 %v1912, %v2104
  %v2106 = vpop.f32.mrb[0].mxu0
  %v2107 = vadd.f32 %v1914, %v2106
  %v2108 = vpop.f32.mrb[0].mxu0
  %v2109 = vadd.f32 %v1916, %v2108
  %2110 = vmatprep.mubr.bf16.mxu0 0
  %2111 = vmatmul.mubr.bf16.gmra.mrb[0].mxu0 %v1565
  %v2112 = vpop.f32.mrb[0].mxu0
  %v2113 = vadd.f32 %v1920, %v2112
  %v2114 = vpop.f32.mrb[0].mxu0
  %v2115 = vadd.f32 %v1922, %v2114
  %v2116 = vpop.f32.mrb[0].mxu0
  %v2117 = vadd.f32 %v1924, %v2116
  %v2118 = vpop.f32.mrb[0].mxu0
  %v2119 = vadd.f32 %v1926, %v2118
  %2120 = vdwg.mxu0
  %s2121 = scalar_lea.vmem %s3, 256
  %v2122 = vld [vmem:[%s2121] sm:$0xff]
  %v2123 = vld [vmem:[%s2121 + $0x8] sm:$0xff]
  %v2124 = vld [vmem:[%s2121 + $0x10] sm:$0xff]
  %v2125 = vld [vmem:[%s2121 + $0x18] sm:$0xff]
  %v2126 = vld [vmem:[%s2121 + $0x20] sm:$0xff]
  %v2127 = vld [vmem:[%s2121 + $0x28] sm:$0xff]
  %v2128 = vld [vmem:[%s2121 + $0x30] sm:$0xff]
  %v2129 = vld [vmem:[%s2121 + $0x38] sm:$0xff]
  %v2130 = vld [vmem:[%s2121 + $0x40] sm:$0xff]
  %v2131 = vld [vmem:[%s2121 + $0x48] sm:$0xff]
  %v2132 = vld [vmem:[%s2121 + $0x50] sm:$0xff]
  %v2133 = vld [vmem:[%s2121 + $0x58] sm:$0xff]
  %v2134 = vld [vmem:[%s2121 + $0x60] sm:$0xff]
  %v2135 = vld [vmem:[%s2121 + $0x68] sm:$0xff]
  %v2136 = vld [vmem:[%s2121 + $0x70] sm:$0xff]
  %v2137 = vld [vmem:[%s2121 + $0x78] sm:$0xff]
  %v2154 = vunpack.c.l.b16 %v2122
  %v2155 = vunpack.c.h.b16 %v2122
  %v2156 = vunpack.c.l.b16 %v2123
  %v2157 = vunpack.c.h.b16 %v2123
  %v2158 = vunpack.c.l.b16 %v2124
  %v2159 = vunpack.c.h.b16 %v2124
  %v2160 = vunpack.c.l.b16 %v2125
  %v2161 = vunpack.c.h.b16 %v2125
  %v2162 = vunpack.c.l.b16 %v2126
  %v2163 = vunpack.c.h.b16 %v2126
  %v2164 = vunpack.c.l.b16 %v2127
  %v2165 = vunpack.c.h.b16 %v2127
  %v2166 = vunpack.c.l.b16 %v2128
  %v2167 = vunpack.c.h.b16 %v2128
  %v2168 = vunpack.c.l.b16 %v2129
  %v2169 = vunpack.c.h.b16 %v2129
  %v2170 = vunpack.c.l.b16 %v2130
  %v2171 = vunpack.c.h.b16 %v2130
  %v2172 = vunpack.c.l.b16 %v2131
  %v2173 = vunpack.c.h.b16 %v2131
  %v2174 = vunpack.c.l.b16 %v2132
  %v2175 = vunpack.c.h.b16 %v2132
  %v2176 = vunpack.c.l.b16 %v2133
  %v2177 = vunpack.c.h.b16 %v2133
  %v2178 = vunpack.c.l.b16 %v2134
  %v2179 = vunpack.c.h.b16 %v2134
  %v2180 = vunpack.c.l.b16 %v2135
  %v2181 = vunpack.c.h.b16 %v2135
  %v2182 = vunpack.c.l.b16 %v2136
  %v2183 = vunpack.c.h.b16 %v2136
  %v2184 = vunpack.c.l.b16 %v2137
  %v2185 = vunpack.c.h.b16 %v2137
  %v2186 = vpack.c.b16 %v2156, %v2154
  %v2187 = vpack.c.b16 %v2157, %v2155
  %v2188 = vpack.c.b16 %v2160, %v2158
  %v2189 = vpack.c.b16 %v2161, %v2159
  %v2190 = vpack.c.b16 %v2164, %v2162
  %v2191 = vpack.c.b16 %v2165, %v2163
  %v2192 = vpack.c.b16 %v2168, %v2166
  %v2193 = vpack.c.b16 %v2169, %v2167
  %v2194 = vpack.c.b16 %v2172, %v2170
  %v2195 = vpack.c.b16 %v2173, %v2171
  %v2196 = vpack.c.b16 %v2176, %v2174
  %v2197 = vpack.c.b16 %v2177, %v2175
  %v2198 = vpack.c.b16 %v2180, %v2178
  %v2199 = vpack.c.b16 %v2181, %v2179
  %v2200 = vpack.c.b16 %v2184, %v2182
  %v2201 = vpack.c.b16 %v2185, %v2183
  %2218 = vmatprep.subr.bf16.mxu0 %v2187
  %2219 = vmatpush1.bf16.msra.mxu0 %v2186
  %2220 = vmatprep.subr.bf16.mxu0 %v2189
  %2221 = vmatpush1.bf16.msra.mxu0 %v2188
  %2222 = vmatprep.subr.bf16.mxu0 %v2191
  %2223 = vmatpush1.bf16.msra.mxu0 %v2190
  %2224 = vmatprep.subr.bf16.mxu0 %v2193
  %2225 = vmatpush1.bf16.msra.mxu0 %v2192
  %2226 = vmatprep.subr.bf16.mxu0 %v2195
  %2227 = vmatpush1.bf16.msra.mxu0 %v2194
  %2228 = vmatprep.subr.bf16.mxu0 %v2197
  %2229 = vmatpush1.bf16.msra.mxu0 %v2196
  %2230 = vmatprep.subr.bf16.mxu0 %v2199
  %2231 = vmatpush1.bf16.msra.mxu0 %v2198
  %2232 = vmatprep.subr.bf16.mxu0 %v2201
  %2233 = vmatpush1.bf16.msra.mxu0 %v2200
  %2234 = vmatprep.subr.bf16.mxu0 0
  %2235 = vmatpush1.bf16.msra.mxu0 0
  %2236 = vmatprep.subr.bf16.mxu0 0
  %2237 = vmatpush1.bf16.msra.mxu0 0
  %2238 = vmatprep.subr.bf16.mxu0 0
  %2239 = vmatpush1.bf16.msra.mxu0 0
  %2240 = vmatprep.subr.bf16.mxu0 0
  %2241 = vmatpush1.bf16.msra.mxu0 0
  %2242 = vmatprep.subr.bf16.mxu0 0
  %2243 = vmatpush1.bf16.msra.mxu0 0
  %2244 = vmatprep.subr.bf16.mxu0 0
  %2245 = vmatpush1.bf16.msra.mxu0 0
  %2246 = vmatprep.subr.bf16.mxu0 0
  %2247 = vmatpush1.bf16.msra.mxu0 0
  %2248 = vmatprep.subr.bf16.mxu0 0
  %2249 = vmatpush1.bf16.msra.mxu0 0
  %2250 = vmatprep.mubr.bf16.mxu0 0
  %2251 = vmatmul.mubr.bf16.gmra.mrb[0].mxu0 %v1560
  %v2252 = vpop.f32.mrb[0].mxu0
  %v2253 = vadd.f32 0.0, %v2252
  %v2254 = vpop.f32.mrb[0].mxu0
  %v2255 = vadd.f32 0.0, %v2254
  %v2256 = vpop.f32.mrb[0].mxu0
  %v2257 = vadd.f32 0.0, %v2256
  %v2258 = vpop.f32.mrb[0].mxu0
  %v2259 = vadd.f32 0.0, %v2258
  %2260 = vmatprep.mubr.bf16.mxu0 0
  %2261 = vmatmul.mubr.bf16.gmra.mrb[0].mxu0 %v1561
  %v2262 = vpop.f32.mrb[0].mxu0
  %v2263 = vadd.f32 0.0, %v2262
  %v2264 = vpop.f32.mrb[0].mxu0
  %v2265 = vadd.f32 0.0, %v2264
  %v2266 = vpop.f32.mrb[0].mxu0
  %v2267 = vadd.f32 0.0, %v2266
  %v2268 = vpop.f32.mrb[0].mxu0
  %v2269 = vadd.f32 0.0, %v2268
  %2270 = vmatprep.mubr.bf16.mxu0 0
  %2271 = vmatmul.mubr.bf16.gmra.mrb[0].mxu0 %v1562
  %v2272 = vpop.f32.mrb[0].mxu0
  %v2273 = vadd.f32 0.0, %v2272
  %v2274 = vpop.f32.mrb[0].mxu0
  %v2275 = vadd.f32 0.0, %v2274
  %v2276 = vpop.f32.mrb[0].mxu0
  %v2277 = vadd.f32 0.0, %v2276
  %v2278 = vpop.f32.mrb[0].mxu0
  %v2279 = vadd.f32 0.0, %v2278
  %2280 = vmatprep.mubr.bf16.mxu0 0
  %2281 = vmatmul.mubr.bf16.gmra.mrb[0].mxu0 %v1563
  %v2282 = vpop.f32.mrb[0].mxu0
  %v2283 = vadd.f32 0.0, %v2282
  %v2284 = vpop.f32.mrb[0].mxu0
  %v2285 = vadd.f32 0.0, %v2284
  %v2286 = vpop.f32.mrb[0].mxu0
  %v2287 = vadd.f32 0.0, %v2286
  %v2288 = vpop.f32.mrb[0].mxu0
  %v2289 = vadd.f32 0.0, %v2288
  %2290 = vmatprep.mubr.bf16.mxu0 0
  %2291 = vmatmul.mubr.bf16.gmra.mrb[0].mxu0 %v1564
  %v2292 = vpop.f32.mrb[0].mxu0
  %v2293 = vadd.f32 0.0, %v2292
  %v2294 = vpop.f32.mrb[0].mxu0
  %v2295 = vadd.f32 0.0, %v2294
  %v2296 = vpop.f32.mrb[0].mxu0
  %v2297 = vadd.f32 0.0, %v2296
  %v2298 = vpop.f32.mrb[0].mxu0
  %v2299 = vadd.f32 0.0, %v2298
  %2300 = vmatprep.mubr.bf16.mxu0 0
  %2301 = vmatmul.mubr.bf16.gmra.mrb[0].mxu0 %v1565
  %v2302 = vpop.f32.mrb[0].mxu0
  %v2303 = vadd.f32 0.0, %v2302
  %v2304 = vpop.f32.mrb[0].mxu0
  %v2305 = vadd.f32 0.0, %v2304
  %v2306 = vpop.f32.mrb[0].mxu0
  %v2307 = vadd.f32 0.0, %v2306
  %v2308 = vpop.f32.mrb[0].mxu0
  %v2309 = vadd.f32 0.0, %v2308
  %2310 = vmatprep.mubr.bf16.mxu0 0
  %2311 = vmatmul.mubr.bf16.gmra.mrb[0].mxu0 %v1566
  %v2312 = vpop.f32.mrb[0].mxu0
  %v2313 = vadd.f32 0.0, %v2312
  %v2314 = vpop.f32.mrb[0].mxu0
  %v2315 = vadd.f32 0.0, %v2314
  %v2316 = vpop.f32.mrb[0].mxu0
  %v2317 = vadd.f32 0.0, %v2316
  %v2318 = vpop.f32.mrb[0].mxu0
  %v2319 = vadd.f32 0.0, %v2318
  %2320 = vmatprep.mubr.bf16.mxu0 0
  %2321 = vmatmul.mubr.bf16.gmra.mrb[0].mxu0 %v1567
  %v2322 = vpop.f32.mrb[0].mxu0
  %v2323 = vadd.f32 0.0, %v2322
  %v2324 = vpop.f32.mrb[0].mxu0
  %v2325 = vadd.f32 0.0, %v2324
  %v2326 = vpop.f32.mrb[0].mxu0
  %v2327 = vadd.f32 0.0, %v2326
  %v2328 = vpop.f32.mrb[0].mxu0
  %v2329 = vadd.f32 0.0, %v2328
  %2330 = vdwg.mxu0
  %v2331 = vadd.f32 %v2043, %v2253
  %v2332 = vadd.f32 %v2045, %v2255
  %v2333 = vadd.f32 %v2047, %v2257
  %v2334 = vadd.f32 %v2049, %v2259
  %v2335 = vadd.f32 %v2053, %v2263
  %v2336 = vadd.f32 %v2055, %v2265
  %v2337 = vadd.f32 %v2057, %v2267
  %v2338 = vadd.f32 %v2059, %v2269
  %v2339 = vadd.f32 %v2063, %v2273
  %v2340 = vadd.f32 %v2065, %v2275
  %v2341 = vadd.f32 %v2067, %v2277
  %v2342 = vadd.f32 %v2069, %v2279
  %v2343 = vadd.f32 %v2073, %v2283
  %v2344 = vadd.f32 %v2075, %v2285
  %v2345 = vadd.f32 %v2077, %v2287
  %v2346 = vadd.f32 %v2079, %v2289
  %v2347 = vadd.f32 %v2083, %v2293
  %v2348 = vadd.f32 %v2085, %v2295
  %v2349 = vadd.f32 %v2087, %v2297
  %v2350 = vadd.f32 %v2089, %v2299
  %v2351 = vadd.f32 %v2093, %v2303
  %v2352 = vadd.f32 %v2095, %v2305
  %v2353 = vadd.f32 %v2097, %v2307
  %v2354 = vadd.f32 %v2099, %v2309
  %v2355 = vadd.f32 %v2103, %v2313
  %v2356 = vadd.f32 %v2105, %v2315
  %v2357 = vadd.f32 %v2107, %v2317
  %v2358 = vadd.f32 %v2109, %v2319
  %v2359 = vadd.f32 %v2113, %v2323
  %v2360 = vadd.f32 %v2115, %v2325
  %v2361 = vadd.f32 %v2117, %v2327
  %v2362 = vadd.f32 %v2119, %v2329
  %s2363 = scalar_lea.vmem %s3, 384
  %v2364 = vld [vmem:[%s2363] sm:$0xff]
  %v2365 = vld [vmem:[%s2363 + $0x8] sm:$0xff]
  %v2366 = vld [vmem:[%s2363 + $0x10] sm:$0xff]
  %v2367 = vld [vmem:[%s2363 + $0x18] sm:$0xff]
  %v2368 = vld [vmem:[%s2363 + $0x20] sm:$0xff]
  %v2369 = vld [vmem:[%s2363 + $0x28] sm:$0xff]
  %v2370 = vld [vmem:[%s2363 + $0x30] sm:$0xff]
  %v2371 = vld [vmem:[%s2363 + $0x38] sm:$0xff]
  %v2372 = vld [vmem:[%s2363 + $0x40] sm:$0xff]
  %v2373 = vld [vmem:[%s2363 + $0x48] sm:$0xff]
  %v2374 = vld [vmem:[%s2363 + $0x50] sm:$0xff]
  %v2375 = vld [vmem:[%s2363 + $0x58] sm:$0xff]
  %v2376 = vld [vmem:[%s2363 + $0x60] sm:$0xff]
  %v2377 = vld [vmem:[%s2363 + $0x68] sm:$0xff]
  %v2378 = vld [vmem:[%s2363 + $0x70] sm:$0xff]
  %v2379 = vld [vmem:[%s2363 + $0x78] sm:$0xff]
  %v2396 = vunpack.c.l.b16 %v2364
  %v2397 = vunpack.c.h.b16 %v2364
  %v2398 = vunpack.c.l.b16 %v2365
  %v2399 = vunpack.c.h.b16 %v2365
  %v2400 = vunpack.c.l.b16 %v2366
  %v2401 = vunpack.c.h.b16 %v2366
  %v2402 = vunpack.c.l.b16 %v2367
  %v2403 = vunpack.c.h.b16 %v2367
  %v2404 = vunpack.c.l.b16 %v2368
  %v2405 = vunpack.c.h.b16 %v2368
  %v2406 = vunpack.c.l.b16 %v2369
  %v2407 = vunpack.c.h.b16 %v2369
  %v2408 = vunpack.c.l.b16 %v2370
  %v2409 = vunpack.c.h.b16 %v2370
  %v2410 = vunpack.c.l.b16 %v2371
  %v2411 = vunpack.c.h.b16 %v2371
  %v2412 = vunpack.c.l.b16 %v2372
  %v2413 = vunpack.c.h.b16 %v2372
  %v2414 = vunpack.c.l.b16 %v2373
  %v2415 = vunpack.c.h.b16 %v2373
  %v2416 = vunpack.c.l.b16 %v2374
  %v2417 = vunpack.c.h.b16 %v2374
  %v2418 = vunpack.c.l.b16 %v2375
  %v2419 = vunpack.c.h.b16 %v2375
  %v2420 = vunpack.c.l.b16 %v2376
  %v2421 = vunpack.c.h.b16 %v2376
  %v2422 = vunpack.c.l.b16 %v2377
  %v2423 = vunpack.c.h.b16 %v2377
  %v2424 = vunpack.c.l.b16 %v2378
  %v2425 = vunpack.c.h.b16 %v2378
  %v2426 = vunpack.c.l.b16 %v2379
  %v2427 = vunpack.c.h.b16 %v2379
  %v2428 = vpack.c.b16 %v2398, %v2396
  %v2429 = vpack.c.b16 %v2399, %v2397
  %v2430 = vpack.c.b16 %v2402, %v2400
  %v2431 = vpack.c.b16 %v2403, %v2401
  %v2432 = vpack.c.b16 %v2406, %v2404
  %v2433 = vpack.c.b16 %v2407, %v2405
  %v2434 = vpack.c.b16 %v2410, %v2408
  %v2435 = vpack.c.b16 %v2411, %v2409
  %v2436 = vpack.c.b16 %v2414, %v2412
  %v2437 = vpack.c.b16 %v2415, %v2413
  %v2438 = vpack.c.b16 %v2418, %v2416
  %v2439 = vpack.c.b16 %v2419, %v2417
  %v2440 = vpack.c.b16 %v2422, %v2420
  %v2441 = vpack.c.b16 %v2423, %v2421
  %v2442 = vpack.c.b16 %v2426, %v2424
  %v2443 = vpack.c.b16 %v2427, %v2425
  %2460 = vmatprep.subr.bf16.mxu0 %v2429
  %2461 = vmatpush1.bf16.msra.mxu0 %v2428
  %2462 = vmatprep.subr.bf16.mxu0 %v2431
  %2463 = vmatpush1.bf16.msra.mxu0 %v2430
  %2464 = vmatprep.subr.bf16.mxu0 %v2433
  %2465 = vmatpush1.bf16.msra.mxu0 %v2432
  %2466 = vmatprep.subr.bf16.mxu0 %v2435
  %2467 = vmatpush1.bf16.msra.mxu0 %v2434
  %2468 = vmatprep.subr.bf16.mxu0 %v2437
  %2469 = vmatpush1.bf16.msra.mxu0 %v2436
  %2470 = vmatprep.subr.bf16.mxu0 %v2439
  %2471 = vmatpush1.bf16.msra.mxu0 %v2438
  %2472 = vmatprep.subr.bf16.mxu0 %v2441
  %2473 = vmatpush1.bf16.msra.mxu0 %v2440
  %2474 = vmatprep.subr.bf16.mxu0 %v2443
  %2475 = vmatpush1.bf16.msra.mxu0 %v2442
  %2476 = vmatprep.subr.bf16.mxu0 0
  %2477 = vmatpush1.bf16.msra.mxu0 0
  %2478 = vmatprep.subr.bf16.mxu0 0
  %2479 = vmatpush1.bf16.msra.mxu0 0
  %2480 = vmatprep.subr.bf16.mxu0 0
  %2481 = vmatpush1.bf16.msra.mxu0 0
  %2482 = vmatprep.subr.bf16.mxu0 0
  %2483 = vmatpush1.bf16.msra.mxu0 0
  %2484 = vmatprep.subr.bf16.mxu0 0
  %2485 = vmatpush1.bf16.msra.mxu0 0
  %2486 = vmatprep.subr.bf16.mxu0 0
  %2487 = vmatpush1.bf16.msra.mxu0 0
  %2488 = vmatprep.subr.bf16.mxu0 0
  %2489 = vmatpush1.bf16.msra.mxu0 0
  %2490 = vmatprep.subr.bf16.mxu0 0
  %2491 = vmatpush1.bf16.msra.mxu0 0
  %2492 = vmatprep.mubr.bf16.mxu0 0
  %2493 = vmatmul.mubr.bf16.gmra.mrb[0].mxu0 %v1692
  %v2494 = vpop.f32.mrb[0].mxu0
  %v2495 = vadd.f32 0.0, %v2494
  %v2496 = vpop.f32.mrb[0].mxu0
  %v2497 = vadd.f32 0.0, %v2496
  %v2498 = vpop.f32.mrb[0].mxu0
  %v2499 = vadd.f32 0.0, %v2498
  %v2500 = vpop.f32.mrb[0].mxu0
  %v2501 = vadd.f32 0.0, %v2500
  %2502 = vmatprep.mubr.bf16.mxu0 0
  %2503 = vmatmul.mubr.bf16.gmra.mrb[0].mxu0 %v1693
  %v2504 = vpop.f32.mrb[0].mxu0
  %v2505 = vadd.f32 0.0, %v2504
  %v2506 = vpop.f32.mrb[0].mxu0
  %v2507 = vadd.f32 0.0, %v2506
  %v2508 = vpop.f32.mrb[0].mxu0
  %v2509 = vadd.f32 0.0, %v2508
  %v2510 = vpop.f32.mrb[0].mxu0
  %v2511 = vadd.f32 0.0, %v2510
  %2512 = vmatprep.mubr.bf16.mxu0 0
  %2513 = vmatmul.mubr.bf16.gmra.mrb[0].mxu0 %v1694
  %v2514 = vpop.f32.mrb[0].mxu0
  %v2515 = vadd.f32 0.0, %v2514
  %v2516 = vpop.f32.mrb[0].mxu0
  %v2517 = vadd.f32 0.0, %v2516
  %v2518 = vpop.f32.mrb[0].mxu0
  %v2519 = vadd.f32 0.0, %v2518
  %v2520 = vpop.f32.mrb[0].mxu0
  %v2521 = vadd.f32 0.0, %v2520
  %2522 = vmatprep.mubr.bf16.mxu0 0
  %2523 = vmatmul.mubr.bf16.gmra.mrb[0].mxu0 %v1695
  %v2524 = vpop.f32.mrb[0].mxu0
  %v2525 = vadd.f32 0.0, %v2524
  %v2526 = vpop.f32.mrb[0].mxu0
  %v2527 = vadd.f32 0.0, %v2526
  %v2528 = vpop.f32.mrb[0].mxu0
  %v2529 = vadd.f32 0.0, %v2528
  %v2530 = vpop.f32.mrb[0].mxu0
  %v2531 = vadd.f32 0.0, %v2530
  %2532 = vmatprep.mubr.bf16.mxu0 0
  %2533 = vmatmul.mubr.bf16.gmra.mrb[0].mxu0 %v1696
  %v2534 = vpop.f32.mrb[0].mxu0
  %v2535 = vadd.f32 0.0, %v2534
  %v2536 = vpop.f32.mrb[0].mxu0
  %v2537 = vadd.f32 0.0, %v2536
  %v2538 = vpop.f32.mrb[0].mxu0
  %v2539 = vadd.f32 0.0, %v2538
  %v2540 = vpop.f32.mrb[0].mxu0
  %v2541 = vadd.f32 0.0, %v2540
  %2542 = vmatprep.mubr.bf16.mxu0 0
  %2543 = vmatmul.mubr.bf16.gmra.mrb[0].mxu0 %v1697
  %v2544 = vpop.f32.mrb[0].mxu0
  %v2545 = vadd.f32 0.0, %v2544
  %v2546 = vpop.f32.mrb[0].mxu0
  %v2547 = vadd.f32 0.0, %v2546
  %v2548 = vpop.f32.mrb[0].mxu0
  %v2549 = vadd.f32 0.0, %v2548
  %v2550 = vpop.f32.mrb[0].mxu0
  %v2551 = vadd.f32 0.0, %v2550
  %2552 = vmatprep.mubr.bf16.mxu0 0
  %2553 = vmatmul.mubr.bf16.gmra.mrb[0].mxu0 %v1698
  %v2554 = vpop.f32.mrb[0].mxu0
  %v2555 = vadd.f32 0.0, %v2554
  %v2556 = vpop.f32.mrb[0].mxu0
  %v2557 = vadd.f32 0.0, %v2556
  %v2558 = vpop.f32.mrb[0].mxu0
  %v2559 = vadd.f32 0.0, %v2558
  %v2560 = vpop.f32.mrb[0].mxu0
  %v2561 = vadd.f32 0.0, %v2560
  %2562 = vmatprep.mubr.bf16.mxu0 0
  %2563 = vmatmul.mubr.bf16.gmra.mrb[0].mxu0 %v1699
  %v2564 = vpop.f32.mrb[0].mxu0
  %v2565 = vadd.f32 0.0, %v2564
  %v2566 = vpop.f32.mrb[0].mxu0
  %v2567 = vadd.f32 0.0, %v2566
  %v2568 = vpop.f32.mrb[0].mxu0
  %v2569 = vadd.f32 0.0, %v2568
  %v2570 = vpop.f32.mrb[0].mxu0
  %v2571 = vadd.f32 0.0, %v2570
  %2572 = vdwg.mxu0
  %v2573 = vadd.f32 %v2331, %v2495
  %v2574 = vadd.f32 %v2332, %v2497
  %v2575 = vadd.f32 %v2333, %v2499
  %v2576 = vadd.f32 %v2334, %v2501
  %v2577 = vadd.f32 %v2335, %v2505
  %v2578 = vadd.f32 %v2336, %v2507
  %v2579 = vadd.f32 %v2337, %v2509
  %v2580 = vadd.f32 %v2338, %v2511
  %v2581 = vadd.f32 %v2339, %v2515
  %v2582 = vadd.f32 %v2340, %v2517
  %v2583 = vadd.f32 %v2341, %v2519
  %v2584 = vadd.f32 %v2342, %v2521
  %v2585 = vadd.f32 %v2343, %v2525
  %v2586 = vadd.f32 %v2344, %v2527
  %v2587 = vadd.f32 %v2345, %v2529
  %v2588 = vadd.f32 %v2346, %v2531
  %v2589 = vadd.f32 %v2347, %v2535
  %v2590 = vadd.f32 %v2348, %v2537
  %v2591 = vadd.f32 %v2349, %v2539
  %v2592 = vadd.f32 %v2350, %v2541
  %v2593 = vadd.f32 %v2351, %v2545
  %v2594 = vadd.f32 %v2352, %v2547
  %v2595 = vadd.f32 %v2353, %v2549
  %v2596 = vadd.f32 %v2354, %v2551
  %v2597 = vadd.f32 %v2355, %v2555
  %v2598 = vadd.f32 %v2356, %v2557
  %v2599 = vadd.f32 %v2357, %v2559
  %v2600 = vadd.f32 %v2358, %v2561
  %v2601 = vadd.f32 %v2359, %v2565
  %v2602 = vadd.f32 %v2360, %v2567
  %v2603 = vadd.f32 %v2361, %v2569
  %v2604 = vadd.f32 %v2362, %v2571
  %s2605 = scalar_lea.vmem %s3, 512
  %v2606 = vld [vmem:[%s2605] sm:$0xff]
  %v2607 = vld [vmem:[%s2605 + $0x8] sm:$0xff]
  %v2608 = vld [vmem:[%s2605 + $0x10] sm:$0xff]
  %v2609 = vld [vmem:[%s2605 + $0x18] sm:$0xff]
  %v2610 = vld [vmem:[%s2605 + $0x20] sm:$0xff]
  %v2611 = vld [vmem:[%s2605 + $0x28] sm:$0xff]
  %v2612 = vld [vmem:[%s2605 + $0x30] sm:$0xff]
  %v2613 = vld [vmem:[%s2605 + $0x38] sm:$0xff]
  %v2614 = vld [vmem:[%s2605 + $0x40] sm:$0xff]
  %v2615 = vld [vmem:[%s2605 + $0x48] sm:$0xff]
  %v2616 = vld [vmem:[%s2605 + $0x50] sm:$0xff]
  %v2617 = vld [vmem:[%s2605 + $0x58] sm:$0xff]
  %v2618 = vld [vmem:[%s2605 + $0x60] sm:$0xff]
  %v2619 = vld [vmem:[%s2605 + $0x68] sm:$0xff]
  %v2620 = vld [vmem:[%s2605 + $0x70] sm:$0xff]
  %v2621 = vld [vmem:[%s2605 + $0x78] sm:$0xff]
  %v2638 = vunpack.c.l.b16 %v2606
  %v2639 = vunpack.c.h.b16 %v2606
  %v2640 = vunpack.c.l.b16 %v2607
  %v2641 = vunpack.c.h.b16 %v2607
  %v2642 = vunpack.c.l.b16 %v2608
  %v2643 = vunpack.c.h.b16 %v2608
  %v2644 = vunpack.c.l.b16 %v2609
  %v2645 = vunpack.c.h.b16 %v2609
  %v2646 = vunpack.c.l.b16 %v2610
  %v2647 = vunpack.c.h.b16 %v2610
  %v2648 = vunpack.c.l.b16 %v2611
  %v2649 = vunpack.c.h.b16 %v2611
  %v2650 = vunpack.c.l.b16 %v2612
  %v2651 = vunpack.c.h.b16 %v2612
  %v2652 = vunpack.c.l.b16 %v2613
  %v2653 = vunpack.c.h.b16 %v2613
  %v2654 = vunpack.c.l.b16 %v2614
  %v2655 = vunpack.c.h.b16 %v2614
  %v2656 = vunpack.c.l.b16 %v2615
  %v2657 = vunpack.c.h.b16 %v2615
  %v2658 = vunpack.c.l.b16 %v2616
  %v2659 = vunpack.c.h.b16 %v2616
  %v2660 = vunpack.c.l.b16 %v2617
  %v2661 = vunpack.c.h.b16 %v2617
  %v2662 = vunpack.c.l.b16 %v2618
  %v2663 = vunpack.c.h.b16 %v2618
  %v2664 = vunpack.c.l.b16 %v2619
  %v2665 = vunpack.c.h.b16 %v2619
  %v2666 = vunpack.c.l.b16 %v2620
  %v2667 = vunpack.c.h.b16 %v2620
  %v2668 = vunpack.c.l.b16 %v2621
  %v2669 = vunpack.c.h.b16 %v2621
  %v2670 = vpack.c.b16 %v2640, %v2638
  %v2671 = vpack.c.b16 %v2641, %v2639
  %v2672 = vpack.c.b16 %v2644, %v2642
  %v2673 = vpack.c.b16 %v2645, %v2643
  %v2674 = vpack.c.b16 %v2648, %v2646
  %v2675 = vpack.c.b16 %v2649, %v2647
  %v2676 = vpack.c.b16 %v2652, %v2650
  %v2677 = vpack.c.b16 %v2653, %v2651
  %v2678 = vpack.c.b16 %v2656, %v2654
  %v2679 = vpack.c.b16 %v2657, %v2655
  %v2680 = vpack.c.b16 %v2660, %v2658
  %v2681 = vpack.c.b16 %v2661, %v2659
  %v2682 = vpack.c.b16 %v2664, %v2662
  %v2683 = vpack.c.b16 %v2665, %v2663
  %v2684 = vpack.c.b16 %v2668, %v2666
  %v2685 = vpack.c.b16 %v2669, %v2667
  %2702 = vmatprep.subr.bf16.mxu0 %v2671
  %2703 = vmatpush1.bf16.msra.mxu0 %v2670
  %2704 = vmatprep.subr.bf16.mxu0 %v2673
  %2705 = vmatpush1.bf16.msra.mxu0 %v2672
  %2706 = vmatprep.subr.bf16.mxu0 %v2675
  %2707 = vmatpush1.bf16.msra.mxu0 %v2674
  %2708 = vmatprep.subr.bf16.mxu0 %v2677
  %2709 = vmatpush1.bf16.msra.mxu0 %v2676
  %2710 = vmatprep.subr.bf16.mxu0 %v2679
  %2711 = vmatpush1.bf16.msra.mxu0 %v2678
  %2712 = vmatprep.subr.bf16.mxu0 %v2681
  %2713 = vmatpush1.bf16.msra.mxu0 %v2680
  %2714 = vmatprep.subr.bf16.mxu0 %v2683
  %2715 = vmatpush1.bf16.msra.mxu0 %v2682
  %2716 = vmatprep.subr.bf16.mxu0 %v2685
  %2717 = vmatpush1.bf16.msra.mxu0 %v2684
  %2718 = vmatprep.subr.bf16.mxu0 0
  %2719 = vmatpush1.bf16.msra.mxu0 0
  %2720 = vmatprep.subr.bf16.mxu0 0
  %2721 = vmatpush1.bf16.msra.mxu0 0
  %2722 = vmatprep.subr.bf16.mxu0 0
  %2723 = vmatpush1.bf16.msra.mxu0 0
  %2724 = vmatprep.subr.bf16.mxu0 0
  %2725 = vmatpush1.bf16.msra.mxu0 0
  %2726 = vmatprep.subr.bf16.mxu0 0
  %2727 = vmatpush1.bf16.msra.mxu0 0
  %2728 = vmatprep.subr.bf16.mxu0 0
  %2729 = vmatpush1.bf16.msra.mxu0 0
  %2730 = vmatprep.subr.bf16.mxu0 0
  %2731 = vmatpush1.bf16.msra.mxu0 0
  %2732 = vmatprep.subr.bf16.mxu0 0
  %2733 = vmatpush1.bf16.msra.mxu0 0
  %2734 = vmatprep.mubr.bf16.mxu0 0
  %2735 = vmatmul.mubr.bf16.gmra.mrb[0].mxu0 %v1562
  %v2736 = vpop.f32.mrb[0].mxu0
  %v2737 = vadd.f32 0.0, %v2736
  %v2738 = vpop.f32.mrb[0].mxu0
  %v2739 = vadd.f32 0.0, %v2738
  %v2740 = vpop.f32.mrb[0].mxu0
  %v2741 = vadd.f32 0.0, %v2740
  %v2742 = vpop.f32.mrb[0].mxu0
  %v2743 = vadd.f32 0.0, %v2742
  %2744 = vmatprep.mubr.bf16.mxu0 0
  %2745 = vmatmul.mubr.bf16.gmra.mrb[0].mxu0 %v1563
  %v2746 = vpop.f32.mrb[0].mxu0
  %v2747 = vadd.f32 0.0, %v2746
  %v2748 = vpop.f32.mrb[0].mxu0
  %v2749 = vadd.f32 0.0, %v2748
  %v2750 = vpop.f32.mrb[0].mxu0
  %v2751 = vadd.f32 0.0, %v2750
  %v2752 = vpop.f32.mrb[0].mxu0
  %v2753 = vadd.f32 0.0, %v2752
  %2754 = vmatprep.mubr.bf16.mxu0 0
  %2755 = vmatmul.mubr.bf16.gmra.mrb[0].mxu0 %v1564
  %v2756 = vpop.f32.mrb[0].mxu0
  %v2757 = vadd.f32 0.0, %v2756
  %v2758 = vpop.f32.mrb[0].mxu0
  %v2759 = vadd.f32 0.0, %v2758
  %v2760 = vpop.f32.mrb[0].mxu0
  %v2761 = vadd.f32 0.0, %v2760
  %v2762 = vpop.f32.mrb[0].mxu0
  %v2763 = vadd.f32 0.0, %v2762
  %2764 = vmatprep.mubr.bf16.mxu0 0
  %2765 = vmatmul.mubr.bf16.gmra.mrb[0].mxu0 %v1565
  %v2766 = vpop.f32.mrb[0].mxu0
  %v2767 = vadd.f32 0.0, %v2766
  %v2768 = vpop.f32.mrb[0].mxu0
  %v2769 = vadd.f32 0.0, %v2768
  %v2770 = vpop.f32.mrb[0].mxu0
  %v2771 = vadd.f32 0.0, %v2770
  %v2772 = vpop.f32.mrb[0].mxu0
  %v2773 = vadd.f32 0.0, %v2772
  %2774 = vmatprep.mubr.bf16.mxu0 0
  %2775 = vmatmul.mubr.bf16.gmra.mrb[0].mxu0 %v1566
  %v2776 = vpop.f32.mrb[0].mxu0
  %v2777 = vadd.f32 0.0, %v2776
  %v2778 = vpop.f32.mrb[0].mxu0
  %v2779 = vadd.f32 0.0, %v2778
  %v2780 = vpop.f32.mrb[0].mxu0
  %v2781 = vadd.f32 0.0, %v2780
  %v2782 = vpop.f32.mrb[0].mxu0
  %v2783 = vadd.f32 0.0, %v2782
  %2784 = vmatprep.mubr.bf16.mxu0 0
  %2785 = vmatmul.mubr.bf16.gmra.mrb[0].mxu0 %v1567
  %v2786 = vpop.f32.mrb[0].mxu0
  %v2787 = vadd.f32 0.0, %v2786
  %v2788 = vpop.f32.mrb[0].mxu0
  %v2789 = vadd.f32 0.0, %v2788
  %v2790 = vpop.f32.mrb[0].mxu0
  %v2791 = vadd.f32 0.0, %v2790
  %v2792 = vpop.f32.mrb[0].mxu0
  %v2793 = vadd.f32 0.0, %v2792
  %2794 = vmatprep.mubr.bf16.mxu0 0
  %2795 = vmatmul.mubr.bf16.gmra.mrb[0].mxu0 %v1568
  %v2796 = vpop.f32.mrb[0].mxu0
  %v2797 = vadd.f32 0.0, %v2796
  %v2798 = vpop.f32.mrb[0].mxu0
  %v2799 = vadd.f32 0.0, %v2798
  %v2800 = vpop.f32.mrb[0].mxu0
  %v2801 = vadd.f32 0.0, %v2800
  %v2802 = vpop.f32.mrb[0].mxu0
  %v2803 = vadd.f32 0.0, %v2802
  %2804 = vmatprep.mubr.bf16.mxu0 0
  %2805 = vmatmul.mubr.bf16.gmra.mrb[0].mxu0 %v1569
  %v2806 = vpop.f32.mrb[0].mxu0
  %v2807 = vadd.f32 0.0, %v2806
  %v2808 = vpop.f32.mrb[0].mxu0
  %v2809 = vadd.f32 0.0, %v2808
  %v2810 = vpop.f32.mrb[0].mxu0
  %v2811 = vadd.f32 0.0, %v2810
  %v2812 = vpop.f32.mrb[0].mxu0
  %v2813 = vadd.f32 0.0, %v2812
  %2814 = vdwg.mxu0
  %v2815 = vadd.f32 %v2573, %v2737
  %v2816 = vadd.f32 %v2574, %v2739
  %v2817 = vadd.f32 %v2575, %v2741
  %v2818 = vadd.f32 %v2576, %v2743
  %v2819 = vadd.f32 %v2577, %v2747
  %v2820 = vadd.f32 %v2578, %v2749
  %v2821 = vadd.f32 %v2579, %v2751
  %v2822 = vadd.f32 %v2580, %v2753
  %v2823 = vadd.f32 %v2581, %v2757
  %v2824 = vadd.f32 %v2582, %v2759
  %v2825 = vadd.f32 %v2583, %v2761
  %v2826 = vadd.f32 %v2584, %v2763
  %v2827 = vadd.f32 %v2585, %v2767
  %v2828 = vadd.f32 %v2586, %v2769
  %v2829 = vadd.f32 %v2587, %v2771
  %v2830 = vadd.f32 %v2588, %v2773
  %v2831 = vadd.f32 %v2589, %v2777
  %v2832 = vadd.f32 %v2590, %v2779
  %v2833 = vadd.f32 %v2591, %v2781
  %v2834 = vadd.f32 %v2592, %v2783
  %v2835 = vadd.f32 %v2593, %v2787
  %v2836 = vadd.f32 %v2594, %v2789
  %v2837 = vadd.f32 %v2595, %v2791
  %v2838 = vadd.f32 %v2596, %v2793
  %v2839 = vadd.f32 %v2597, %v2797
  %v2840 = vadd.f32 %v2598, %v2799
  %v2841 = vadd.f32 %v2599, %v2801
  %v2842 = vadd.f32 %v2600, %v2803
  %v2843 = vadd.f32 %v2601, %v2807
  %v2844 = vadd.f32 %v2602, %v2809
  %v2845 = vadd.f32 %v2603, %v2811
  %v2846 = vadd.f32 %v2604, %v2813
  %2847 = vmatprep.subr.bf16.mxu0 %v1784
  %2848 = vmatpush1.bf16.msra.mxu0 %v1783
  %2849 = vmatprep.subr.bf16.mxu0 %v1786
  %2850 = vmatpush1.bf16.msra.mxu0 %v1785
  %2851 = vmatprep.subr.bf16.mxu0 %v1788
  %2852 = vmatpush1.bf16.msra.mxu0 %v1787
  %2853 = vmatprep.subr.bf16.mxu0 %v1790
  %2854 = vmatpush1.bf16.msra.mxu0 %v1789
  %2855 = vmatprep.subr.bf16.mxu0 %v1792
  %2856 = vmatpush1.bf16.msra.mxu0 %v1791
  %2857 = vmatprep.subr.bf16.mxu0 %v1794
  %2858 = vmatpush1.bf16.msra.mxu0 %v1793
  %2859 = vmatprep.subr.bf16.mxu0 %v1796
  %2860 = vmatpush1.bf16.msra.mxu0 %v1795
  %2861 = vmatprep.subr.bf16.mxu0 %v1798
  %2862 = vmatpush1.bf16.msra.mxu0 %v1797
  %2863 = vmatprep.subr.bf16.mxu0 0
  %2864 = vmatpush1.bf16.msra.mxu0 0
  %2865 = vmatprep.subr.bf16.mxu0 0
  %2866 = vmatpush1.bf16.msra.mxu0 0
  %2867 = vmatprep.subr.bf16.mxu0 0
  %2868 = vmatpush1.bf16.msra.mxu0 0
  %2869 = vmatprep.subr.bf16.mxu0 0
  %2870 = vmatpush1.bf16.msra.mxu0 0
  %2871 = vmatprep.subr.bf16.mxu0 0
  %2872 = vmatpush1.bf16.msra.mxu0 0
  %2873 = vmatprep.subr.bf16.mxu0 0
  %2874 = vmatpush1.bf16.msra.mxu0 0
  %2875 = vmatprep.subr.bf16.mxu0 0
  %2876 = vmatpush1.bf16.msra.mxu0 0
  %2877 = vmatprep.subr.bf16.mxu0 0
  %2878 = vmatpush1.bf16.msra.mxu0 0
  %2879 = vmatprep.mubr.bf16.mxu0 0
  %2880 = vmatmul.mubr.bf16.gmra.mrb[0].mxu0 %v1560
  %v2881 = vpop.f32.mrb[0].mxu0
  %v2882 = vadd.f32 0.0, %v2881
  %v2883 = vpop.f32.mrb[0].mxu0
  %v2884 = vadd.f32 0.0, %v2883
  %v2885 = vpop.f32.mrb[0].mxu0
  %v2886 = vadd.f32 0.0, %v2885
  %v2887 = vpop.f32.mrb[0].mxu0
  %v2888 = vadd.f32 0.0, %v2887
  %2889 = vmatprep.mubr.bf16.mxu0 0
  %2890 = vmatmul.mubr.bf16.gmra.mrb[0].mxu0 %v1561
  %v2891 = vpop.f32.mrb[0].mxu0
  %v2892 = vadd.f32 0.0, %v2891
  %v2893 = vpop.f32.mrb[0].mxu0
  %v2894 = vadd.f32 0.0, %v2893
  %v2895 = vpop.f32.mrb[0].mxu0
  %v2896 = vadd.f32 0.0, %v2895
  %v2897 = vpop.f32.mrb[0].mxu0
  %v2898 = vadd.f32 0.0, %v2897
  %2899 = vmatprep.mubr.bf16.mxu0 0
  %2900 = vmatmul.mubr.bf16.gmra.mrb[0].mxu0 %v1562
  %v2901 = vpop.f32.mrb[0].mxu0
  %v2902 = vadd.f32 0.0, %v2901
  %v2903 = vpop.f32.mrb[0].mxu0
  %v2904 = vadd.f32 0.0, %v2903
  %v2905 = vpop.f32.mrb[0].mxu0
  %v2906 = vadd.f32 0.0, %v2905
  %v2907 = vpop.f32.mrb[0].mxu0
  %v2908 = vadd.f32 0.0, %v2907
  %2909 = vmatprep.mubr.bf16.mxu0 0
  %2910 = vmatmul.mubr.bf16.gmra.mrb[0].mxu0 %v1563
  %v2911 = vpop.f32.mrb[0].mxu0
  %v2912 = vadd.f32 0.0, %v2911
  %v2913 = vpop.f32.mrb[0].mxu0
  %v2914 = vadd.f32 0.0, %v2913
  %v2915 = vpop.f32.mrb[0].mxu0
  %v2916 = vadd.f32 0.0, %v2915
  %v2917 = vpop.f32.mrb[0].mxu0
  %v2918 = vadd.f32 0.0, %v2917
  %2919 = vmatprep.mubr.bf16.mxu0 0
  %2920 = vmatmul.mubr.bf16.gmra.mrb[0].mxu0 %v1564
  %v2921 = vpop.f32.mrb[0].mxu0
  %v2922 = vadd.f32 0.0, %v2921
  %v2923 = vpop.f32.mrb[0].mxu0
  %v2924 = vadd.f32 0.0, %v2923
  %v2925 = vpop.f32.mrb[0].mxu0
  %v2926 = vadd.f32 0.0, %v2925
  %v2927 = vpop.f32.mrb[0].mxu0
  %v2928 = vadd.f32 0.0, %v2927
  %2929 = vmatprep.mubr.bf16.mxu0 0
  %2930 = vmatmul.mubr.bf16.gmra.mrb[0].mxu0 %v1565
  %v2931 = vpop.f32.mrb[0].mxu0
  %v2932 = vadd.f32 0.0, %v2931
  %v2933 = vpop.f32.mrb[0].mxu0
  %v2934 = vadd.f32 0.0, %v2933
  %v2935 = vpop.f32.mrb[0].mxu0
  %v2936 = vadd.f32 0.0, %v2935
  %v2937 = vpop.f32.mrb[0].mxu0
  %v2938 = vadd.f32 0.0, %v2937
  %2939 = vmatprep.mubr.bf16.mxu0 0
  %2940 = vmatmul.mubr.bf16.gmra.mrb[0].mxu0 %v1566
  %v2941 = vpop.f32.mrb[0].mxu0
  %v2942 = vadd.f32 0.0, %v2941
  %v2943 = vpop.f32.mrb[0].mxu0
  %v2944 = vadd.f32 0.0, %v2943
  %v2945 = vpop.f32.mrb[0].mxu0
  %v2946 = vadd.f32 0.0, %v2945
  %v2947 = vpop.f32.mrb[0].mxu0
  %v2948 = vadd.f32 0.0, %v2947
  %2949 = vmatprep.mubr.bf16.mxu0 0
  %2950 = vmatmul.mubr.bf16.gmra.mrb[0].mxu0 %v1567
  %v2951 = vpop.f32.mrb[0].mxu0
  %v2952 = vadd.f32 0.0, %v2951
  %v2953 = vpop.f32.mrb[0].mxu0
  %v2954 = vadd.f32 0.0, %v2953
  %v2955 = vpop.f32.mrb[0].mxu0
  %v2956 = vadd.f32 0.0, %v2955
  %v2957 = vpop.f32.mrb[0].mxu0
  %v2958 = vadd.f32 0.0, %v2957
  %2959 = vdwg.mxu0
  %2960 = vmatprep.subr.bf16.mxu0 %v1977
  %2961 = vmatpush1.bf16.msra.mxu0 %v1976
  %2962 = vmatprep.subr.bf16.mxu0 %v1979
  %2963 = vmatpush1.bf16.msra.mxu0 %v1978
  %2964 = vmatprep.subr.bf16.mxu0 %v1981
  %2965 = vmatpush1.bf16.msra.mxu0 %v1980
  %2966 = vmatprep.subr.bf16.mxu0 %v1983
  %2967 = vmatpush1.bf16.msra.mxu0 %v1982
  %2968 = vmatprep.subr.bf16.mxu0 %v1985
  %2969 = vmatpush1.bf16.msra.mxu0 %v1984
  %2970 = vmatprep.subr.bf16.mxu0 %v1987
  %2971 = vmatpush1.bf16.msra.mxu0 %v1986
  %2972 = vmatprep.subr.bf16.mxu0 %v1989
  %2973 = vmatpush1.bf16.msra.mxu0 %v1988
  %2974 = vmatprep.subr.bf16.mxu0 %v1991
  %2975 = vmatpush1.bf16.msra.mxu0 %v1990
  %2976 = vmatprep.subr.bf16.mxu0 0
  %2977 = vmatpush1.bf16.msra.mxu0 0
  %2978 = vmatprep.subr.bf16.mxu0 0
  %2979 = vmatpush1.bf16.msra.mxu0 0
  %2980 = vmatprep.subr.bf16.mxu0 0
  %2981 = vmatpush1.bf16.msra.mxu0 0
  %2982 = vmatprep.subr.bf16.mxu0 0
  %2983 = vmatpush1.bf16.msra.mxu0 0
  %2984 = vmatprep.subr.bf16.mxu0 0
  %2985 = vmatpush1.bf16.msra.mxu0 0
  %2986 = vmatprep.subr.bf16.mxu0 0
  %2987 = vmatpush1.bf16.msra.mxu0 0
  %2988 = vmatprep.subr.bf16.mxu0 0
  %2989 = vmatpush1.bf16.msra.mxu0 0
  %2990 = vmatprep.subr.bf16.mxu0 0
  %2991 = vmatpush1.bf16.msra.mxu0 0
  %2992 = vmatprep.mubr.bf16.mxu0 0
  %2993 = vmatmul.mubr.bf16.gmra.mrb[0].mxu0 %v1690
  %v2994 = vpop.f32.mrb[0].mxu0
  %v2995 = vadd.f32 %v2882, %v2994
  %v2996 = vpop.f32.mrb[0].mxu0
  %v2997 = vadd.f32 %v2884, %v2996
  %v2998 = vpop.f32.mrb[0].mxu0
  %v2999 = vadd.f32 %v2886, %v2998
  %v3000 = vpop.f32.mrb[0].mxu0
  %v3001 = vadd.f32 %v2888, %v3000
  %3002 = vmatprep.mubr.bf16.mxu0 0
  %3003 = vmatmul.mubr.bf16.gmra.mrb[0].mxu0 %v1691
  %v3004 = vpop.f32.mrb[0].mxu0
  %v3005 = vadd.f32 %v2892, %v3004
  %v3006 = vpop.f32.mrb[0].mxu0
  %v3007 = vadd.f32 %v2894, %v3006
  %v3008 = vpop.f32.mrb[0].mxu0
  %v3009 = vadd.f32 %v2896, %v3008
  %v3010 = vpop.f32.mrb[0].mxu0
  %v3011 = vadd.f32 %v2898, %v3010
  %3012 = vmatprep.mubr.bf16.mxu0 0
  %3013 = vmatmul.mubr.bf16.gmra.mrb[0].mxu0 %v1692
  %v3014 = vpop.f32.mrb[0].mxu0
  %v3015 = vadd.f32 %v2902, %v3014
  %v3016 = vpop.f32.mrb[0].mxu0
  %v3017 = vadd.f32 %v2904, %v3016
  %v3018 = vpop.f32.mrb[0].mxu0
  %v3019 = vadd.f32 %v2906, %v3018
  %v3020 = vpop.f32.mrb[0].mxu0
  %v3021 = vadd.f32 %v2908, %v3020
  %3022 = vmatprep.mubr.bf16.mxu0 0
  %3023 = vmatmul.mubr.bf16.gmra.mrb[0].mxu0 %v1693
  %v3024 = vpop.f32.mrb[0].mxu0
  %v3025 = vadd.f32 %v2912, %v3024
  %v3026 = vpop.f32.mrb[0].mxu0
  %v3027 = vadd.f32 %v2914, %v3026
  %v3028 = vpop.f32.mrb[0].mxu0
  %v3029 = vadd.f32 %v2916, %v3028
  %v3030 = vpop.f32.mrb[0].mxu0
  %v3031 = vadd.f32 %v2918, %v3030
  %3032 = vmatprep.mubr.bf16.mxu0 0
  %3033 = vmatmul.mubr.bf16.gmra.mrb[0].mxu0 %v1694
  %v3034 = vpop.f32.mrb[0].mxu0
  %v3035 = vadd.f32 %v2922, %v3034
  %v3036 = vpop.f32.mrb[0].mxu0
  %v3037 = vadd.f32 %v2924, %v3036
  %v3038 = vpop.f32.mrb[0].mxu0
  %v3039 = vadd.f32 %v2926, %v3038
  %v3040 = vpop.f32.mrb[0].mxu0
  %v3041 = vadd.f32 %v2928, %v3040
  %3042 = vmatprep.mubr.bf16.mxu0 0
  %3043 = vmatmul.mubr.bf16.gmra.mrb[0].mxu0 %v1695
  %v3044 = vpop.f32.mrb[0].mxu0
  %v3045 = vadd.f32 %v2932, %v3044
  %v3046 = vpop.f32.mrb[0].mxu0
  %v3047 = vadd.f32 %v2934, %v3046
  %v3048 = vpop.f32.mrb[0].mxu0
  %v3049 = vadd.f32 %v2936, %v3048
  %v3050 = vpop.f32.mrb[0].mxu0
  %v3051 = vadd.f32 %v2938, %v3050
  %3052 = vmatprep.mubr.bf16.mxu0 0
  %3053 = vmatmul.mubr.bf16.gmra.mrb[0].mxu0 %v1696
  %v3054 = vpop.f32.mrb[0].mxu0
  %v3055 = vadd.f32 %v2942, %v3054
  %v3056 = vpop.f32.mrb[0].mxu0
  %v3057 = vadd.f32 %v2944, %v3056
  %v3058 = vpop.f32.mrb[0].mxu0
  %v3059 = vadd.f32 %v2946, %v3058
  %v3060 = vpop.f32.mrb[0].mxu0
  %v3061 = vadd.f32 %v2948, %v3060
  %3062 = vmatprep.mubr.bf16.mxu0 0
  %3063 = vmatmul.mubr.bf16.gmra.mrb[0].mxu0 %v1697
  %v3064 = vpop.f32.mrb[0].mxu0
  %v3065 = vadd.f32 %v2952, %v3064
  %v3066 = vpop.f32.mrb[0].mxu0
  %v3067 = vadd.f32 %v2954, %v3066
  %v3068 = vpop.f32.mrb[0].mxu0
  %v3069 = vadd.f32 %v2956, %v3068
  %v3070 = vpop.f32.mrb[0].mxu0
  %v3071 = vadd.f32 %v2958, %v3070
  %3072 = vdwg.mxu0
  %3073 = vmatprep.subr.bf16.mxu0 %v2187
  %3074 = vmatpush1.bf16.msra.mxu0 %v2186
  %3075 = vmatprep.subr.bf16.mxu0 %v2189
  %3076 = vmatpush1.bf16.msra.mxu0 %v2188
  %3077 = vmatprep.subr.bf16.mxu0 %v2191
  %3078 = vmatpush1.bf16.msra.mxu0 %v2190
  %3079 = vmatprep.subr.bf16.mxu0 %v2193
  %3080 = vmatpush1.bf16.msra.mxu0 %v2192
  %3081 = vmatprep.subr.bf16.mxu0 %v2195
  %3082 = vmatpush1.bf16.msra.mxu0 %v2194
  %3083 = vmatprep.subr.bf16.mxu0 %v2197
  %3084 = vmatpush1.bf16.msra.mxu0 %v2196
  %3085 = vmatprep.subr.bf16.mxu0 %v2199
  %3086 = vmatpush1.bf16.msra.mxu0 %v2198
  %3087 = vmatprep.subr.bf16.mxu0 %v2201
  %3088 = vmatpush1.bf16.msra.mxu0 %v2200
  %3089 = vmatprep.subr.bf16.mxu0 0
  %3090 = vmatpush1.bf16.msra.mxu0 0
  %3091 = vmatprep.subr.bf16.mxu0 0
  %3092 = vmatpush1.bf16.msra.mxu0 0
  %3093 = vmatprep.subr.bf16.mxu0 0
  %3094 = vmatpush1.bf16.msra.mxu0 0
  %3095 = vmatprep.subr.bf16.mxu0 0
  %3096 = vmatpush1.bf16.msra.mxu0 0
  %3097 = vmatprep.subr.bf16.mxu0 0
  %3098 = vmatpush1.bf16.msra.mxu0 0
  %3099 = vmatprep.subr.bf16.mxu0 0
  %3100 = vmatpush1.bf16.msra.mxu0 0
  %3101 = vmatprep.subr.bf16.mxu0 0
  %3102 = vmatpush1.bf16.msra.mxu0 0
  %3103 = vmatprep.subr.bf16.mxu0 0
  %3104 = vmatpush1.bf16.msra.mxu0 0
  %3105 = vmatprep.mubr.bf16.mxu0 0
  %3106 = vmatmul.mubr.bf16.gmra.mrb[0].mxu0 %v1692
  %v3107 = vpop.f32.mrb[0].mxu0
  %v3108 = vadd.f32 0.0, %v3107
  %v3109 = vpop.f32.mrb[0].mxu0
  %v3110 = vadd.f32 0.0, %v3109
  %v3111 = vpop.f32.mrb[0].mxu0
  %v3112 = vadd.f32 0.0, %v3111
  %v3113 = vpop.f32.mrb[0].mxu0
  %v3114 = vadd.f32 0.0, %v3113
  %3115 = vmatprep.mubr.bf16.mxu0 0
  %3116 = vmatmul.mubr.bf16.gmra.mrb[0].mxu0 %v1693
  %v3117 = vpop.f32.mrb[0].mxu0
  %v3118 = vadd.f32 0.0, %v3117
  %v3119 = vpop.f32.mrb[0].mxu0
  %v3120 = vadd.f32 0.0, %v3119
  %v3121 = vpop.f32.mrb[0].mxu0
  %v3122 = vadd.f32 0.0, %v3121
  %v3123 = vpop.f32.mrb[0].mxu0
  %v3124 = vadd.f32 0.0, %v3123
  %3125 = vmatprep.mubr.bf16.mxu0 0
  %3126 = vmatmul.mubr.bf16.gmra.mrb[0].mxu0 %v1694
  %v3127 = vpop.f32.mrb[0].mxu0
  %v3128 = vadd.f32 0.0, %v3127
  %v3129 = vpop.f32.mrb[0].mxu0
  %v3130 = vadd.f32 0.0, %v3129
  %v3131 = vpop.f32.mrb[0].mxu0
  %v3132 = vadd.f32 0.0, %v3131
  %v3133 = vpop.f32.mrb[0].mxu0
  %v3134 = vadd.f32 0.0, %v3133
  %3135 = vmatprep.mubr.bf16.mxu0 0
  %3136 = vmatmul.mubr.bf16.gmra.mrb[0].mxu0 %v1695
  %v3137 = vpop.f32.mrb[0].mxu0
  %v3138 = vadd.f32 0.0, %v3137
  %v3139 = vpop.f32.mrb[0].mxu0
  %v3140 = vadd.f32 0.0, %v3139
  %v3141 = vpop.f32.mrb[0].mxu0
  %v3142 = vadd.f32 0.0, %v3141
  %v3143 = vpop.f32.mrb[0].mxu0
  %v3144 = vadd.f32 0.0, %v3143
  %3145 = vmatprep.mubr.bf16.mxu0 0
  %3146 = vmatmul.mubr.bf16.gmra.mrb[0].mxu0 %v1696
  %v3147 = vpop.f32.mrb[0].mxu0
  %v3148 = vadd.f32 0.0, %v3147
  %v3149 = vpop.f32.mrb[0].mxu0
  %v3150 = vadd.f32 0.0, %v3149
  %v3151 = vpop.f32.mrb[0].mxu0
  %v3152 = vadd.f32 0.0, %v3151
  %v3153 = vpop.f32.mrb[0].mxu0
  %v3154 = vadd.f32 0.0, %v3153
  %3155 = vmatprep.mubr.bf16.mxu0 0
  %3156 = vmatmul.mubr.bf16.gmra.mrb[0].mxu0 %v1697
  %v3157 = vpop.f32.mrb[0].mxu0
  %v3158 = vadd.f32 0.0, %v3157
  %v3159 = vpop.f32.mrb[0].mxu0
  %v3160 = vadd.f32 0.0, %v3159
  %v3161 = vpop.f32.mrb[0].mxu0
  %v3162 = vadd.f32 0.0, %v3161
  %v3163 = vpop.f32.mrb[0].mxu0
  %v3164 = vadd.f32 0.0, %v3163
  %3165 = vmatprep.mubr.bf16.mxu0 0
  %3166 = vmatmul.mubr.bf16.gmra.mrb[0].mxu0 %v1698
  %v3167 = vpop.f32.mrb[0].mxu0
  %v3168 = vadd.f32 0.0, %v3167
  %v3169 = vpop.f32.mrb[0].mxu0
  %v3170 = vadd.f32 0.0, %v3169
  %v3171 = vpop.f32.mrb[0].mxu0
  %v3172 = vadd.f32 0.0, %v3171
  %v3173 = vpop.f32.mrb[0].mxu0
  %v3174 = vadd.f32 0.0, %v3173
  %3175 = vmatprep.mubr.bf16.mxu0 0
  %3176 = vmatmul.mubr.bf16.gmra.mrb[0].mxu0 %v1699
  %v3177 = vpop.f32.mrb[0].mxu0
  %v3178 = vadd.f32 0.0, %v3177
  %v3179 = vpop.f32.mrb[0].mxu0
  %v3180 = vadd.f32 0.0, %v3179
  %v3181 = vpop.f32.mrb[0].mxu0
  %v3182 = vadd.f32 0.0, %v3181
  %v3183 = vpop.f32.mrb[0].mxu0
  %v3184 = vadd.f32 0.0, %v3183
  %3185 = vdwg.mxu0
  %v3186 = vadd.f32 %v2995, %v3108
  %v3187 = vadd.f32 %v2997, %v3110
  %v3188 = vadd.f32 %v2999, %v3112
  %v3189 = vadd.f32 %v3001, %v3114
  %v3190 = vadd.f32 %v3005, %v3118
  %v3191 = vadd.f32 %v3007, %v3120
  %v3192 = vadd.f32 %v3009, %v3122
  %v3193 = vadd.f32 %v3011, %v3124
  %v3194 = vadd.f32 %v3015, %v3128
  %v3195 = vadd.f32 %v3017, %v3130
  %v3196 = vadd.f32 %v3019, %v3132
  %v3197 = vadd.f32 %v3021, %v3134
  %v3198 = vadd.f32 %v3025, %v3138
  %v3199 = vadd.f32 %v3027, %v3140
  %v3200 = vadd.f32 %v3029, %v3142
  %v3201 = vadd.f32 %v3031, %v3144
  %v3202 = vadd.f32 %v3035, %v3148
  %v3203 = vadd.f32 %v3037, %v3150
  %v3204 = vadd.f32 %v3039, %v3152
  %v3205 = vadd.f32 %v3041, %v3154
  %v3206 = vadd.f32 %v3045, %v3158
  %v3207 = vadd.f32 %v3047, %v3160
  %v3208 = vadd.f32 %v3049, %v3162
  %v3209 = vadd.f32 %v3051, %v3164
  %v3210 = vadd.f32 %v3055, %v3168
  %v3211 = vadd.f32 %v3057, %v3170
  %v3212 = vadd.f32 %v3059, %v3172
  %v3213 = vadd.f32 %v3061, %v3174
  %v3214 = vadd.f32 %v3065, %v3178
  %v3215 = vadd.f32 %v3067, %v3180
  %v3216 = vadd.f32 %v3069, %v3182
  %v3217 = vadd.f32 %v3071, %v3184
  %3218 = vmatprep.subr.bf16.mxu0 %v2429
  %3219 = vmatpush1.bf16.msra.mxu0 %v2428
  %3220 = vmatprep.subr.bf16.mxu0 %v2431
  %3221 = vmatpush1.bf16.msra.mxu0 %v2430
  %3222 = vmatprep.subr.bf16.mxu0 %v2433
  %3223 = vmatpush1.bf16.msra.mxu0 %v2432
  %3224 = vmatprep.subr.bf16.mxu0 %v2435
  %3225 = vmatpush1.bf16.msra.mxu0 %v2434
  %3226 = vmatprep.subr.bf16.mxu0 %v2437
  %3227 = vmatpush1.bf16.msra.mxu0 %v2436
  %3228 = vmatprep.subr.bf16.mxu0 %v2439
  %3229 = vmatpush1.bf16.msra.mxu0 %v2438
  %3230 = vmatprep.subr.bf16.mxu0 %v2441
  %3231 = vmatpush1.bf16.msra.mxu0 %v2440
  %3232 = vmatprep.subr.bf16.mxu0 %v2443
  %3233 = vmatpush1.bf16.msra.mxu0 %v2442
  %3234 = vmatprep.subr.bf16.mxu0 0
  %3235 = vmatpush1.bf16.msra.mxu0 0
  %3236 = vmatprep.subr.bf16.mxu0 0
  %3237 = vmatpush1.bf16.msra.mxu0 0
  %3238 = vmatprep.subr.bf16.mxu0 0
  %3239 = vmatpush1.bf16.msra.mxu0 0
  %3240 = vmatprep.subr.bf16.mxu0 0
  %3241 = vmatpush1.bf16.msra.mxu0 0
  %3242 = vmatprep.subr.bf16.mxu0 0
  %3243 = vmatpush1.bf16.msra.mxu0 0
  %3244 = vmatprep.subr.bf16.mxu0 0
  %3245 = vmatpush1.bf16.msra.mxu0 0
  %3246 = vmatprep.subr.bf16.mxu0 0
  %3247 = vmatpush1.bf16.msra.mxu0 0
  %3248 = vmatprep.subr.bf16.mxu0 0
  %3249 = vmatpush1.bf16.msra.mxu0 0
  %3250 = vmatprep.mubr.bf16.mxu0 0
  %3251 = vmatmul.mubr.bf16.gmra.mrb[0].mxu0 %v1562
  %v3252 = vpop.f32.mrb[0].mxu0
  %v3253 = vadd.f32 0.0, %v3252
  %v3254 = vpop.f32.mrb[0].mxu0
  %v3255 = vadd.f32 0.0, %v3254
  %v3256 = vpop.f32.mrb[0].mxu0
  %v3257 = vadd.f32 0.0, %v3256
  %v3258 = vpop.f32.mrb[0].mxu0
  %v3259 = vadd.f32 0.0, %v3258
  %3260 = vmatprep.mubr.bf16.mxu0 0
  %3261 = vmatmul.mubr.bf16.gmra.mrb[0].mxu0 %v1563
  %v3262 = vpop.f32.mrb[0].mxu0
  %v3263 = vadd.f32 0.0, %v3262
  %v3264 = vpop.f32.mrb[0].mxu0
  %v3265 = vadd.f32 0.0, %v3264
  %v3266 = vpop.f32.mrb[0].mxu0
  %v3267 = vadd.f32 0.0, %v3266
  %v3268 = vpop.f32.mrb[0].mxu0
  %v3269 = vadd.f32 0.0, %v3268
  %3270 = vmatprep.mubr.bf16.mxu0 0
  %3271 = vmatmul.mubr.bf16.gmra.mrb[0].mxu0 %v1564
  %v3272 = vpop.f32.mrb[0].mxu0
  %v3273 = vadd.f32 0.0, %v3272
  %v3274 = vpop.f32.mrb[0].mxu0
  %v3275 = vadd.f32 0.0, %v3274
  %v3276 = vpop.f32.mrb[0].mxu0
  %v3277 = vadd.f32 0.0, %v3276
  %v3278 = vpop.f32.mrb[0].mxu0
  %v3279 = vadd.f32 0.0, %v3278
  %3280 = vmatprep.mubr.bf16.mxu0 0
  %3281 = vmatmul.mubr.bf16.gmra.mrb[0].mxu0 %v1565
  %v3282 = vpop.f32.mrb[0].mxu0
  %v3283 = vadd.f32 0.0, %v3282
  %v3284 = vpop.f32.mrb[0].mxu0
  %v3285 = vadd.f32 0.0, %v3284
  %v3286 = vpop.f32.mrb[0].mxu0
  %v3287 = vadd.f32 0.0, %v3286
  %v3288 = vpop.f32.mrb[0].mxu0
  %v3289 = vadd.f32 0.0, %v3288
  %3290 = vmatprep.mubr.bf16.mxu0 0
  %3291 = vmatmul.mubr.bf16.gmra.mrb[0].mxu0 %v1566
  %v3292 = vpop.f32.mrb[0].mxu0
  %v3293 = vadd.f32 0.0, %v3292
  %v3294 = vpop.f32.mrb[0].mxu0
  %v3295 = vadd.f32 0.0, %v3294
  %v3296 = vpop.f32.mrb[0].mxu0
  %v3297 = vadd.f32 0.0, %v3296
  %v3298 = vpop.f32.mrb[0].mxu0
  %v3299 = vadd.f32 0.0, %v3298
  %3300 = vmatprep.mubr.bf16.mxu0 0
  %3301 = vmatmul.mubr.bf16.gmra.mrb[0].mxu0 %v1567
  %v3302 = vpop.f32.mrb[0].mxu0
  %v3303 = vadd.f32 0.0, %v3302
  %v3304 = vpop.f32.mrb[0].mxu0
  %v3305 = vadd.f32 0.0, %v3304
  %v3306 = vpop.f32.mrb[0].mxu0
  %v3307 = vadd.f32 0.0, %v3306
  %v3308 = vpop.f32.mrb[0].mxu0
  %v3309 = vadd.f32 0.0, %v3308
  %3310 = vmatprep.mubr.bf16.mxu0 0
  %3311 = vmatmul.mubr.bf16.gmra.mrb[0].mxu0 %v1568
  %v3312 = vpop.f32.mrb[0].mxu0
  %v3313 = vadd.f32 0.0, %v3312
  %v3314 = vpop.f32.mrb[0].mxu0
  %v3315 = vadd.f32 0.0, %v3314
  %v3316 = vpop.f32.mrb[0].mxu0
  %v3317 = vadd.f32 0.0, %v3316
  %v3318 = vpop.f32.mrb[0].mxu0
  %v3319 = vadd.f32 0.0, %v3318
  %3320 = vmatprep.mubr.bf16.mxu0 0
  %3321 = vmatmul.mubr.bf16.gmra.mrb[0].mxu0 %v1569
  %v3322 = vpop.f32.mrb[0].mxu0
  %v3323 = vadd.f32 0.0, %v3322
  %v3324 = vpop.f32.mrb[0].mxu0
  %v3325 = vadd.f32 0.0, %v3324
  %v3326 = vpop.f32.mrb[0].mxu0
  %v3327 = vadd.f32 0.0, %v3326
  %v3328 = vpop.f32.mrb[0].mxu0
  %v3329 = vadd.f32 0.0, %v3328
  %3330 = vdwg.mxu0
  %v3331 = vadd.f32 %v3186, %v3253
  %v3332 = vadd.f32 %v3187, %v3255
  %v3333 = vadd.f32 %v3188, %v3257
  %v3334 = vadd.f32 %v3189, %v3259
  %v3335 = vadd.f32 %v3190, %v3263
  %v3336 = vadd.f32 %v3191, %v3265
  %v3337 = vadd.f32 %v3192, %v3267
  %v3338 = vadd.f32 %v3193, %v3269
  %v3339 = vadd.f32 %v3194, %v3273
  %v3340 = vadd.f32 %v3195, %v3275
  %v3341 = vadd.f32 %v3196, %v3277
  %v3342 = vadd.f32 %v3197, %v3279
  %v3343 = vadd.f32 %v3198, %v3283
  %v3344 = vadd.f32 %v3199, %v3285
  %v3345 = vadd.f32 %v3200, %v3287
  %v3346 = vadd.f32 %v3201, %v3289
  %v3347 = vadd.f32 %v3202, %v3293
  %v3348 = vadd.f32 %v3203, %v3295
  %v3349 = vadd.f32 %v3204, %v3297
  %v3350 = vadd.f32 %v3205, %v3299
  %v3351 = vadd.f32 %v3206, %v3303
  %v3352 = vadd.f32 %v3207, %v3305
  %v3353 = vadd.f32 %v3208, %v3307
  %v3354 = vadd.f32 %v3209, %v3309
  %v3355 = vadd.f32 %v3210, %v3313
  %v3356 = vadd.f32 %v3211, %v3315
  %v3357 = vadd.f32 %v3212, %v3317
  %v3358 = vadd.f32 %v3213, %v3319
  %v3359 = vadd.f32 %v3214, %v3323
  %v3360 = vadd.f32 %v3215, %v3325
  %v3361 = vadd.f32 %v3216, %v3327
  %v3362 = vadd.f32 %v3217, %v3329
  %3363 = vmatprep.subr.bf16.mxu0 %v2671
  %3364 = vmatpush1.bf16.msra.mxu0 %v2670
  %3365 = vmatprep.subr.bf16.mxu0 %v2673
  %3366 = vmatpush1.bf16.msra.mxu0 %v2672
  %3367 = vmatprep.subr.bf16.mxu0 %v2675
  %3368 = vmatpush1.bf16.msra.mxu0 %v2674
  %3369 = vmatprep.subr.bf16.mxu0 %v2677
  %3370 = vmatpush1.bf16.msra.mxu0 %v2676
  %3371 = vmatprep.subr.bf16.mxu0 %v2679
  %3372 = vmatpush1.bf16.msra.mxu0 %v2678
  %3373 = vmatprep.subr.bf16.mxu0 %v2681
  %3374 = vmatpush1.bf16.msra.mxu0 %v2680
  %3375 = vmatprep.subr.bf16.mxu0 %v2683
  %3376 = vmatpush1.bf16.msra.mxu0 %v2682
  %3377 = vmatprep.subr.bf16.mxu0 %v2685
  %3378 = vmatpush1.bf16.msra.mxu0 %v2684
  %3379 = vmatprep.subr.bf16.mxu0 0
  %3380 = vmatpush1.bf16.msra.mxu0 0
  %3381 = vmatprep.subr.bf16.mxu0 0
  %3382 = vmatpush1.bf16.msra.mxu0 0
  %3383 = vmatprep.subr.bf16.mxu0 0
  %3384 = vmatpush1.bf16.msra.mxu0 0
  %3385 = vmatprep.subr.bf16.mxu0 0
  %3386 = vmatpush1.bf16.msra.mxu0 0
  %3387 = vmatprep.subr.bf16.mxu0 0
  %3388 = vmatpush1.bf16.msra.mxu0 0
  %3389 = vmatprep.subr.bf16.mxu0 0
  %3390 = vmatpush1.bf16.msra.mxu0 0
  %3391 = vmatprep.subr.bf16.mxu0 0
  %3392 = vmatpush1.bf16.msra.mxu0 0
  %3393 = vmatprep.subr.bf16.mxu0 0
  %3394 = vmatpush1.bf16.msra.mxu0 0
  %3395 = vmatprep.mubr.bf16.mxu0 0
  %3396 = vmatmul.mubr.bf16.gmra.mrb[0].mxu0 %v1694
  %v3397 = vpop.f32.mrb[0].mxu0
  %v3398 = vadd.f32 0.0, %v3397
  %v3399 = vpop.f32.mrb[0].mxu0
  %v3400 = vadd.f32 0.0, %v3399
  %v3401 = vpop.f32.mrb[0].mxu0
  %v3402 = vadd.f32 0.0, %v3401
  %v3403 = vpop.f32.mrb[0].mxu0
  %v3404 = vadd.f32 0.0, %v3403
  %3405 = vmatprep.mubr.bf16.mxu0 0
  %3406 = vmatmul.mubr.bf16.gmra.mrb[0].mxu0 %v1695
  %v3407 = vpop.f32.mrb[0].mxu0
  %v3408 = vadd.f32 0.0, %v3407
  %v3409 = vpop.f32.mrb[0].mxu0
  %v3410 = vadd.f32 0.0, %v3409
  %v3411 = vpop.f32.mrb[0].mxu0
  %v3412 = vadd.f32 0.0, %v3411
  %v3413 = vpop.f32.mrb[0].mxu0
  %v3414 = vadd.f32 0.0, %v3413
  %3415 = vmatprep.mubr.bf16.mxu0 0
  %3416 = vmatmul.mubr.bf16.gmra.mrb[0].mxu0 %v1696
  %v3417 = vpop.f32.mrb[0].mxu0
  %v3418 = vadd.f32 0.0, %v3417
  %v3419 = vpop.f32.mrb[0].mxu0
  %v3420 = vadd.f32 0.0, %v3419
  %v3421 = vpop.f32.mrb[0].mxu0
  %v3422 = vadd.f32 0.0, %v3421
  %v3423 = vpop.f32.mrb[0].mxu0
  %v3424 = vadd.f32 0.0, %v3423
  %3425 = vmatprep.mubr.bf16.mxu0 0
  %3426 = vmatmul.mubr.bf16.gmra.mrb[0].mxu0 %v1697
  %v3427 = vpop.f32.mrb[0].mxu0
  %v3428 = vadd.f32 0.0, %v3427
  %v3429 = vpop.f32.mrb[0].mxu0
  %v3430 = vadd.f32 0.0, %v3429
  %v3431 = vpop.f32.mrb[0].mxu0
  %v3432 = vadd.f32 0.0, %v3431
  %v3433 = vpop.f32.mrb[0].mxu0
  %v3434 = vadd.f32 0.0, %v3433
  %3435 = vmatprep.mubr.bf16.mxu0 0
  %3436 = vmatmul.mubr.bf16.gmra.mrb[0].mxu0 %v1698
  %v3437 = vpop.f32.mrb[0].mxu0
  %v3438 = vadd.f32 0.0, %v3437
  %v3439 = vpop.f32.mrb[0].mxu0
  %v3440 = vadd.f32 0.0, %v3439
  %v3441 = vpop.f32.mrb[0].mxu0
  %v3442 = vadd.f32 0.0, %v3441
  %v3443 = vpop.f32.mrb[0].mxu0
  %v3444 = vadd.f32 0.0, %v3443
  %3445 = vmatprep.mubr.bf16.mxu0 0
  %3446 = vmatmul.mubr.bf16.gmra.mrb[0].mxu0 %v1699
  %v3447 = vpop.f32.mrb[0].mxu0
  %v3448 = vadd.f32 0.0, %v3447
  %v3449 = vpop.f32.mrb[0].mxu0
  %v3450 = vadd.f32 0.0, %v3449
  %v3451 = vpop.f32.mrb[0].mxu0
  %v3452 = vadd.f32 0.0, %v3451
  %v3453 = vpop.f32.mrb[0].mxu0
  %v3454 = vadd.f32 0.0, %v3453
  %3455 = vmatprep.mubr.bf16.mxu0 0
  %3456 = vmatmul.mubr.bf16.gmra.mrb[0].mxu0 %v1700
  %v3457 = vpop.f32.mrb[0].mxu0
  %v3458 = vadd.f32 0.0, %v3457
  %v3459 = vpop.f32.mrb[0].mxu0
  %v3460 = vadd.f32 0.0, %v3459
  %v3461 = vpop.f32.mrb[0].mxu0
  %v3462 = vadd.f32 0.0, %v3461
  %v3463 = vpop.f32.mrb[0].mxu0
  %v3464 = vadd.f32 0.0, %v3463
  %3465 = vmatprep.mubr.bf16.mxu0 0
  %3466 = vmatmul.mubr.bf16.gmra.mrb[0].mxu0 %v1701
  %v3467 = vpop.f32.mrb[0].mxu0
  %v3468 = vadd.f32 0.0, %v3467
  %v3469 = vpop.f32.mrb[0].mxu0
  %v3470 = vadd.f32 0.0, %v3469
  %v3471 = vpop.f32.mrb[0].mxu0
  %v3472 = vadd.f32 0.0, %v3471
  %v3473 = vpop.f32.mrb[0].mxu0
  %v3474 = vadd.f32 0.0, %v3473
  %3475 = vdwg.mxu0
  %v3476 = vadd.f32 %v3331, %v3398
  %v3477 = vadd.f32 %v3332, %v3400
  %v3478 = vadd.f32 %v3333, %v3402
  %v3479 = vadd.f32 %v3334, %v3404
  %v3480 = vadd.f32 %v3335, %v3408
  %v3481 = vadd.f32 %v3336, %v3410
  %v3482 = vadd.f32 %v3337, %v3412
  %v3483 = vadd.f32 %v3338, %v3414
  %v3484 = vadd.f32 %v3339, %v3418
  %v3485 = vadd.f32 %v3340, %v3420
  %v3486 = vadd.f32 %v3341, %v3422
  %v3487 = vadd.f32 %v3342, %v3424
  %v3488 = vadd.f32 %v3343, %v3428
  %v3489 = vadd.f32 %v3344, %v3430
  %v3490 = vadd.f32 %v3345, %v3432
  %v3491 = vadd.f32 %v3346, %v3434
  %v3492 = vadd.f32 %v3347, %v3438
  %v3493 = vadd.f32 %v3348, %v3440
  %v3494 = vadd.f32 %v3349, %v3442
  %v3495 = vadd.f32 %v3350, %v3444
  %v3496 = vadd.f32 %v3351, %v3448
  %v3497 = vadd.f32 %v3352, %v3450
  %v3498 = vadd.f32 %v3353, %v3452
  %v3499 = vadd.f32 %v3354, %v3454
  %v3500 = vadd.f32 %v3355, %v3458
  %v3501 = vadd.f32 %v3356, %v3460
  %v3502 = vadd.f32 %v3357, %v3462
  %v3503 = vadd.f32 %v3358, %v3464
  %v3504 = vadd.f32 %v3359, %v3468
  %v3505 = vadd.f32 %v3360, %v3470
  %v3506 = vadd.f32 %v3361, %v3472
  %v3507 = vadd.f32 %v3362, %v3474
  %v3508 = vmax.f32 %v2815, %v3476
  %v3509 = vmax.f32 %v2816, %v3477
  %v3510 = vmax.f32 %v2817, %v3478
  %v3511 = vmax.f32 %v2818, %v3479
  %v3512 = vmax.f32 %v2819, %v3480
  %v3513 = vmax.f32 %v2820, %v3481
  %v3514 = vmax.f32 %v2821, %v3482
  %v3515 = vmax.f32 %v2822, %v3483
  %v3516 = vmax.f32 %v2823, %v3484
  %v3517 = vmax.f32 %v2824, %v3485
  %v3518 = vmax.f32 %v2825, %v3486
  %v3519 = vmax.f32 %v2826, %v3487
  %v3520 = vmax.f32 %v2827, %v3488
  %v3521 = vmax.f32 %v2828, %v3489
  %v3522 = vmax.f32 %v2829, %v3490
  %v3523 = vmax.f32 %v2830, %v3491
  %v3524 = vmax.f32 %v2831, %v3492
  %v3525 = vmax.f32 %v2832, %v3493
  %v3526 = vmax.f32 %v2833, %v3494
  %v3527 = vmax.f32 %v2834, %v3495
  %v3528 = vmax.f32 %v2835, %v3496
  %v3529 = vmax.f32 %v2836, %v3497
  %v3530 = vmax.f32 %v2837, %v3498
  %v3531 = vmax.f32 %v2838, %v3499
  %v3532 = vmax.f32 %v2839, %v3500
  %v3533 = vmax.f32 %v2840, %v3501
  %v3534 = vmax.f32 %v2841, %v3502
  %v3535 = vmax.f32 %v2842, %v3503
  %v3536 = vmax.f32 %v2843, %v3504
  %v3537 = vmax.f32 %v2844, %v3505
  %v3538 = vmax.f32 %v2845, %v3506
  %v3539 = vmax.f32 %v2846, %v3507
  %v3540 = vmax.f32 %v3508, %v3509
  %v3541 = vmax.f32 %v3510, %v3511
  %v3542 = vmax.f32 %v3512, %v3513
  %v3543 = vmax.f32 %v3514, %v3515
  %v3544 = vmax.f32 %v3516, %v3517
  %v3545 = vmax.f32 %v3518, %v3519
  %v3546 = vmax.f32 %v3520, %v3521
  %v3547 = vmax.f32 %v3522, %v3523
  %v3548 = vmax.f32 %v3524, %v3525
  %v3549 = vmax.f32 %v3526, %v3527
  %v3550 = vmax.f32 %v3528, %v3529
  %v3551 = vmax.f32 %v3530, %v3531
  %v3552 = vmax.f32 %v3532, %v3533
  %v3553 = vmax.f32 %v3534, %v3535
  %v3554 = vmax.f32 %v3536, %v3537
  %v3555 = vmax.f32 %v3538, %v3539
  %v3556 = vld [vmem:[%s4] sm:$0x1]
  %v3558 = vlaneseq
  %v3559 = vshrl.u32 %v3558, 7
  %v3560 = vsub.s32 0, %v3559
  %v3561 = vrot.slane %v3556, %v3560
  %v3563 = vadd.f32 %v3540, %v3561
  %v3564 = vadd.f32 %v3541, %v3561
  %v3565 = vadd.f32 %v3542, %v3561
  %v3566 = vadd.f32 %v3543, %v3561
  %v3567 = vadd.f32 %v3544, %v3561
  %v3568 = vadd.f32 %v3545, %v3561
  %v3569 = vadd.f32 %v3546, %v3561
  %v3570 = vadd.f32 %v3547, %v3561
  %v3571 = vadd.f32 %v3548, %v3561
  %v3572 = vadd.f32 %v3549, %v3561
  %v3573 = vadd.f32 %v3550, %v3561
  %v3574 = vadd.f32 %v3551, %v3561
  %v3575 = vadd.f32 %v3552, %v3561
  %v3576 = vadd.f32 %v3553, %v3561
  %v3577 = vadd.f32 %v3554, %v3561
  %v3578 = vadd.f32 %v3555, %v3561
  %v3579 = vmax.f32 %v3563, 0.0
  %v3580 = vmax.f32 %v3564, 0.0
  %v3581 = vmax.f32 %v3565, 0.0
  %v3582 = vmax.f32 %v3566, 0.0
  %v3583 = vmax.f32 %v3567, 0.0
  %v3584 = vmax.f32 %v3568, 0.0
  %v3585 = vmax.f32 %v3569, 0.0
  %v3586 = vmax.f32 %v3570, 0.0
  %v3587 = vmax.f32 %v3571, 0.0
  %v3588 = vmax.f32 %v3572, 0.0
  %v3589 = vmax.f32 %v3573, 0.0
  %v3590 = vmax.f32 %v3574, 0.0
  %v3591 = vmax.f32 %v3575, 0.0
  %v3592 = vmax.f32 %v3576, 0.0
  %v3593 = vmax.f32 %v3577, 0.0
  %v3594 = vmax.f32 %v3578, 0.0
  %v3595 = vpack.c.bf16 %v3580, %v3579
  %v3596 = vpack.c.bf16 %v3582, %v3581
  %v3597 = vpack.c.bf16 %v3584, %v3583
  %v3598 = vpack.c.bf16 %v3586, %v3585
  %v3599 = vpack.c.bf16 %v3588, %v3587
  %v3600 = vpack.c.bf16 %v3590, %v3589
  %v3601 = vpack.c.bf16 %v3592, %v3591
  %v3602 = vpack.c.bf16 %v3594, %v3593
  %v3603 = vld [vmem:[%s5] sm:$0xf]
  %v3604 = vld [vmem:[%s5 + $0x4] sm:$0xf]
  %v3605 = vld [vmem:[%s5 + $0x8] sm:$0xf]
  %v3606 = vld [vmem:[%s5 + $0xc] sm:$0xf]
  %v3607 = vld [vmem:[%s5 + $0x10] sm:$0xf]
  %v3608 = vld [vmem:[%s5 + $0x14] sm:$0xf]
  %v3609 = vld [vmem:[%s5 + $0x18] sm:$0xf]
  %v3610 = vld [vmem:[%s5 + $0x1c] sm:$0xf]
  %v3611 = vld [vmem:[%s5 + $0x20] sm:$0xf]
  %v3612 = vld [vmem:[%s5 + $0x24] sm:$0xf]
  %v3613 = vld [vmem:[%s5 + $0x28] sm:$0xf]
  %v3614 = vld [vmem:[%s5 + $0x2c] sm:$0xf]
  %v3615 = vld [vmem:[%s5 + $0x30] sm:$0xf]
  %v3616 = vld [vmem:[%s5 + $0x34] sm:$0xf]
  %v3617 = vld [vmem:[%s5 + $0x38] sm:$0xf]
  %v3618 = vld [vmem:[%s5 + $0x3c] sm:$0xf]
  %s3619 = scalar_lea.vmem %s5, 64
  %v3620 = vld [vmem:[%s3619] sm:$0xf]
  %v3621 = vld [vmem:[%s3619 + $0x4] sm:$0xf]
  %v3622 = vld [vmem:[%s3619 + $0x8] sm:$0xf]
  %v3623 = vld [vmem:[%s3619 + $0xc] sm:$0xf]
  %v3624 = vld [vmem:[%s3619 + $0x10] sm:$0xf]
  %v3625 = vld [vmem:[%s3619 + $0x14] sm:$0xf]
  %v3626 = vld [vmem:[%s3619 + $0x18] sm:$0xf]
  %v3627 = vld [vmem:[%s3619 + $0x1c] sm:$0xf]
  %v3628 = vld [vmem:[%s3619 + $0x20] sm:$0xf]
  %v3629 = vld [vmem:[%s3619 + $0x24] sm:$0xf]
  %v3630 = vld [vmem:[%s3619 + $0x28] sm:$0xf]
  %v3631 = vld [vmem:[%s3619 + $0x2c] sm:$0xf]
  %v3632 = vld [vmem:[%s3619 + $0x30] sm:$0xf]
  %v3633 = vld [vmem:[%s3619 + $0x34] sm:$0xf]
  %v3634 = vld [vmem:[%s3619 + $0x38] sm:$0xf]
  %v3635 = vld [vmem:[%s3619 + $0x3c] sm:$0xf]
  %v3652 = vunpack.c.l.b16 %v3620
  %v3653 = vunpack.c.l.b16 %v3621
  %v3654 = vunpack.c.l.b16 %v3622
  %v3655 = vunpack.c.l.b16 %v3623
  %v3656 = vunpack.c.l.b16 %v3624
  %v3657 = vunpack.c.l.b16 %v3625
  %v3658 = vunpack.c.l.b16 %v3626
  %v3659 = vunpack.c.l.b16 %v3627
  %v3660 = vunpack.c.l.b16 %v3628
  %v3661 = vunpack.c.l.b16 %v3629
  %v3662 = vunpack.c.l.b16 %v3630
  %v3663 = vunpack.c.l.b16 %v3631
  %v3664 = vunpack.c.l.b16 %v3632
  %v3665 = vunpack.c.l.b16 %v3633
  %v3666 = vunpack.c.l.b16 %v3634
  %v3667 = vunpack.c.l.b16 %v3635
  %v3668 = vpack.c.b16 %v3653, %v3652
  %v3669 = vpack.c.b16 %v3655, %v3654
  %v3670 = vpack.c.b16 %v3657, %v3656
  %v3671 = vpack.c.b16 %v3659, %v3658
  %v3672 = vpack.c.b16 %v3661, %v3660
  %v3673 = vpack.c.b16 %v3663, %v3662
  %v3674 = vpack.c.b16 %v3665, %v3664
  %v3675 = vpack.c.b16 %v3667, %v3666
  %3684 = vmatprep.subr.bf16.mxu0 0
  %3685 = vmatpush1.bf16.msra.mxu0 %v3668
  %3686 = vmatprep.subr.bf16.mxu0 0
  %3687 = vmatpush1.bf16.msra.mxu0 %v3669
  %3688 = vmatprep.subr.bf16.mxu0 0
  %3689 = vmatpush1.bf16.msra.mxu0 %v3670
  %3690 = vmatprep.subr.bf16.mxu0 0
  %3691 = vmatpush1.bf16.msra.mxu0 %v3671
  %3692 = vmatprep.subr.bf16.mxu0 0
  %3693 = vmatpush1.bf16.msra.mxu0 %v3672
  %3694 = vmatprep.subr.bf16.mxu0 0
  %3695 = vmatpush1.bf16.msra.mxu0 %v3673
  %3696 = vmatprep.subr.bf16.mxu0 0
  %3697 = vmatpush1.bf16.msra.mxu0 %v3674
  %3698 = vmatprep.subr.bf16.mxu0 0
  %3699 = vmatpush1.bf16.msra.mxu0 %v3675
  %3700 = vmatprep.subr.bf16.mxu0 0
  %3701 = vmatpush1.bf16.msra.mxu0 0
  %3702 = vmatprep.subr.bf16.mxu0 0
  %3703 = vmatpush1.bf16.msra.mxu0 0
  %3704 = vmatprep.subr.bf16.mxu0 0
  %3705 = vmatpush1.bf16.msra.mxu0 0
  %3706 = vmatprep.subr.bf16.mxu0 0
  %3707 = vmatpush1.bf16.msra.mxu0 0
  %3708 = vmatprep.subr.bf16.mxu0 0
  %3709 = vmatpush1.bf16.msra.mxu0 0
  %3710 = vmatprep.subr.bf16.mxu0 0
  %3711 = vmatpush1.bf16.msra.mxu0 0
  %3712 = vmatprep.subr.bf16.mxu0 0
  %3713 = vmatpush1.bf16.msra.mxu0 0
  %3714 = vmatprep.subr.bf16.mxu0 0
  %3715 = vmatpush1.bf16.msra.mxu0 0
  %3716 = vmatprep.mubr.bf16.mxu0 0
  %3717 = vmatmul.mubr.bf16.gmra.mrb[0].mxu0 %v3597
  %v3718 = vpop.f32.mrb[0].mxu0
  %v3719 = vadd.f32 0.0, %v3718
  %v3720 = vpop.f32.mrb[0].mxu0
  %v3721 = vpop.f32.mrb[0].mxu0
  %v3722 = vadd.f32 0.0, %v3721
  %v3723 = vpop.f32.mrb[0].mxu0
  %3724 = vmatprep.mubr.bf16.mxu0 0
  %3725 = vmatmul.mubr.bf16.gmra.mrb[0].mxu0 %v3598
  %v3726 = vpop.f32.mrb[0].mxu0
  %v3727 = vadd.f32 0.0, %v3726
  %v3728 = vpop.f32.mrb[0].mxu0
  %v3729 = vpop.f32.mrb[0].mxu0
  %v3730 = vadd.f32 0.0, %v3729
  %v3731 = vpop.f32.mrb[0].mxu0
  %3732 = vdwg.mxu0
  %v3749 = vunpack.c.l.b16 %v3603
  %v3750 = vunpack.c.l.b16 %v3604
  %v3751 = vunpack.c.l.b16 %v3605
  %v3752 = vunpack.c.l.b16 %v3606
  %v3753 = vunpack.c.l.b16 %v3607
  %v3754 = vunpack.c.l.b16 %v3608
  %v3755 = vunpack.c.l.b16 %v3609
  %v3756 = vunpack.c.l.b16 %v3610
  %v3757 = vunpack.c.l.b16 %v3611
  %v3758 = vunpack.c.l.b16 %v3612
  %v3759 = vunpack.c.l.b16 %v3613
  %v3760 = vunpack.c.l.b16 %v3614
  %v3761 = vunpack.c.l.b16 %v3615
  %v3762 = vunpack.c.l.b16 %v3616
  %v3763 = vunpack.c.l.b16 %v3617
  %v3764 = vunpack.c.l.b16 %v3618
  %v3765 = vpack.c.b16 %v3750, %v3749
  %v3766 = vpack.c.b16 %v3752, %v3751
  %v3767 = vpack.c.b16 %v3754, %v3753
  %v3768 = vpack.c.b16 %v3756, %v3755
  %v3769 = vpack.c.b16 %v3758, %v3757
  %v3770 = vpack.c.b16 %v3760, %v3759
  %v3771 = vpack.c.b16 %v3762, %v3761
  %v3772 = vpack.c.b16 %v3764, %v3763
  %3781 = vmatprep.subr.bf16.mxu0 0
  %3782 = vmatpush1.bf16.msra.mxu0 %v3765
  %3783 = vmatprep.subr.bf16.mxu0 0
  %3784 = vmatpush1.bf16.msra.mxu0 %v3766
  %3785 = vmatprep.subr.bf16.mxu0 0
  %3786 = vmatpush1.bf16.msra.mxu0 %v3767
  %3787 = vmatprep.subr.bf16.mxu0 0
  %3788 = vmatpush1.bf16.msra.mxu0 %v3768
  %3789 = vmatprep.subr.bf16.mxu0 0
  %3790 = vmatpush1.bf16.msra.mxu0 %v3769
  %3791 = vmatprep.subr.bf16.mxu0 0
  %3792 = vmatpush1.bf16.msra.mxu0 %v3770
  %3793 = vmatprep.subr.bf16.mxu0 0
  %3794 = vmatpush1.bf16.msra.mxu0 %v3771
  %3795 = vmatprep.subr.bf16.mxu0 0
  %3796 = vmatpush1.bf16.msra.mxu0 %v3772
  %3797 = vmatprep.subr.bf16.mxu0 0
  %3798 = vmatpush1.bf16.msra.mxu0 0
  %3799 = vmatprep.subr.bf16.mxu0 0
  %3800 = vmatpush1.bf16.msra.mxu0 0
  %3801 = vmatprep.subr.bf16.mxu0 0
  %3802 = vmatpush1.bf16.msra.mxu0 0
  %3803 = vmatprep.subr.bf16.mxu0 0
  %3804 = vmatpush1.bf16.msra.mxu0 0
  %3805 = vmatprep.subr.bf16.mxu0 0
  %3806 = vmatpush1.bf16.msra.mxu0 0
  %3807 = vmatprep.subr.bf16.mxu0 0
  %3808 = vmatpush1.bf16.msra.mxu0 0
  %3809 = vmatprep.subr.bf16.mxu0 0
  %3810 = vmatpush1.bf16.msra.mxu0 0
  %3811 = vmatprep.subr.bf16.mxu0 0
  %3812 = vmatpush1.bf16.msra.mxu0 0
  %3813 = vmatprep.mubr.bf16.mxu0 0
  %3814 = vmatmul.mubr.bf16.gmra.mrb[0].mxu0 %v3595
  %v3815 = vpop.f32.mrb[0].mxu0
  %v3816 = vadd.f32 %v3719, %v3815
  %v3817 = vpop.f32.mrb[0].mxu0
  %v3818 = vpop.f32.mrb[0].mxu0
  %v3819 = vadd.f32 %v3722, %v3818
  %v3820 = vpop.f32.mrb[0].mxu0
  %3821 = vmatprep.mubr.bf16.mxu0 0
  %3822 = vmatmul.mubr.bf16.gmra.mrb[0].mxu0 %v3596
  %v3823 = vpop.f32.mrb[0].mxu0
  %v3824 = vadd.f32 %v3727, %v3823
  %v3825 = vpop.f32.mrb[0].mxu0
  %v3826 = vpop.f32.mrb[0].mxu0
  %v3827 = vadd.f32 %v3730, %v3826
  %v3828 = vpop.f32.mrb[0].mxu0
  %3829 = vdwg.mxu0
  %s3830 = scalar_lea.vmem %s5, 128
  %v3831 = vld [vmem:[%s3830] sm:$0xf]
  %v3832 = vld [vmem:[%s3830 + $0x4] sm:$0xf]
  %v3833 = vld [vmem:[%s3830 + $0x8] sm:$0xf]
  %v3834 = vld [vmem:[%s3830 + $0xc] sm:$0xf]
  %v3835 = vld [vmem:[%s3830 + $0x10] sm:$0xf]
  %v3836 = vld [vmem:[%s3830 + $0x14] sm:$0xf]
  %v3837 = vld [vmem:[%s3830 + $0x18] sm:$0xf]
  %v3838 = vld [vmem:[%s3830 + $0x1c] sm:$0xf]
  %v3839 = vld [vmem:[%s3830 + $0x20] sm:$0xf]
  %v3840 = vld [vmem:[%s3830 + $0x24] sm:$0xf]
  %v3841 = vld [vmem:[%s3830 + $0x28] sm:$0xf]
  %v3842 = vld [vmem:[%s3830 + $0x2c] sm:$0xf]
  %v3843 = vld [vmem:[%s3830 + $0x30] sm:$0xf]
  %v3844 = vld [vmem:[%s3830 + $0x34] sm:$0xf]
  %v3845 = vld [vmem:[%s3830 + $0x38] sm:$0xf]
  %v3846 = vld [vmem:[%s3830 + $0x3c] sm:$0xf]
  %v3863 = vunpack.c.l.b16 %v3831
  %v3864 = vunpack.c.l.b16 %v3832
  %v3865 = vunpack.c.l.b16 %v3833
  %v3866 = vunpack.c.l.b16 %v3834
  %v3867 = vunpack.c.l.b16 %v3835
  %v3868 = vunpack.c.l.b16 %v3836
  %v3869 = vunpack.c.l.b16 %v3837
  %v3870 = vunpack.c.l.b16 %v3838
  %v3871 = vunpack.c.l.b16 %v3839
  %v3872 = vunpack.c.l.b16 %v3840
  %v3873 = vunpack.c.l.b16 %v3841
  %v3874 = vunpack.c.l.b16 %v3842
  %v3875 = vunpack.c.l.b16 %v3843
  %v3876 = vunpack.c.l.b16 %v3844
  %v3877 = vunpack.c.l.b16 %v3845
  %v3878 = vunpack.c.l.b16 %v3846
  %v3879 = vpack.c.b16 %v3864, %v3863
  %v3880 = vpack.c.b16 %v3866, %v3865
  %v3881 = vpack.c.b16 %v3868, %v3867
  %v3882 = vpack.c.b16 %v3870, %v3869
  %v3883 = vpack.c.b16 %v3872, %v3871
  %v3884 = vpack.c.b16 %v3874, %v3873
  %v3885 = vpack.c.b16 %v3876, %v3875
  %v3886 = vpack.c.b16 %v3878, %v3877
  %3895 = vmatprep.subr.bf16.mxu0 0
  %3896 = vmatpush1.bf16.msra.mxu0 %v3879
  %3897 = vmatprep.subr.bf16.mxu0 0
  %3898 = vmatpush1.bf16.msra.mxu0 %v3880
  %3899 = vmatprep.subr.bf16.mxu0 0
  %3900 = vmatpush1.bf16.msra.mxu0 %v3881
  %3901 = vmatprep.subr.bf16.mxu0 0
  %3902 = vmatpush1.bf16.msra.mxu0 %v3882
  %3903 = vmatprep.subr.bf16.mxu0 0
  %3904 = vmatpush1.bf16.msra.mxu0 %v3883
  %3905 = vmatprep.subr.bf16.mxu0 0
  %3906 = vmatpush1.bf16.msra.mxu0 %v3884
  %3907 = vmatprep.subr.bf16.mxu0 0
  %3908 = vmatpush1.bf16.msra.mxu0 %v3885
  %3909 = vmatprep.subr.bf16.mxu0 0
  %3910 = vmatpush1.bf16.msra.mxu0 %v3886
  %3911 = vmatprep.subr.bf16.mxu0 0
  %3912 = vmatpush1.bf16.msra.mxu0 0
  %3913 = vmatprep.subr.bf16.mxu0 0
  %3914 = vmatpush1.bf16.msra.mxu0 0
  %3915 = vmatprep.subr.bf16.mxu0 0
  %3916 = vmatpush1.bf16.msra.mxu0 0
  %3917 = vmatprep.subr.bf16.mxu0 0
  %3918 = vmatpush1.bf16.msra.mxu0 0
  %3919 = vmatprep.subr.bf16.mxu0 0
  %3920 = vmatpush1.bf16.msra.mxu0 0
  %3921 = vmatprep.subr.bf16.mxu0 0
  %3922 = vmatpush1.bf16.msra.mxu0 0
  %3923 = vmatprep.subr.bf16.mxu0 0
  %3924 = vmatpush1.bf16.msra.mxu0 0
  %3925 = vmatprep.subr.bf16.mxu0 0
  %3926 = vmatpush1.bf16.msra.mxu0 0
  %3927 = vmatprep.mubr.bf16.mxu0 0
  %3928 = vmatmul.mubr.bf16.gmra.mrb[0].mxu0 %v3599
  %v3929 = vpop.f32.mrb[0].mxu0
  %v3930 = vadd.f32 0.0, %v3929
  %v3931 = vpop.f32.mrb[0].mxu0
  %v3932 = vpop.f32.mrb[0].mxu0
  %v3933 = vadd.f32 0.0, %v3932
  %v3934 = vpop.f32.mrb[0].mxu0
  %3935 = vmatprep.mubr.bf16.mxu0 0
  %3936 = vmatmul.mubr.bf16.gmra.mrb[0].mxu0 %v3600
  %v3937 = vpop.f32.mrb[0].mxu0
  %v3938 = vadd.f32 0.0, %v3937
  %v3939 = vpop.f32.mrb[0].mxu0
  %v3940 = vpop.f32.mrb[0].mxu0
  %v3941 = vadd.f32 0.0, %v3940
  %v3942 = vpop.f32.mrb[0].mxu0
  %3943 = vdwg.mxu0
  %v3944 = vadd.f32 %v3816, %v3930
  %v3945 = vadd.f32 %v3819, %v3933
  %v3946 = vadd.f32 %v3824, %v3938
  %v3947 = vadd.f32 %v3827, %v3941
  %s3948 = scalar_lea.vmem %s5, 192
  %v3949 = vld [vmem:[%s3948] sm:$0xf]
  %v3950 = vld [vmem:[%s3948 + $0x4] sm:$0xf]
  %v3951 = vld [vmem:[%s3948 + $0x8] sm:$0xf]
  %v3952 = vld [vmem:[%s3948 + $0xc] sm:$0xf]
  %v3953 = vld [vmem:[%s3948 + $0x10] sm:$0xf]
  %v3954 = vld [vmem:[%s3948 + $0x14] sm:$0xf]
  %v3955 = vld [vmem:[%s3948 + $0x18] sm:$0xf]
  %v3956 = vld [vmem:[%s3948 + $0x1c] sm:$0xf]
  %v3957 = vld [vmem:[%s3948 + $0x20] sm:$0xf]
  %v3958 = vld [vmem:[%s3948 + $0x24] sm:$0xf]
  %v3959 = vld [vmem:[%s3948 + $0x28] sm:$0xf]
  %v3960 = vld [vmem:[%s3948 + $0x2c] sm:$0xf]
  %v3961 = vld [vmem:[%s3948 + $0x30] sm:$0xf]
  %v3962 = vld [vmem:[%s3948 + $0x34] sm:$0xf]
  %v3963 = vld [vmem:[%s3948 + $0x38] sm:$0xf]
  %v3964 = vld [vmem:[%s3948 + $0x3c] sm:$0xf]
  %v3981 = vunpack.c.l.b16 %v3949
  %v3982 = vunpack.c.l.b16 %v3950
  %v3983 = vunpack.c.l.b16 %v3951
  %v3984 = vunpack.c.l.b16 %v3952
  %v3985 = vunpack.c.l.b16 %v3953
  %v3986 = vunpack.c.l.b16 %v3954
  %v3987 = vunpack.c.l.b16 %v3955
  %v3988 = vunpack.c.l.b16 %v3956
  %v3989 = vunpack.c.l.b16 %v3957
  %v3990 = vunpack.c.l.b16 %v3958
  %v3991 = vunpack.c.l.b16 %v3959
  %v3992 = vunpack.c.l.b16 %v3960
  %v3993 = vunpack.c.l.b16 %v3961
  %v3994 = vunpack.c.l.b16 %v3962
  %v3995 = vunpack.c.l.b16 %v3963
  %v3996 = vunpack.c.l.b16 %v3964
  %v3997 = vpack.c.b16 %v3982, %v3981
  %v3998 = vpack.c.b16 %v3984, %v3983
  %v3999 = vpack.c.b16 %v3986, %v3985
  %v4000 = vpack.c.b16 %v3988, %v3987
  %v4001 = vpack.c.b16 %v3990, %v3989
  %v4002 = vpack.c.b16 %v3992, %v3991
  %v4003 = vpack.c.b16 %v3994, %v3993
  %v4004 = vpack.c.b16 %v3996, %v3995
  %4013 = vmatprep.subr.bf16.mxu0 0
  %4014 = vmatpush1.bf16.msra.mxu0 %v3997
  %4015 = vmatprep.subr.bf16.mxu0 0
  %4016 = vmatpush1.bf16.msra.mxu0 %v3998
  %4017 = vmatprep.subr.bf16.mxu0 0
  %4018 = vmatpush1.bf16.msra.mxu0 %v3999
  %4019 = vmatprep.subr.bf16.mxu0 0
  %4020 = vmatpush1.bf16.msra.mxu0 %v4000
  %4021 = vmatprep.subr.bf16.mxu0 0
  %4022 = vmatpush1.bf16.msra.mxu0 %v4001
  %4023 = vmatprep.subr.bf16.mxu0 0
  %4024 = vmatpush1.bf16.msra.mxu0 %v4002
  %4025 = vmatprep.subr.bf16.mxu0 0
  %4026 = vmatpush1.bf16.msra.mxu0 %v4003
  %4027 = vmatprep.subr.bf16.mxu0 0
  %4028 = vmatpush1.bf16.msra.mxu0 %v4004
  %4029 = vmatprep.subr.bf16.mxu0 0
  %4030 = vmatpush1.bf16.msra.mxu0 0
  %4031 = vmatprep.subr.bf16.mxu0 0
  %4032 = vmatpush1.bf16.msra.mxu0 0
  %4033 = vmatprep.subr.bf16.mxu0 0
  %4034 = vmatpush1.bf16.msra.mxu0 0
  %4035 = vmatprep.subr.bf16.mxu0 0
  %4036 = vmatpush1.bf16.msra.mxu0 0
  %4037 = vmatprep.subr.bf16.mxu0 0
  %4038 = vmatpush1.bf16.msra.mxu0 0
  %4039 = vmatprep.subr.bf16.mxu0 0
  %4040 = vmatpush1.bf16.msra.mxu0 0
  %4041 = vmatprep.subr.bf16.mxu0 0
  %4042 = vmatpush1.bf16.msra.mxu0 0
  %4043 = vmatprep.subr.bf16.mxu0 0
  %4044 = vmatpush1.bf16.msra.mxu0 0
  %4045 = vmatprep.mubr.bf16.mxu0 0
  %4046 = vmatmul.mubr.bf16.gmra.mrb[0].mxu0 %v3601
  %v4047 = vpop.f32.mrb[0].mxu0
  %v4048 = vadd.f32 0.0, %v4047
  %v4049 = vpop.f32.mrb[0].mxu0
  %v4050 = vpop.f32.mrb[0].mxu0
  %v4051 = vadd.f32 0.0, %v4050
  %v4052 = vpop.f32.mrb[0].mxu0
  %4053 = vmatprep.mubr.bf16.mxu0 0
  %4054 = vmatmul.mubr.bf16.gmra.mrb[0].mxu0 %v3602
  %v4055 = vpop.f32.mrb[0].mxu0
  %v4056 = vadd.f32 0.0, %v4055
  %v4057 = vpop.f32.mrb[0].mxu0
  %v4058 = vpop.f32.mrb[0].mxu0
  %v4059 = vadd.f32 0.0, %v4058
  %v4060 = vpop.f32.mrb[0].mxu0
  %4061 = vdwg.mxu0
  %v4062 = vadd.f32 %v3944, %v4048
  %v4063 = vadd.f32 %v3945, %v4051
  %v4064 = vadd.f32 %v3946, %v4056
  %v4065 = vadd.f32 %v3947, %v4059
  %v4066 = vld [vmem:[%s6] sm:$0x1]
  %v4068 = vlaneseq
  %v4069 = vshrl.u32 %v4068, 7
  %v4070 = vsub.s32 0, %v4069
  %v4071 = vrot.slane %v4066, %v4070
  %v4073 = vadd.f32 %v4062, %v4071
  %v4074 = vadd.f32 %v4063, %v4071
  %v4075 = vadd.f32 %v4064, %v4071
  %v4076 = vadd.f32 %v4065, %v4071
  %v4077 = vmax.f32 %v4073, 0.0
  %v4078 = vmax.f32 %v4074, 0.0
  %v4079 = vmax.f32 %v4075, 0.0
  %v4080 = vmax.f32 %v4076, 0.0
  %v4081 = vpack.c.bf16 %v4078, %v4077
  %v4082 = vpack.c.bf16 %v4080, %v4079
  %v4083 = vld [vmem:[%s7] sm:$0xf]
  %v4084 = vld [vmem:[%s7 + $0x4] sm:$0xf]
  %v4085 = vld [vmem:[%s7 + $0x8] sm:$0xf]
  %v4086 = vld [vmem:[%s7 + $0xc] sm:$0xf]
  %v4087 = vld [vmem:[%s7 + $0x10] sm:$0xf]
  %v4088 = vld [vmem:[%s7 + $0x14] sm:$0xf]
  %v4089 = vld [vmem:[%s7 + $0x18] sm:$0xf]
  %v4090 = vld [vmem:[%s7 + $0x1c] sm:$0xf]
  %v4091 = vld [vmem:[%s8] sm:$0x1]
  %v4093 = vlaneseq
  %v4094 = vshrl.u32 %v4093, 7
  %v4095 = vsub.s32 0, %v4094
  %v4096 = vrot.slane %v4091, %v4095
  %v4106 = vunpack.c.l.b16 %v4083
  %v4107 = vunpack.c.l.b16 %v4084
  %v4108 = vunpack.c.l.b16 %v4085
  %v4109 = vunpack.c.l.b16 %v4086
  %v4110 = vunpack.c.l.b16 %v4087
  %v4111 = vunpack.c.l.b16 %v4088
  %v4112 = vunpack.c.l.b16 %v4089
  %v4113 = vunpack.c.l.b16 %v4090
  %v4114 = vpack.c.b16 %v4107, %v4106
  %v4115 = vpack.c.b16 %v4109, %v4108
  %v4116 = vpack.c.b16 %v4111, %v4110
  %v4117 = vpack.c.b16 %v4113, %v4112
  %vm4122 = vcmask 523264
  %v4124 = vsel %vm4122, %v4081, 0
  %v4127 = vsel %vm4122, %v4082, 0
  %4129 = vmatprep.subr.bf16.mxu0 0
  %4130 = vmatpush1.bf16.msra.mxu0 %v4114
  %4131 = vmatprep.subr.bf16.mxu0 0
  %4132 = vmatpush1.bf16.msra.mxu0 %v4115
  %4133 = vmatprep.subr.bf16.mxu0 0
  %4134 = vmatpush1.bf16.msra.mxu0 %v4116
  %4135 = vmatprep.subr.bf16.mxu0 0
  %4136 = vmatpush1.bf16.msra.mxu0 %v4117
  %4137 = vmatprep.subr.bf16.mxu0 0
  %4138 = vmatpush1.bf16.msra.mxu0 0
  %4139 = vmatprep.subr.bf16.mxu0 0
  %4140 = vmatpush1.bf16.msra.mxu0 0
  %4141 = vmatprep.subr.bf16.mxu0 0
  %4142 = vmatpush1.bf16.msra.mxu0 0
  %4143 = vmatprep.subr.bf16.mxu0 0
  %4144 = vmatpush1.bf16.msra.mxu0 0
  %4145 = vmatprep.subr.bf16.mxu0 0
  %4146 = vmatpush1.bf16.msra.mxu0 0
  %4147 = vmatprep.subr.bf16.mxu0 0
  %4148 = vmatpush1.bf16.msra.mxu0 0
  %4149 = vmatprep.subr.bf16.mxu0 0
  %4150 = vmatpush1.bf16.msra.mxu0 0
  %4151 = vmatprep.subr.bf16.mxu0 0
  %4152 = vmatpush1.bf16.msra.mxu0 0
  %4153 = vmatprep.subr.bf16.mxu0 0
  %4154 = vmatpush1.bf16.msra.mxu0 0
  %4155 = vmatprep.subr.bf16.mxu0 0
  %4156 = vmatpush1.bf16.msra.mxu0 0
  %4157 = vmatprep.subr.bf16.mxu0 0
  %4158 = vmatpush1.bf16.msra.mxu0 0
  %4159 = vmatprep.subr.bf16.mxu0 0
  %4160 = vmatpush1.bf16.msra.mxu0 0
  %4161 = vmatprep.mubr.bf16.mxu0 0
  %4162 = vmatmul.mubr.bf16.gmra.mrb[0].mxu0 %v4124
  %v4163 = vpop.f32.mrb[0].mxu0
  %v4164 = vadd.f32 %v4096, %v4163
  %v4165 = vpop.f32.mrb[0].mxu0
  %v4166 = vpop.f32.mrb[0].mxu0
  %v4167 = vadd.f32 %v4096, %v4166
  %v4168 = vpop.f32.mrb[0].mxu0
  %4169 = vmatprep.mubr.bf16.mxu0 0
  %4170 = vmatmul.mubr.bf16.gmra.mrb[0].mxu0 %v4127
  %v4171 = vpop.f32.mrb[0].mxu0
  %v4172 = vadd.f32 %v4096, %v4171
  %v4173 = vpop.f32.mrb[0].mxu0
  %v4174 = vpop.f32.mrb[0].mxu0
  %v4175 = vadd.f32 %v4096, %v4174
  %v4176 = vpop.f32.mrb[0].mxu0
  %4177 = vdwg.mxu0
  %vm4178 = vcmask 80896
  %v4179 = vsel %vm4178, %v4164, -inf
  %4180 = vmax.xlane.f32.xlu0 %v4179
  %v4181 = vpop.xlane.xlu0 %4180
  %v4182 = vsel %vm4178, %v4167, -inf
  %4183 = vmax.xlane.f32.xlu0 %v4182
  %v4184 = vpop.xlane.xlu0 %4183
  %v4185 = vsel %vm4178, %v4172, -inf
  %4186 = vmax.xlane.f32.xlu0 %v4185
  %v4187 = vpop.xlane.xlu0 %4186
  %v4188 = vsel %vm4178, %v4175, -inf
  %4189 = vmax.xlane.f32.xlu0 %v4188
  %v4190 = vpop.xlane.xlu0 %4189
  %v4191 = vsub.f32 %v4164, %v4181
  %v4192 = vsub.f32 %v4167, %v4184
  %v4193 = vsub.f32 %v4172, %v4187
  %v4194 = vsub.f32 %v4175, %v4190
  %v4195 = vmul.f32 %v4191, 1.442695
  %v4196 = vpow.pop %v4195
  %v4197 = vmul.f32 %v4192, 1.442695
  %v4198 = vpow.pop %v4197
  %v4199 = vmul.f32 %v4193, 1.442695
  %v4200 = vpow.pop %v4199
  %v4201 = vmul.f32 %v4194, 1.442695
  %v4202 = vpow.pop %v4201
  %v4203 = vsel %vm4178, %v4196, 0.0
  %4204 = vadd.xlane.f32.xlu0 %v4203
  %v4205 = vpop.xlane.xlu0 %4204
  %v4206 = vsel %vm4178, %v4198, 0.0
  %4207 = vadd.xlane.f32.xlu0 %v4206
  %v4208 = vpop.xlane.xlu0 %4207
  %v4209 = vsel %vm4178, %v4200, 0.0
  %4210 = vadd.xlane.f32.xlu0 %v4209
  %v4211 = vpop.xlane.xlu0 %4210
  %v4212 = vsel %vm4178, %v4202, 0.0
  %4213 = vadd.xlane.f32.xlu0 %v4212
  %v4214 = vpop.xlane.xlu0 %4213
  %v4215 = vlog2.pop %v4205
  %v4216 = vmul.f32 %v4215, 0.6931472
  %v4217 = vlog2.pop %v4208
  %v4218 = vmul.f32 %v4217, 0.6931472
  %v4219 = vlog2.pop %v4211
  %v4220 = vmul.f32 %v4219, 0.6931472
  %v4221 = vlog2.pop %v4214
  %v4222 = vmul.f32 %v4221, 0.6931472
  %v4223 = vadd.f32 %v4216, %v4181
  %v4224 = vadd.f32 %v4218, %v4184
  %v4225 = vadd.f32 %v4220, %v4187
  %v4226 = vadd.f32 %v4222, %v4190
  %v4227 = vsub.f32 %v4164, %v4223
  %v4228 = vsub.f32 %v4167, %v4224
  %v4229 = vsub.f32 %v4172, %v4225
  %v4230 = vsub.f32 %v4175, %v4226
  %4231 = vst [vmem:[%s9] sm:$0xff] %v4227
  %4232 = vst [vmem:[%s9 + $0x8] sm:$0xff] %v4228
  %4233 = vst [vmem:[%s9 + $0x10] sm:$0xff] %v4229
  %4234 = vst [vmem:[%s9 + $0x18] sm:$0xff] %v4230
  // Predicated region
  $region38: #{cnn_mnist_forward.1} parent=0 // pred_check
    _
  $region39: #{cnn_mnist_forward.1} parent=0 // pred_check_branch
    %4236 = sbr.rel (0) target = $region41
  $region40: #{cnn_mnist_forward.1} parent=0 // pred_region
    _
  $region41: #{cnn_mnist_forward.1} parent=0 // pred_fallthru
    _
  // Predicated region
  $region42: #{cnn_mnist_forward.1} parent=0 // pred_check
    _
  $region43: #{cnn_mnist_forward.1} parent=0 // pred_check_branch
    %4238 = sbr.rel (0) target = $region45
  $region44: #{cnn_mnist_forward.1} parent=0 // pred_region
    _
  $region45: #{cnn_mnist_forward.1} parent=0 // pred_fallthru
    _

</llo_original>
